<compile_context>
chip_gen: v7x
topology: tpu7x:2x2x1
jax: 0.10.0
libtpu: 0.0.40
codegen_flags: <defaults>
</compile_context>

<pallas_src>
import numpy as np

import jax
import jax.numpy as jnp
from jax.experimental import pallas as pl
from jax.experimental.pallas import tpu as pltpu


# ----------------------------- Pallas kernels ------------------------------

def conv_trunk_kernel(pt_ref, w1_ref, b1_ref, w2_ref, b2_ref, feat_ref,
                      ppe_ref, ppo_ref):
    """Fused conv1+relu+pool1+conv2+relu+pool2 for one image.

    pt_ref : (1, 784, 9) bf16 conv1 patches; row = p*98 + h*7 + n where
             p = (ra*2+rb)*2 + q indexes the pool1 window position (ra, rb)
             and pooled-column parity q, conv1 output = (2h+ra, 2*(2n+q)+rb).
    w1_ref : (9, 16) bf16, b1_ref: (1, 16) f32
    w2_ref : (144, 16) bf16 [(kh*3+kw)*16+ci, co], b2_ref: (1, 16) f32
    feat_ref: (1, 49, 16) bf16 -- pooled2 in (H, W, C) order.
    ppe_ref/ppo_ref: (16, 8, 16) f32 VMEM scratch -- zero-padded pooled1,
             split by even / odd padded column.
    """
    # conv1 as a single (784,9)@(9,16) MXU matmul, + bias + relu.
    c1 = jnp.dot(pt_ref[0], w1_ref[...], preferred_element_type=jnp.float32)
    c1 = jnp.maximum(c1 + b1_ref[...], 0.0)                       # (784, 16)

    # 2x2 max-pool: rows are pre-grouped by pool-window phase, so pooling is
    # an elementwise max of the 4 phase blocks (done per pooled-column parity).
    blk = [c1[p * 98:(p + 1) * 98, :] for p in range(8)]
    p1_even = jnp.maximum(jnp.maximum(blk[0], blk[2]),
                          jnp.maximum(blk[4], blk[6]))            # w = 2n
    p1_odd = jnp.maximum(jnp.maximum(blk[1], blk[3]),
                         jnp.maximum(blk[5], blk[7]))             # w = 2n+1

    # Zero-padded pooled1, stored split by padded-column parity so that every
    # conv2 tap below is a contiguous (7, 16) slice.
    ppe_ref[...] = jnp.zeros_like(ppe_ref)   # even padded cols 0,2,...,14
    ppo_ref[...] = jnp.zeros_like(ppo_ref)   # odd  padded cols 1,3,...,15
    for h in range(14):
        # pooled col w=2n  -> padded col 2n+1 (odd)  -> ppo[:, n]
        ppo_ref[h + 1, 0:7, :] = p1_even[h * 7:(h + 1) * 7, :]
        # pooled col w=2n+1 -> padded col 2n+2 (even) -> ppe[:, n+1]
        ppe_ref[h + 1, 1:8, :] = p1_odd[h * 7:(h + 1) * 7, :]

    # conv2 im2col built fully in VMEM.
    # piece[i][t] = padded pooled1[row i, padded cols 2W+t for W=0..6, :]
    piece = [[(ppe_ref if t % 2 == 0 else ppo_ref)[i, t // 2:t // 2 + 7, :]
              for t in range(4)] for i in range(16)]
    phase_mats = []
    for ra in range(2):
        for rb in range(2):
            row_blocks = []
            for H in range(7):
                taps = [piece[2 * H + ra + kh][rb + kw]
                        for kh in range(3) for kw in range(3)]
                row_blocks.append(jnp.concatenate(taps, axis=1))    # (7, 144)
            phase_mats.append(jnp.concatenate(row_blocks, axis=0))  # (49, 144)
    patches2 = jnp.concatenate(phase_mats, axis=0)                  # (196, 144)

    # conv2 as one (196,144)@(144,16) MXU matmul + bias + relu, then 2x2
    # max-pool as a 4-way max over the phase blocks.
    c2 = jnp.dot(patches2.astype(w2_ref.dtype), w2_ref[...],
                 preferred_element_type=jnp.float32)
    c2 = jnp.maximum(c2 + b2_ref[...], 0.0)                         # (196, 16)
    p2 = jnp.maximum(jnp.maximum(c2[0:49, :], c2[49:98, :]),
                     jnp.maximum(c2[98:147, :], c2[147:196, :]))    # (49, 16)
    feat_ref[0] = p2.astype(feat_ref.dtype)


def conv_trunk(patches1, w1m, b1, w2m, b2):
    B = patches1.shape[0]
    return pl.pallas_call(
        conv_trunk_kernel,
        out_shape=jax.ShapeDtypeStruct((B, 49, 16), jnp.bfloat16),
        grid=(B,),
        in_specs=[
            pl.BlockSpec((1, 784, 9), lambda b: (b, 0, 0)),
            pl.BlockSpec((9, 16), lambda b: (0, 0)),
            pl.BlockSpec((1, 16), lambda b: (0, 0)),
            pl.BlockSpec((144, 16), lambda b: (0, 0)),
            pl.BlockSpec((1, 16), lambda b: (0, 0)),
        ],
        out_specs=pl.BlockSpec((1, 49, 16), lambda b: (b, 0, 0)),
        scratch_shapes=[pltpu.VMEM((16, 8, 16), jnp.float32),
                        pltpu.VMEM((16, 8, 16), jnp.float32)],
        compiler_params=pltpu.CompilerParams(
            dimension_semantics=("parallel",)),
    )(patches1, w1m, b1, w2m, b2)


def mlp_kernel(x_ref, w1_ref, b1_ref, w2_ref, b2_ref, w3_ref, b3_ref, out_ref):
    h = jnp.dot(x_ref[...], w1_ref[...], preferred_element_type=jnp.float32)
    h = jnp.maximum(h + b1_ref[...], 0.0)
    h = jnp.dot(h.astype(w2_ref.dtype), w2_ref[...],
                preferred_element_type=jnp.float32)
    h = jnp.maximum(h + b2_ref[...], 0.0)
    logits = jnp.dot(h.astype(w3_ref.dtype), w3_ref[...],
                     preferred_element_type=jnp.float32) + b3_ref[...]
    # softmax along the class dim (PyTorch dim=1), in f32.
    m = jnp.max(logits, axis=-1, keepdims=True)
    e = jnp.exp(logits - m)
    out_ref[...] = (e / jnp.sum(e, axis=-1, keepdims=True)).astype(out_ref.dtype)


def mlp_head(x, w1, b1, w2, b2, w3, b3):
    B, D = x.shape
    TB = B if B <= 256 else 256        # row tile; weights stay resident
    grid = (pl.cdiv(B, TB),)
    resident = lambda shape: pl.BlockSpec(shape, lambda i: (0, 0))
    return pl.pallas_call(
        mlp_kernel,
        out_shape=jax.ShapeDtypeStruct((B, w3.shape[1]), jnp.float32),
        grid=grid,
        in_specs=[pl.BlockSpec((TB, D), lambda i: (i, 0)),
                  resident(w1.shape), resident(b1.shape),
                  resident(w2.shape), resident(b2.shape),
                  resident(w3.shape), resident(b3.shape)],
        out_specs=pl.BlockSpec((TB, w3.shape[1]), lambda i: (i, 0)),
        compiler_params=pltpu.CompilerParams(
            dimension_semantics=("parallel",)),
    )(x, w1, b1, w2, b2, w3, b3)


# ------------------------------- JAX glue -----------------------------------

def _conv1_patches(xp):
    """(B,30,30) zero-padded input -> (B,784,9) phase-grouped conv1 patches.

    Row order: p = (ra*2+rb)*2 + q, then h (0..13), then n (0..6), giving the
    conv1 output at (2h+ra, 2*(2n+q)+rb); column order kh*3+kw.
    Cheap strided slices on the tiny 1-channel input (fused by XLA).
    """
    B = xp.shape[0]
    groups = []
    for ra in range(2):
        for rb in range(2):
            for q in range(2):
                taps = []
                for kh in range(3):
                    for kw in range(3):
                        r0 = ra + kh             # rows r0, r0+2, ..., r0+26
                        c0 = 2 * q + rb + kw     # cols c0, c0+4, ..., c0+24
                        sl = xp[:, r0:r0 + 27:2, c0:c0 + 25:4]   # (B, 14, 7)
                        taps.append(sl.reshape(B, 98))
                groups.append(jnp.stack(taps, axis=-1))          # (B, 98, 9)
    return jnp.concatenate(groups, axis=1)                       # (B, 784, 9)


def init_params(key):
    ks = jax.random.split(key, 10)

    def u(k, shape, fan_in):
        bound = 1.0 / jnp.sqrt(float(fan_in))
        return jax.random.uniform(k, shape, jnp.float32, -bound, bound)

    return {
        # PyTorch Conv2d weight layout (Cout, Cin, KH, KW)
        "conv1_w": u(ks[0], (16, 1, 3, 3), 1 * 9),
        "conv1_b": u(ks[1], (1, 16), 1 * 9),
        "conv2_w": u(ks[2], (16, 16, 3, 3), 16 * 9),
        "conv2_b": u(ks[3], (1, 16), 16 * 9),
        # Linear stored as (in, out); equivalent to PyTorch's x @ W.T + b
        "fc1_w": u(ks[4], (7 * 7 * 16, 128), 7 * 7 * 16),
        "fc1_b": u(ks[5], (1, 128), 7 * 7 * 16),
        "fc2_w": u(ks[6], (128, 64), 128),
        "fc2_b": u(ks[7], (1, 64), 128),
        "fc3_w": u(ks[8], (64, 10), 64),
        "fc3_b": u(ks[9], (1, 10), 64),
    }


@jax.jit
def convnet_forward(x, params):
    B = x.shape[0]
    dt = jnp.bfloat16

    # glue: zero-pad the tiny 1-channel input and build phase-grouped patches
    xp = jnp.pad(x.reshape(B, 28, 28), ((0, 0), (1, 1), (1, 1)))  # (B, 30, 30)
    patches1 = _conv1_patches(xp).astype(dt)                      # (B, 784, 9)

    # weight layout prep (negligible, layout only)
    w1m = params["conv1_w"].reshape(16, 9).T.astype(dt)                        # (9, 16)
    w2m = params["conv2_w"].transpose(2, 3, 1, 0).reshape(144, 16).astype(dt)  # (144, 16)
    # fold PyTorch's CHW flatten order into FC1 rows (kernel emits HWC order)
    w1fc = (params["fc1_w"].reshape(16, 7, 7, 128)
            .transpose(1, 2, 0, 3).reshape(784, 128).astype(dt))

    # fused conv trunk: (B, 49, 16) bf16, (H, W, C) order
    feat = conv_trunk(patches1, w1m, params["conv1_b"], w2m, params["conv2_b"])
    feat = feat.reshape(B, 784)   # free reshape (row-major), lane-dense FC input

    # fused FC head with softmax
    return mlp_head(feat,
                    w1fc, params["fc1_b"],
                    params["fc2_w"].astype(dt), params["fc2_b"],
                    params["fc3_w"].astype(dt), params["fc3_b"])


# --------------------------- pure-JAX reference ------------------------------

def _maxpool2x2_nchw(y):
    B, C, H, W = y.shape
    return y.reshape(B, C, H // 2, 2, W // 2, 2).max(axis=(3, 5))


def reference_forward(x, params):
    y = jax.lax.conv_general_dilated(
        x, params["conv1_w"], (1, 1), ((1, 1), (1, 1)),
        dimension_numbers=("NCHW", "OIHW", "NCHW"))
    y = jnp.maximum(y + params["conv1_b"].reshape(1, 16, 1, 1), 0.0)
    y = _maxpool2x2_nchw(y)
    y = jax.lax.conv_general_dilated(
        y, params["conv2_w"], (1, 1), ((1, 1), (1, 1)),
        dimension_numbers=("NCHW", "OIHW", "NCHW"))
    y = jnp.maximum(y + params["conv2_b"].reshape(1, 16, 1, 1), 0.0)
    y = _maxpool2x2_nchw(y)
    f = y.reshape(y.shape[0], 16 * 7 * 7)
    h = jnp.maximum(f @ params["fc1_w"] + params["fc1_b"], 0.0)
    h = jnp.maximum(h @ params["fc2_w"] + params["fc2_b"], 0.0)
    logits = h @ params["fc3_w"] + params["fc3_b"]
    return jax.nn.softmax(logits, axis=-1)


if __name__ == "__main__":
    key = jax.random.PRNGKey(0)
    pkey, xkey = jax.random.split(key)
    params = init_params(pkey)

    # input matches the PyTorch module: NCHW, 1 channel, 28x28 (FC1 = 7*7*16)
    x = jax.random.normal(xkey, (2, 1, 28, 28), jnp.float32)

    out = convnet_forward(x, params)
    jax.block_until_ready(out)

    assert out.shape == (2, 10), out.shape
    assert jnp.allclose(jnp.sum(out, axis=1), 1.0, atol=1e-5)

    ref = reference_forward(x, params)
    assert jnp.allclose(out, ref, atol=2e-2), float(jnp.max(jnp.abs(out - ref)))
    print("KERNEL_OK")
</pallas_src>

<mosaic_0001>
module attributes {stable_mosaic.version = 11 : i64} {
  func.func @conv_trunk_kernel(%arg0: i32, %arg1: memref<1x784x9xbf16, #tpu.memory_space<vmem>>, %arg2: memref<9x16xbf16, #tpu.memory_space<vmem>>, %arg3: memref<1x16xf32, #tpu.memory_space<vmem>>, %arg4: memref<144x16xbf16, #tpu.memory_space<vmem>>, %arg5: memref<1x16xf32, #tpu.memory_space<vmem>>, %arg6: memref<1x49x16xbf16, #tpu.memory_space<vmem>>, %arg7: memref<16x8x16xf32, #tpu.memory_space<vmem>>, %arg8: memref<16x8x16xf32, #tpu.memory_space<vmem>>) attributes {dimension_semantics = [#tpu.dimension_semantics<parallel>], iteration_bounds = array<i64: 2>, scalar_prefetch = 0 : i64, scratch_operands = 2 : i64, tpu.core_type = #tpu.core_type<tc>, window_params = [{transform_indices = @transform_0, window_bounds = array<i64: 1, 784, 9>}, {pipeline_mode = #tpu.pipeline_mode<synchronous>, transform_indices = @transform_1, window_bounds = array<i64: 9, 16>}, {pipeline_mode = #tpu.pipeline_mode<synchronous>, transform_indices = @transform_2, window_bounds = array<i64: 1, 16>}, {pipeline_mode = #tpu.pipeline_mode<synchronous>, transform_indices = @transform_3, window_bounds = array<i64: 144, 16>}, {pipeline_mode = #tpu.pipeline_mode<synchronous>, transform_indices = @transform_4, window_bounds = array<i64: 1, 16>}, {transform_indices = @transform_5, window_bounds = array<i64: 1, 49, 16>}]} {
    %c0 = arith.constant 0 : index
    %c0_0 = arith.constant 0 : index
    %c0_1 = arith.constant 0 : index
    %0 = vector.load %arg1[%c0, %c0_0, %c0_1] : memref<1x784x9xbf16, #tpu.memory_space<vmem>>, vector<1x784x9xbf16>
    %1 = vector.shape_cast %0 : vector<1x784x9xbf16> to vector<784x9xbf16>
    %c0_2 = arith.constant 0 : index
    %c0_3 = arith.constant 0 : index
    %2 = vector.load %arg2[%c0_2, %c0_3] : memref<9x16xbf16, #tpu.memory_space<vmem>>, vector<9x16xbf16>
    %cst = arith.constant dense<0.000000e+00> : vector<784x16xf32>
    %3 = tpu.matmul %1, %2, %cst {dimension_numbers = #tpu.dot_dimension_numbers<[1], [0], [0], [1], [0, 0, 1, 1], [], []>} : vector<784x9xbf16>, vector<9x16xbf16>, vector<784x16xf32> -> vector<784x16xf32>
    %c0_4 = arith.constant 0 : index
    %c0_5 = arith.constant 0 : index
    %4 = vector.load %arg3[%c0_4, %c0_5] : memref<1x16xf32, #tpu.memory_space<vmem>>, vector<1x16xf32>
    %5 = vector.broadcast %4 : vector<1x16xf32> to vector<784x16xf32>
    %6 = arith.addf %3, %5 : vector<784x16xf32>
    %cst_6 = arith.constant 0.000000e+00 : f32
    %7 = vector.broadcast %cst_6 : f32 to vector<784x16xf32>
    %8 = arith.maximumf %6, %7 : vector<784x16xf32>
    %9 = vector.extract_strided_slice %8 {offsets = [0, 0], sizes = [98, 16], strides = [1, 1]} : vector<784x16xf32> to vector<98x16xf32>
    %10 = vector.extract_strided_slice %8 {offsets = [98, 0], sizes = [98, 16], strides = [1, 1]} : vector<784x16xf32> to vector<98x16xf32>
    %11 = vector.extract_strided_slice %8 {offsets = [196, 0], sizes = [98, 16], strides = [1, 1]} : vector<784x16xf32> to vector<98x16xf32>
    %12 = vector.extract_strided_slice %8 {offsets = [294, 0], sizes = [98, 16], strides = [1, 1]} : vector<784x16xf32> to vector<98x16xf32>
    %13 = vector.extract_strided_slice %8 {offsets = [392, 0], sizes = [98, 16], strides = [1, 1]} : vector<784x16xf32> to vector<98x16xf32>
    %14 = vector.extract_strided_slice %8 {offsets = [490, 0], sizes = [98, 16], strides = [1, 1]} : vector<784x16xf32> to vector<98x16xf32>
    %15 = vector.extract_strided_slice %8 {offsets = [588, 0], sizes = [98, 16], strides = [1, 1]} : vector<784x16xf32> to vector<98x16xf32>
    %16 = vector.extract_strided_slice %8 {offsets = [686, 0], sizes = [98, 16], strides = [1, 1]} : vector<784x16xf32> to vector<98x16xf32>
    %17 = arith.maximumf %9, %11 : vector<98x16xf32>
    %18 = arith.maximumf %13, %15 : vector<98x16xf32>
    %19 = arith.maximumf %17, %18 : vector<98x16xf32>
    %20 = arith.maximumf %10, %12 : vector<98x16xf32>
    %21 = arith.maximumf %14, %16 : vector<98x16xf32>
    %22 = arith.maximumf %20, %21 : vector<98x16xf32>
    %cst_7 = arith.constant 0.000000e+00 : f32
    %23 = vector.broadcast %cst_7 : f32 to vector<16x8x16xf32>
    %c0_8 = arith.constant 0 : index
    %c0_9 = arith.constant 0 : index
    %c0_10 = arith.constant 0 : index
    %24 = vector.load %arg7[%c0_8, %c0_9, %c0_10] : memref<16x8x16xf32, #tpu.memory_space<vmem>>, vector<16x8x16xf32>
    tpu.vector_store %arg7[%c0_8, %c0_9, %c0_10], %23 {strides = array<i32>} : memref<16x8x16xf32, #tpu.memory_space<vmem>>, vector<16x8x16xf32>,
    %cst_11 = arith.constant 0.000000e+00 : f32
    %25 = vector.broadcast %cst_11 : f32 to vector<16x8x16xf32>
    %c0_12 = arith.constant 0 : index
    %c0_13 = arith.constant 0 : index
    %c0_14 = arith.constant 0 : index
    %26 = vector.load %arg8[%c0_12, %c0_13, %c0_14] : memref<16x8x16xf32, #tpu.memory_space<vmem>>, vector<16x8x16xf32>
    tpu.vector_store %arg8[%c0_12, %c0_13, %c0_14], %25 {strides = array<i32>} : memref<16x8x16xf32, #tpu.memory_space<vmem>>, vector<16x8x16xf32>,
    %27 = vector.extract_strided_slice %19 {offsets = [0, 0], sizes = [7, 16], strides = [1, 1]} : vector<98x16xf32> to vector<7x16xf32>
    %c1 = arith.constant 1 : index
    %c0_15 = arith.constant 0 : index
    %c0_16 = arith.constant 0 : index
    %28 = vector.load %arg8[%c1, %c0_15, %c0_16] : memref<16x8x16xf32, #tpu.memory_space<vmem>>, vector<1x7x16xf32>
    %29 = vector.shape_cast %28 : vector<1x7x16xf32> to vector<7x16xf32>
    %30 = vector.shape_cast %27 : vector<7x16xf32> to vector<1x7x16xf32>
    tpu.vector_store %arg8[%c1, %c0_15, %c0_16], %30 {strides = array<i32>} : memref<16x8x16xf32, #tpu.memory_space<vmem>>, vector<1x7x16xf32>,
    %31 = vector.extract_strided_slice %22 {offsets = [0, 0], sizes = [7, 16], strides = [1, 1]} : vector<98x16xf32> to vector<7x16xf32>
    %c1_17 = arith.constant 1 : index
    %c1_18 = arith.constant 1 : index
    %c0_19 = arith.constant 0 : index
    %32 = vector.load %arg7[%c1_17, %c1_18, %c0_19] : memref<16x8x16xf32, #tpu.memory_space<vmem>>, vector<1x7x16xf32>
    %33 = vector.shape_cast %32 : vector<1x7x16xf32> to vector<7x16xf32>
    %34 = vector.shape_cast %31 : vector<7x16xf32> to vector<1x7x16xf32>
    tpu.vector_store %arg7[%c1_17, %c1_18, %c0_19], %34 {strides = array<i32>} : memref<16x8x16xf32, #tpu.memory_space<vmem>>, vector<1x7x16xf32>,
    %35 = vector.extract_strided_slice %19 {offsets = [7, 0], sizes = [7, 16], strides = [1, 1]} : vector<98x16xf32> to vector<7x16xf32>
    %c2 = arith.constant 2 : index
    %c0_20 = arith.constant 0 : index
    %c0_21 = arith.constant 0 : index
    %36 = vector.load %arg8[%c2, %c0_20, %c0_21] : memref<16x8x16xf32, #tpu.memory_space<vmem>>, vector<1x7x16xf32>
    %37 = vector.shape_cast %36 : vector<1x7x16xf32> to vector<7x16xf32>
    %38 = vector.shape_cast %35 : vector<7x16xf32> to vector<1x7x16xf32>
    tpu.vector_store %arg8[%c2, %c0_20, %c0_21], %38 {strides = array<i32>} : memref<16x8x16xf32, #tpu.memory_space<vmem>>, vector<1x7x16xf32>,
    %39 = vector.extract_strided_slice %22 {offsets = [7, 0], sizes = [7, 16], strides = [1, 1]} : vector<98x16xf32> to vector<7x16xf32>
    %c2_22 = arith.constant 2 : index
    %c1_23 = arith.constant 1 : index
    %c0_24 = arith.constant 0 : index
    %40 = vector.load %arg7[%c2_22, %c1_23, %c0_24] : memref<16x8x16xf32, #tpu.memory_space<vmem>>, vector<1x7x16xf32>
    %41 = vector.shape_cast %40 : vector<1x7x16xf32> to vector<7x16xf32>
    %42 = vector.shape_cast %39 : vector<7x16xf32> to vector<1x7x16xf32>
    tpu.vector_store %arg7[%c2_22, %c1_23, %c0_24], %42 {strides = array<i32>} : memref<16x8x16xf32, #tpu.memory_space<vmem>>, vector<1x7x16xf32>,
    %43 = vector.extract_strided_slice %19 {offsets = [14, 0], sizes = [7, 16], strides = [1, 1]} : vector<98x16xf32> to vector<7x16xf32>
    %c3 = arith.constant 3 : index
    %c0_25 = arith.constant 0 : index
    %c0_26 = arith.constant 0 : index
    %44 = vector.load %arg8[%c3, %c0_25, %c0_26] : memref<16x8x16xf32, #tpu.memory_space<vmem>>, vector<1x7x16xf32>
    %45 = vector.shape_cast %44 : vector<1x7x16xf32> to vector<7x16xf32>
    %46 = vector.shape_cast %43 : vector<7x16xf32> to vector<1x7x16xf32>
    tpu.vector_store %arg8[%c3, %c0_25, %c0_26], %46 {strides = array<i32>} : memref<16x8x16xf32, #tpu.memory_space<vmem>>, vector<1x7x16xf32>,
    %47 = vector.extract_strided_slice %22 {offsets = [14, 0], sizes = [7, 16], strides = [1, 1]} : vector<98x16xf32> to vector<7x16xf32>
    %c3_27 = arith.constant 3 : index
    %c1_28 = arith.constant 1 : index
    %c0_29 = arith.constant 0 : index
    %48 = vector.load %arg7[%c3_27, %c1_28, %c0_29] : memref<16x8x16xf32, #tpu.memory_space<vmem>>, vector<1x7x16xf32>
    %49 = vector.shape_cast %48 : vector<1x7x16xf32> to vector<7x16xf32>
    %50 = vector.shape_cast %47 : vector<7x16xf32> to vector<1x7x16xf32>
    tpu.vector_store %arg7[%c3_27, %c1_28, %c0_29], %50 {strides = array<i32>} : memref<16x8x16xf32, #tpu.memory_space<vmem>>, vector<1x7x16xf32>,
    %51 = vector.extract_strided_slice %19 {offsets = [21, 0], sizes = [7, 16], strides = [1, 1]} : vector<98x16xf32> to vector<7x16xf32>
    %c4 = arith.constant 4 : index
    %c0_30 = arith.constant 0 : index
    %c0_31 = arith.constant 0 : index
    %52 = vector.load %arg8[%c4, %c0_30, %c0_31] : memref<16x8x16xf32, #tpu.memory_space<vmem>>, vector<1x7x16xf32>
    %53 = vector.shape_cast %52 : vector<1x7x16xf32> to vector<7x16xf32>
    %54 = vector.shape_cast %51 : vector<7x16xf32> to vector<1x7x16xf32>
    tpu.vector_store %arg8[%c4, %c0_30, %c0_31], %54 {strides = array<i32>} : memref<16x8x16xf32, #tpu.memory_space<vmem>>, vector<1x7x16xf32>,
    %55 = vector.extract_strided_slice %22 {offsets = [21, 0], sizes = [7, 16], strides = [1, 1]} : vector<98x16xf32> to vector<7x16xf32>
    %c4_32 = arith.constant 4 : index
    %c1_33 = arith.constant 1 : index
    %c0_34 = arith.constant 0 : index
    %56 = vector.load %arg7[%c4_32, %c1_33, %c0_34] : memref<16x8x16xf32, #tpu.memory_space<vmem>>, vector<1x7x16xf32>
    %57 = vector.shape_cast %56 : vector<1x7x16xf32> to vector<7x16xf32>
    %58 = vector.shape_cast %55 : vector<7x16xf32> to vector<1x7x16xf32>
    tpu.vector_store %arg7[%c4_32, %c1_33, %c0_34], %58 {strides = array<i32>} : memref<16x8x16xf32, #tpu.memory_space<vmem>>, vector<1x7x16xf32>,
    %59 = vector.extract_strided_slice %19 {offsets = [28, 0], sizes = [7, 16], strides = [1, 1]} : vector<98x16xf32> to vector<7x16xf32>
    %c5 = arith.constant 5 : index
    %c0_35 = arith.constant 0 : index
    %c0_36 = arith.constant 0 : index
    %60 = vector.load %arg8[%c5, %c0_35, %c0_36] : memref<16x8x16xf32, #tpu.memory_space<vmem>>, vector<1x7x16xf32>
    %61 = vector.shape_cast %60 : vector<1x7x16xf32> to vector<7x16xf32>
    %62 = vector.shape_cast %59 : vector<7x16xf32> to vector<1x7x16xf32>
    tpu.vector_store %arg8[%c5, %c0_35, %c0_36], %62 {strides = array<i32>} : memref<16x8x16xf32, #tpu.memory_space<vmem>>, vector<1x7x16xf32>,
    %63 = vector.extract_strided_slice %22 {offsets = [28, 0], sizes = [7, 16], strides = [1, 1]} : vector<98x16xf32> to vector<7x16xf32>
    %c5_37 = arith.constant 5 : index
    %c1_38 = arith.constant 1 : index
    %c0_39 = arith.constant 0 : index
    %64 = vector.load %arg7[%c5_37, %c1_38, %c0_39] : memref<16x8x16xf32, #tpu.memory_space<vmem>>, vector<1x7x16xf32>
    %65 = vector.shape_cast %64 : vector<1x7x16xf32> to vector<7x16xf32>
    %66 = vector.shape_cast %63 : vector<7x16xf32> to vector<1x7x16xf32>
    tpu.vector_store %arg7[%c5_37, %c1_38, %c0_39], %66 {strides = array<i32>} : memref<16x8x16xf32, #tpu.memory_space<vmem>>, vector<1x7x16xf32>,
    %67 = vector.extract_strided_slice %19 {offsets = [35, 0], sizes = [7, 16], strides = [1, 1]} : vector<98x16xf32> to vector<7x16xf32>
    %c6 = arith.constant 6 : index
    %c0_40 = arith.constant 0 : index
    %c0_41 = arith.constant 0 : index
    %68 = vector.load %arg8[%c6, %c0_40, %c0_41] : memref<16x8x16xf32, #tpu.memory_space<vmem>>, vector<1x7x16xf32>
    %69 = vector.shape_cast %68 : vector<1x7x16xf32> to vector<7x16xf32>
    %70 = vector.shape_cast %67 : vector<7x16xf32> to vector<1x7x16xf32>
    tpu.vector_store %arg8[%c6, %c0_40, %c0_41], %70 {strides = array<i32>} : memref<16x8x16xf32, #tpu.memory_space<vmem>>, vector<1x7x16xf32>,
    %71 = vector.extract_strided_slice %22 {offsets = [35, 0], sizes = [7, 16], strides = [1, 1]} : vector<98x16xf32> to vector<7x16xf32>
    %c6_42 = arith.constant 6 : index
    %c1_43 = arith.constant 1 : index
    %c0_44 = arith.constant 0 : index
    %72 = vector.load %arg7[%c6_42, %c1_43, %c0_44] : memref<16x8x16xf32, #tpu.memory_space<vmem>>, vector<1x7x16xf32>
    %73 = vector.shape_cast %72 : vector<1x7x16xf32> to vector<7x16xf32>
    %74 = vector.shape_cast %71 : vector<7x16xf32> to vector<1x7x16xf32>
    tpu.vector_store %arg7[%c6_42, %c1_43, %c0_44], %74 {strides = array<i32>} : memref<16x8x16xf32, #tpu.memory_space<vmem>>, vector<1x7x16xf32>,
    %75 = vector.extract_strided_slice %19 {offsets = [42, 0], sizes = [7, 16], strides = [1, 1]} : vector<98x16xf32> to vector<7x16xf32>
    %c7 = arith.constant 7 : index
    %c0_45 = arith.constant 0 : index
    %c0_46 = arith.constant 0 : index
    %76 = vector.load %arg8[%c7, %c0_45, %c0_46] : memref<16x8x16xf32, #tpu.memory_space<vmem>>, vector<1x7x16xf32>
    %77 = vector.shape_cast %76 : vector<1x7x16xf32> to vector<7x16xf32>
    %78 = vector.shape_cast %75 : vector<7x16xf32> to vector<1x7x16xf32>
    tpu.vector_store %arg8[%c7, %c0_45, %c0_46], %78 {strides = array<i32>} : memref<16x8x16xf32, #tpu.memory_space<vmem>>, vector<1x7x16xf32>,
    %79 = vector.extract_strided_slice %22 {offsets = [42, 0], sizes = [7, 16], strides = [1, 1]} : vector<98x16xf32> to vector<7x16xf32>
    %c7_47 = arith.constant 7 : index
    %c1_48 = arith.constant 1 : index
    %c0_49 = arith.constant 0 : index
    %80 = vector.load %arg7[%c7_47, %c1_48, %c0_49] : memref<16x8x16xf32, #tpu.memory_space<vmem>>, vector<1x7x16xf32>
    %81 = vector.shape_cast %80 : vector<1x7x16xf32> to vector<7x16xf32>
    %82 = vector.shape_cast %79 : vector<7x16xf32> to vector<1x7x16xf32>
    tpu.vector_store %arg7[%c7_47, %c1_48, %c0_49], %82 {strides = array<i32>} : memref<16x8x16xf32, #tpu.memory_space<vmem>>, vector<1x7x16xf32>,
    %83 = vector.extract_strided_slice %19 {offsets = [49, 0], sizes = [7, 16], strides = [1, 1]} : vector<98x16xf32> to vector<7x16xf32>
    %c8 = arith.constant 8 : index
    %c0_50 = arith.constant 0 : index
    %c0_51 = arith.constant 0 : index
    %84 = vector.load %arg8[%c8, %c0_50, %c0_51] : memref<16x8x16xf32, #tpu.memory_space<vmem>>, vector<1x7x16xf32>
    %85 = vector.shape_cast %84 : vector<1x7x16xf32> to vector<7x16xf32>
    %86 = vector.shape_cast %83 : vector<7x16xf32> to vector<1x7x16xf32>
    tpu.vector_store %arg8[%c8, %c0_50, %c0_51], %86 {strides = array<i32>} : memref<16x8x16xf32, #tpu.memory_space<vmem>>, vector<1x7x16xf32>,
    %87 = vector.extract_strided_slice %22 {offsets = [49, 0], sizes = [7, 16], strides = [1, 1]} : vector<98x16xf32> to vector<7x16xf32>
    %c8_52 = arith.constant 8 : index
    %c1_53 = arith.constant 1 : index
    %c0_54 = arith.constant 0 : index
    %88 = vector.load %arg7[%c8_52, %c1_53, %c0_54] : memref<16x8x16xf32, #tpu.memory_space<vmem>>, vector<1x7x16xf32>
    %89 = vector.shape_cast %88 : vector<1x7x16xf32> to vector<7x16xf32>
    %90 = vector.shape_cast %87 : vector<7x16xf32> to vector<1x7x16xf32>
    tpu.vector_store %arg7[%c8_52, %c1_53, %c0_54], %90 {strides = array<i32>} : memref<16x8x16xf32, #tpu.memory_space<vmem>>, vector<1x7x16xf32>,
    %91 = vector.extract_strided_slice %19 {offsets = [56, 0], sizes = [7, 16], strides = [1, 1]} : vector<98x16xf32> to vector<7x16xf32>
    %c9 = arith.constant 9 : index
    %c0_55 = arith.constant 0 : index
    %c0_56 = arith.constant 0 : index
    %92 = vector.load %arg8[%c9, %c0_55, %c0_56] : memref<16x8x16xf32, #tpu.memory_space<vmem>>, vector<1x7x16xf32>
    %93 = vector.shape_cast %92 : vector<1x7x16xf32> to vector<7x16xf32>
    %94 = vector.shape_cast %91 : vector<7x16xf32> to vector<1x7x16xf32>
    tpu.vector_store %arg8[%c9, %c0_55, %c0_56], %94 {strides = array<i32>} : memref<16x8x16xf32, #tpu.memory_space<vmem>>, vector<1x7x16xf32>,
    %95 = vector.extract_strided_slice %22 {offsets = [56, 0], sizes = [7, 16], strides = [1, 1]} : vector<98x16xf32> to vector<7x16xf32>
    %c9_57 = arith.constant 9 : index
    %c1_58 = arith.constant 1 : index
    %c0_59 = arith.constant 0 : index
    %96 = vector.load %arg7[%c9_57, %c1_58, %c0_59] : memref<16x8x16xf32, #tpu.memory_space<vmem>>, vector<1x7x16xf32>
    %97 = vector.shape_cast %96 : vector<1x7x16xf32> to vector<7x16xf32>
    %98 = vector.shape_cast %95 : vector<7x16xf32> to vector<1x7x16xf32>
    tpu.vector_store %arg7[%c9_57, %c1_58, %c0_59], %98 {strides = array<i32>} : memref<16x8x16xf32, #tpu.memory_space<vmem>>, vector<1x7x16xf32>,
    %99 = vector.extract_strided_slice %19 {offsets = [63, 0], sizes = [7, 16], strides = [1, 1]} : vector<98x16xf32> to vector<7x16xf32>
    %c10 = arith.constant 10 : index
    %c0_60 = arith.constant 0 : index
    %c0_61 = arith.constant 0 : index
    %100 = vector.load %arg8[%c10, %c0_60, %c0_61] : memref<16x8x16xf32, #tpu.memory_space<vmem>>, vector<1x7x16xf32>
    %101 = vector.shape_cast %100 : vector<1x7x16xf32> to vector<7x16xf32>
    %102 = vector.shape_cast %99 : vector<7x16xf32> to vector<1x7x16xf32>
    tpu.vector_store %arg8[%c10, %c0_60, %c0_61], %102 {strides = array<i32>} : memref<16x8x16xf32, #tpu.memory_space<vmem>>, vector<1x7x16xf32>,
    %103 = vector.extract_strided_slice %22 {offsets = [63, 0], sizes = [7, 16], strides = [1, 1]} : vector<98x16xf32> to vector<7x16xf32>
    %c10_62 = arith.constant 10 : index
    %c1_63 = arith.constant 1 : index
    %c0_64 = arith.constant 0 : index
    %104 = vector.load %arg7[%c10_62, %c1_63, %c0_64] : memref<16x8x16xf32, #tpu.memory_space<vmem>>, vector<1x7x16xf32>
    %105 = vector.shape_cast %104 : vector<1x7x16xf32> to vector<7x16xf32>
    %106 = vector.shape_cast %103 : vector<7x16xf32> to vector<1x7x16xf32>
    tpu.vector_store %arg7[%c10_62, %c1_63, %c0_64], %106 {strides = array<i32>} : memref<16x8x16xf32, #tpu.memory_space<vmem>>, vector<1x7x16xf32>,
    %107 = vector.extract_strided_slice %19 {offsets = [70, 0], sizes = [7, 16], strides = [1, 1]} : vector<98x16xf32> to vector<7x16xf32>
    %c11 = arith.constant 11 : index
    %c0_65 = arith.constant 0 : index
    %c0_66 = arith.constant 0 : index
    %108 = vector.load %arg8[%c11, %c0_65, %c0_66] : memref<16x8x16xf32, #tpu.memory_space<vmem>>, vector<1x7x16xf32>
    %109 = vector.shape_cast %108 : vector<1x7x16xf32> to vector<7x16xf32>
    %110 = vector.shape_cast %107 : vector<7x16xf32> to vector<1x7x16xf32>
    tpu.vector_store %arg8[%c11, %c0_65, %c0_66], %110 {strides = array<i32>} : memref<16x8x16xf32, #tpu.memory_space<vmem>>, vector<1x7x16xf32>,
    %111 = vector.extract_strided_slice %22 {offsets = [70, 0], sizes = [7, 16], strides = [1, 1]} : vector<98x16xf32> to vector<7x16xf32>
    %c11_67 = arith.constant 11 : index
    %c1_68 = arith.constant 1 : index
    %c0_69 = arith.constant 0 : index
    %112 = vector.load %arg7[%c11_67, %c1_68, %c0_69] : memref<16x8x16xf32, #tpu.memory_space<vmem>>, vector<1x7x16xf32>
    %113 = vector.shape_cast %112 : vector<1x7x16xf32> to vector<7x16xf32>
    %114 = vector.shape_cast %111 : vector<7x16xf32> to vector<1x7x16xf32>
    tpu.vector_store %arg7[%c11_67, %c1_68, %c0_69], %114 {strides = array<i32>} : memref<16x8x16xf32, #tpu.memory_space<vmem>>, vector<1x7x16xf32>,
    %115 = vector.extract_strided_slice %19 {offsets = [77, 0], sizes = [7, 16], strides = [1, 1]} : vector<98x16xf32> to vector<7x16xf32>
    %c12 = arith.constant 12 : index
    %c0_70 = arith.constant 0 : index
    %c0_71 = arith.constant 0 : index
    %116 = vector.load %arg8[%c12, %c0_70, %c0_71] : memref<16x8x16xf32, #tpu.memory_space<vmem>>, vector<1x7x16xf32>
    %117 = vector.shape_cast %116 : vector<1x7x16xf32> to vector<7x16xf32>
    %118 = vector.shape_cast %115 : vector<7x16xf32> to vector<1x7x16xf32>
    tpu.vector_store %arg8[%c12, %c0_70, %c0_71], %118 {strides = array<i32>} : memref<16x8x16xf32, #tpu.memory_space<vmem>>, vector<1x7x16xf32>,
    %119 = vector.extract_strided_slice %22 {offsets = [77, 0], sizes = [7, 16], strides = [1, 1]} : vector<98x16xf32> to vector<7x16xf32>
    %c12_72 = arith.constant 12 : index
    %c1_73 = arith.constant 1 : index
    %c0_74 = arith.constant 0 : index
    %120 = vector.load %arg7[%c12_72, %c1_73, %c0_74] : memref<16x8x16xf32, #tpu.memory_space<vmem>>, vector<1x7x16xf32>
    %121 = vector.shape_cast %120 : vector<1x7x16xf32> to vector<7x16xf32>
    %122 = vector.shape_cast %119 : vector<7x16xf32> to vector<1x7x16xf32>
    tpu.vector_store %arg7[%c12_72, %c1_73, %c0_74], %122 {strides = array<i32>} : memref<16x8x16xf32, #tpu.memory_space<vmem>>, vector<1x7x16xf32>,
    %123 = vector.extract_strided_slice %19 {offsets = [84, 0], sizes = [7, 16], strides = [1, 1]} : vector<98x16xf32> to vector<7x16xf32>
    %c13 = arith.constant 13 : index
    %c0_75 = arith.constant 0 : index
    %c0_76 = arith.constant 0 : index
    %124 = vector.load %arg8[%c13, %c0_75, %c0_76] : memref<16x8x16xf32, #tpu.memory_space<vmem>>, vector<1x7x16xf32>
    %125 = vector.shape_cast %124 : vector<1x7x16xf32> to vector<7x16xf32>
    %126 = vector.shape_cast %123 : vector<7x16xf32> to vector<1x7x16xf32>
    tpu.vector_store %arg8[%c13, %c0_75, %c0_76], %126 {strides = array<i32>} : memref<16x8x16xf32, #tpu.memory_space<vmem>>, vector<1x7x16xf32>,
    %127 = vector.extract_strided_slice %22 {offsets = [84, 0], sizes = [7, 16], strides = [1, 1]} : vector<98x16xf32> to vector<7x16xf32>
    %c13_77 = arith.constant 13 : index
    %c1_78 = arith.constant 1 : index
    %c0_79 = arith.constant 0 : index
    %128 = vector.load %arg7[%c13_77, %c1_78, %c0_79] : memref<16x8x16xf32, #tpu.memory_space<vmem>>, vector<1x7x16xf32>
    %129 = vector.shape_cast %128 : vector<1x7x16xf32> to vector<7x16xf32>
    %130 = vector.shape_cast %127 : vector<7x16xf32> to vector<1x7x16xf32>
    tpu.vector_store %arg7[%c13_77, %c1_78, %c0_79], %130 {strides = array<i32>} : memref<16x8x16xf32, #tpu.memory_space<vmem>>, vector<1x7x16xf32>,
    %131 = vector.extract_strided_slice %19 {offsets = [91, 0], sizes = [7, 16], strides = [1, 1]} : vector<98x16xf32> to vector<7x16xf32>
    %c14 = arith.constant 14 : index
    %c0_80 = arith.constant 0 : index
    %c0_81 = arith.constant 0 : index
    %132 = vector.load %arg8[%c14, %c0_80, %c0_81] : memref<16x8x16xf32, #tpu.memory_space<vmem>>, vector<1x7x16xf32>
    %133 = vector.shape_cast %132 : vector<1x7x16xf32> to vector<7x16xf32>
    %134 = vector.shape_cast %131 : vector<7x16xf32> to vector<1x7x16xf32>
    tpu.vector_store %arg8[%c14, %c0_80, %c0_81], %134 {strides = array<i32>} : memref<16x8x16xf32, #tpu.memory_space<vmem>>, vector<1x7x16xf32>,
    %135 = vector.extract_strided_slice %22 {offsets = [91, 0], sizes = [7, 16], strides = [1, 1]} : vector<98x16xf32> to vector<7x16xf32>
    %c14_82 = arith.constant 14 : index
    %c1_83 = arith.constant 1 : index
    %c0_84 = arith.constant 0 : index
    %136 = vector.load %arg7[%c14_82, %c1_83, %c0_84] : memref<16x8x16xf32, #tpu.memory_space<vmem>>, vector<1x7x16xf32>
    %137 = vector.shape_cast %136 : vector<1x7x16xf32> to vector<7x16xf32>
    %138 = vector.shape_cast %135 : vector<7x16xf32> to vector<1x7x16xf32>
    tpu.vector_store %arg7[%c14_82, %c1_83, %c0_84], %138 {strides = array<i32>} : memref<16x8x16xf32, #tpu.memory_space<vmem>>, vector<1x7x16xf32>,
    %c0_85 = arith.constant 0 : index
    %c0_86 = arith.constant 0 : index
    %c0_87 = arith.constant 0 : index
    %139 = vector.load %arg7[%c0_85, %c0_86, %c0_87] : memref<16x8x16xf32, #tpu.memory_space<vmem>>, vector<1x7x16xf32>
    %140 = vector.shape_cast %139 : vector<1x7x16xf32> to vector<7x16xf32>
    %c0_88 = arith.constant 0 : index
    %c0_89 = arith.constant 0 : index
    %c0_90 = arith.constant 0 : index
    %141 = vector.load %arg8[%c0_88, %c0_89, %c0_90] : memref<16x8x16xf32, #tpu.memory_space<vmem>>, vector<1x7x16xf32>
    %142 = vector.shape_cast %141 : vector<1x7x16xf32> to vector<7x16xf32>
    %c0_91 = arith.constant 0 : index
    %c1_92 = arith.constant 1 : index
    %c0_93 = arith.constant 0 : index
    %143 = vector.load %arg7[%c0_91, %c1_92, %c0_93] : memref<16x8x16xf32, #tpu.memory_space<vmem>>, vector<1x7x16xf32>
    %144 = vector.shape_cast %143 : vector<1x7x16xf32> to vector<7x16xf32>
    %c0_94 = arith.constant 0 : index
    %c1_95 = arith.constant 1 : index
    %c0_96 = arith.constant 0 : index
    %145 = vector.load %arg8[%c0_94, %c1_95, %c0_96] : memref<16x8x16xf32, #tpu.memory_space<vmem>>, vector<1x7x16xf32>
    %146 = vector.shape_cast %145 : vector<1x7x16xf32> to vector<7x16xf32>
    %c1_97 = arith.constant 1 : index
    %c0_98 = arith.constant 0 : index
    %c0_99 = arith.constant 0 : index
    %147 = vector.load %arg7[%c1_97, %c0_98, %c0_99] : memref<16x8x16xf32, #tpu.memory_space<vmem>>, vector<1x7x16xf32>
    %148 = vector.shape_cast %147 : vector<1x7x16xf32> to vector<7x16xf32>
    %c1_100 = arith.constant 1 : index
    %c0_101 = arith.constant 0 : index
    %c0_102 = arith.constant 0 : index
    %149 = vector.load %arg8[%c1_100, %c0_101, %c0_102] : memref<16x8x16xf32, #tpu.memory_space<vmem>>, vector<1x7x16xf32>
    %150 = vector.shape_cast %149 : vector<1x7x16xf32> to vector<7x16xf32>
    %c1_103 = arith.constant 1 : index
    %c1_104 = arith.constant 1 : index
    %c0_105 = arith.constant 0 : index
    %151 = vector.load %arg7[%c1_103, %c1_104, %c0_105] : memref<16x8x16xf32, #tpu.memory_space<vmem>>, vector<1x7x16xf32>
    %152 = vector.shape_cast %151 : vector<1x7x16xf32> to vector<7x16xf32>
    %c1_106 = arith.constant 1 : index
    %c1_107 = arith.constant 1 : index
    %c0_108 = arith.constant 0 : index
    %153 = vector.load %arg8[%c1_106, %c1_107, %c0_108] : memref<16x8x16xf32, #tpu.memory_space<vmem>>, vector<1x7x16xf32>
    %154 = vector.shape_cast %153 : vector<1x7x16xf32> to vector<7x16xf32>
    %c2_109 = arith.constant 2 : index
    %c0_110 = arith.constant 0 : index
    %c0_111 = arith.constant 0 : index
    %155 = vector.load %arg7[%c2_109, %c0_110, %c0_111] : memref<16x8x16xf32, #tpu.memory_space<vmem>>, vector<1x7x16xf32>
    %156 = vector.shape_cast %155 : vector<1x7x16xf32> to vector<7x16xf32>
    %c2_112 = arith.constant 2 : index
    %c0_113 = arith.constant 0 : index
    %c0_114 = arith.constant 0 : index
    %157 = vector.load %arg8[%c2_112, %c0_113, %c0_114] : memref<16x8x16xf32, #tpu.memory_space<vmem>>, vector<1x7x16xf32>
    %158 = vector.shape_cast %157 : vector<1x7x16xf32> to vector<7x16xf32>
    %c2_115 = arith.constant 2 : index
    %c1_116 = arith.constant 1 : index
    %c0_117 = arith.constant 0 : index
    %159 = vector.load %arg7[%c2_115, %c1_116, %c0_117] : memref<16x8x16xf32, #tpu.memory_space<vmem>>, vector<1x7x16xf32>
    %160 = vector.shape_cast %159 : vector<1x7x16xf32> to vector<7x16xf32>
    %c2_118 = arith.constant 2 : index
    %c1_119 = arith.constant 1 : index
    %c0_120 = arith.constant 0 : index
    %161 = vector.load %arg8[%c2_118, %c1_119, %c0_120] : memref<16x8x16xf32, #tpu.memory_space<vmem>>, vector<1x7x16xf32>
    %162 = vector.shape_cast %161 : vector<1x7x16xf32> to vector<7x16xf32>
    %c3_121 = arith.constant 3 : index
    %c0_122 = arith.constant 0 : index
    %c0_123 = arith.constant 0 : index
    %163 = vector.load %arg7[%c3_121, %c0_122, %c0_123] : memref<16x8x16xf32, #tpu.memory_space<vmem>>, vector<1x7x16xf32>
    %164 = vector.shape_cast %163 : vector<1x7x16xf32> to vector<7x16xf32>
    %c3_124 = arith.constant 3 : index
    %c0_125 = arith.constant 0 : index
    %c0_126 = arith.constant 0 : index
    %165 = vector.load %arg8[%c3_124, %c0_125, %c0_126] : memref<16x8x16xf32, #tpu.memory_space<vmem>>, vector<1x7x16xf32>
    %166 = vector.shape_cast %165 : vector<1x7x16xf32> to vector<7x16xf32>
    %c3_127 = arith.constant 3 : index
    %c1_128 = arith.constant 1 : index
    %c0_129 = arith.constant 0 : index
    %167 = vector.load %arg7[%c3_127, %c1_128, %c0_129] : memref<16x8x16xf32, #tpu.memory_space<vmem>>, vector<1x7x16xf32>
    %168 = vector.shape_cast %167 : vector<1x7x16xf32> to vector<7x16xf32>
    %c3_130 = arith.constant 3 : index
    %c1_131 = arith.constant 1 : index
    %c0_132 = arith.constant 0 : index
    %169 = vector.load %arg8[%c3_130, %c1_131, %c0_132] : memref<16x8x16xf32, #tpu.memory_space<vmem>>, vector<1x7x16xf32>
    %170 = vector.shape_cast %169 : vector<1x7x16xf32> to vector<7x16xf32>
    %c4_133 = arith.constant 4 : index
    %c0_134 = arith.constant 0 : index
    %c0_135 = arith.constant 0 : index
    %171 = vector.load %arg7[%c4_133, %c0_134, %c0_135] : memref<16x8x16xf32, #tpu.memory_space<vmem>>, vector<1x7x16xf32>
    %172 = vector.shape_cast %171 : vector<1x7x16xf32> to vector<7x16xf32>
    %c4_136 = arith.constant 4 : index
    %c0_137 = arith.constant 0 : index
    %c0_138 = arith.constant 0 : index
    %173 = vector.load %arg8[%c4_136, %c0_137, %c0_138] : memref<16x8x16xf32, #tpu.memory_space<vmem>>, vector<1x7x16xf32>
    %174 = vector.shape_cast %173 : vector<1x7x16xf32> to vector<7x16xf32>
    %c4_139 = arith.constant 4 : index
    %c1_140 = arith.constant 1 : index
    %c0_141 = arith.constant 0 : index
    %175 = vector.load %arg7[%c4_139, %c1_140, %c0_141] : memref<16x8x16xf32, #tpu.memory_space<vmem>>, vector<1x7x16xf32>
    %176 = vector.shape_cast %175 : vector<1x7x16xf32> to vector<7x16xf32>
    %c4_142 = arith.constant 4 : index
    %c1_143 = arith.constant 1 : index
    %c0_144 = arith.constant 0 : index
    %177 = vector.load %arg8[%c4_142, %c1_143, %c0_144] : memref<16x8x16xf32, #tpu.memory_space<vmem>>, vector<1x7x16xf32>
    %178 = vector.shape_cast %177 : vector<1x7x16xf32> to vector<7x16xf32>
    %c5_145 = arith.constant 5 : index
    %c0_146 = arith.constant 0 : index
    %c0_147 = arith.constant 0 : index
    %179 = vector.load %arg7[%c5_145, %c0_146, %c0_147] : memref<16x8x16xf32, #tpu.memory_space<vmem>>, vector<1x7x16xf32>
    %180 = vector.shape_cast %179 : vector<1x7x16xf32> to vector<7x16xf32>
    %c5_148 = arith.constant 5 : index
    %c0_149 = arith.constant 0 : index
    %c0_150 = arith.constant 0 : index
    %181 = vector.load %arg8[%c5_148, %c0_149, %c0_150] : memref<16x8x16xf32, #tpu.memory_space<vmem>>, vector<1x7x16xf32>
    %182 = vector.shape_cast %181 : vector<1x7x16xf32> to vector<7x16xf32>
    %c5_151 = arith.constant 5 : index
    %c1_152 = arith.constant 1 : index
    %c0_153 = arith.constant 0 : index
    %183 = vector.load %arg7[%c5_151, %c1_152, %c0_153] : memref<16x8x16xf32, #tpu.memory_space<vmem>>, vector<1x7x16xf32>
    %184 = vector.shape_cast %183 : vector<1x7x16xf32> to vector<7x16xf32>
    %c5_154 = arith.constant 5 : index
    %c1_155 = arith.constant 1 : index
    %c0_156 = arith.constant 0 : index
    %185 = vector.load %arg8[%c5_154, %c1_155, %c0_156] : memref<16x8x16xf32, #tpu.memory_space<vmem>>, vector<1x7x16xf32>
    %186 = vector.shape_cast %185 : vector<1x7x16xf32> to vector<7x16xf32>
    %c6_157 = arith.constant 6 : index
    %c0_158 = arith.constant 0 : index
    %c0_159 = arith.constant 0 : index
    %187 = vector.load %arg7[%c6_157, %c0_158, %c0_159] : memref<16x8x16xf32, #tpu.memory_space<vmem>>, vector<1x7x16xf32>
    %188 = vector.shape_cast %187 : vector<1x7x16xf32> to vector<7x16xf32>
    %c6_160 = arith.constant 6 : index
    %c0_161 = arith.constant 0 : index
    %c0_162 = arith.constant 0 : index
    %189 = vector.load %arg8[%c6_160, %c0_161, %c0_162] : memref<16x8x16xf32, #tpu.memory_space<vmem>>, vector<1x7x16xf32>
    %190 = vector.shape_cast %189 : vector<1x7x16xf32> to vector<7x16xf32>
    %c6_163 = arith.constant 6 : index
    %c1_164 = arith.constant 1 : index
    %c0_165 = arith.constant 0 : index
    %191 = vector.load %arg7[%c6_163, %c1_164, %c0_165] : memref<16x8x16xf32, #tpu.memory_space<vmem>>, vector<1x7x16xf32>
    %192 = vector.shape_cast %191 : vector<1x7x16xf32> to vector<7x16xf32>
    %c6_166 = arith.constant 6 : index
    %c1_167 = arith.constant 1 : index
    %c0_168 = arith.constant 0 : index
    %193 = vector.load %arg8[%c6_166, %c1_167, %c0_168] : memref<16x8x16xf32, #tpu.memory_space<vmem>>, vector<1x7x16xf32>
    %194 = vector.shape_cast %193 : vector<1x7x16xf32> to vector<7x16xf32>
    %c7_169 = arith.constant 7 : index
    %c0_170 = arith.constant 0 : index
    %c0_171 = arith.constant 0 : index
    %195 = vector.load %arg7[%c7_169, %c0_170, %c0_171] : memref<16x8x16xf32, #tpu.memory_space<vmem>>, vector<1x7x16xf32>
    %196 = vector.shape_cast %195 : vector<1x7x16xf32> to vector<7x16xf32>
    %c7_172 = arith.constant 7 : index
    %c0_173 = arith.constant 0 : index
    %c0_174 = arith.constant 0 : index
    %197 = vector.load %arg8[%c7_172, %c0_173, %c0_174] : memref<16x8x16xf32, #tpu.memory_space<vmem>>, vector<1x7x16xf32>
    %198 = vector.shape_cast %197 : vector<1x7x16xf32> to vector<7x16xf32>
    %c7_175 = arith.constant 7 : index
    %c1_176 = arith.constant 1 : index
    %c0_177 = arith.constant 0 : index
    %199 = vector.load %arg7[%c7_175, %c1_176, %c0_177] : memref<16x8x16xf32, #tpu.memory_space<vmem>>, vector<1x7x16xf32>
    %200 = vector.shape_cast %199 : vector<1x7x16xf32> to vector<7x16xf32>
    %c7_178 = arith.constant 7 : index
    %c1_179 = arith.constant 1 : index
    %c0_180 = arith.constant 0 : index
    %201 = vector.load %arg8[%c7_178, %c1_179, %c0_180] : memref<16x8x16xf32, #tpu.memory_space<vmem>>, vector<1x7x16xf32>
    %202 = vector.shape_cast %201 : vector<1x7x16xf32> to vector<7x16xf32>
    %c8_181 = arith.constant 8 : index
    %c0_182 = arith.constant 0 : index
    %c0_183 = arith.constant 0 : index
    %203 = vector.load %arg7[%c8_181, %c0_182, %c0_183] : memref<16x8x16xf32, #tpu.memory_space<vmem>>, vector<1x7x16xf32>
    %204 = vector.shape_cast %203 : vector<1x7x16xf32> to vector<7x16xf32>
    %c8_184 = arith.constant 8 : index
    %c0_185 = arith.constant 0 : index
    %c0_186 = arith.constant 0 : index
    %205 = vector.load %arg8[%c8_184, %c0_185, %c0_186] : memref<16x8x16xf32, #tpu.memory_space<vmem>>, vector<1x7x16xf32>
    %206 = vector.shape_cast %205 : vector<1x7x16xf32> to vector<7x16xf32>
    %c8_187 = arith.constant 8 : index
    %c1_188 = arith.constant 1 : index
    %c0_189 = arith.constant 0 : index
    %207 = vector.load %arg7[%c8_187, %c1_188, %c0_189] : memref<16x8x16xf32, #tpu.memory_space<vmem>>, vector<1x7x16xf32>
    %208 = vector.shape_cast %207 : vector<1x7x16xf32> to vector<7x16xf32>
    %c8_190 = arith.constant 8 : index
    %c1_191 = arith.constant 1 : index
    %c0_192 = arith.constant 0 : index
    %209 = vector.load %arg8[%c8_190, %c1_191, %c0_192] : memref<16x8x16xf32, #tpu.memory_space<vmem>>, vector<1x7x16xf32>
    %210 = vector.shape_cast %209 : vector<1x7x16xf32> to vector<7x16xf32>
    %c9_193 = arith.constant 9 : index
    %c0_194 = arith.constant 0 : index
    %c0_195 = arith.constant 0 : index
    %211 = vector.load %arg7[%c9_193, %c0_194, %c0_195] : memref<16x8x16xf32, #tpu.memory_space<vmem>>, vector<1x7x16xf32>
    %212 = vector.shape_cast %211 : vector<1x7x16xf32> to vector<7x16xf32>
    %c9_196 = arith.constant 9 : index
    %c0_197 = arith.constant 0 : index
    %c0_198 = arith.constant 0 : index
    %213 = vector.load %arg8[%c9_196, %c0_197, %c0_198] : memref<16x8x16xf32, #tpu.memory_space<vmem>>, vector<1x7x16xf32>
    %214 = vector.shape_cast %213 : vector<1x7x16xf32> to vector<7x16xf32>
    %c9_199 = arith.constant 9 : index
    %c1_200 = arith.constant 1 : index
    %c0_201 = arith.constant 0 : index
    %215 = vector.load %arg7[%c9_199, %c1_200, %c0_201] : memref<16x8x16xf32, #tpu.memory_space<vmem>>, vector<1x7x16xf32>
    %216 = vector.shape_cast %215 : vector<1x7x16xf32> to vector<7x16xf32>
    %c9_202 = arith.constant 9 : index
    %c1_203 = arith.constant 1 : index
    %c0_204 = arith.constant 0 : index
    %217 = vector.load %arg8[%c9_202, %c1_203, %c0_204] : memref<16x8x16xf32, #tpu.memory_space<vmem>>, vector<1x7x16xf32>
    %218 = vector.shape_cast %217 : vector<1x7x16xf32> to vector<7x16xf32>
    %c10_205 = arith.constant 10 : index
    %c0_206 = arith.constant 0 : index
    %c0_207 = arith.constant 0 : index
    %219 = vector.load %arg7[%c10_205, %c0_206, %c0_207] : memref<16x8x16xf32, #tpu.memory_space<vmem>>, vector<1x7x16xf32>
    %220 = vector.shape_cast %219 : vector<1x7x16xf32> to vector<7x16xf32>
    %c10_208 = arith.constant 10 : index
    %c0_209 = arith.constant 0 : index
    %c0_210 = arith.constant 0 : index
    %221 = vector.load %arg8[%c10_208, %c0_209, %c0_210] : memref<16x8x16xf32, #tpu.memory_space<vmem>>, vector<1x7x16xf32>
    %222 = vector.shape_cast %221 : vector<1x7x16xf32> to vector<7x16xf32>
    %c10_211 = arith.constant 10 : index
    %c1_212 = arith.constant 1 : index
    %c0_213 = arith.constant 0 : index
    %223 = vector.load %arg7[%c10_211, %c1_212, %c0_213] : memref<16x8x16xf32, #tpu.memory_space<vmem>>, vector<1x7x16xf32>
    %224 = vector.shape_cast %223 : vector<1x7x16xf32> to vector<7x16xf32>
    %c10_214 = arith.constant 10 : index
    %c1_215 = arith.constant 1 : index
    %c0_216 = arith.constant 0 : index
    %225 = vector.load %arg8[%c10_214, %c1_215, %c0_216] : memref<16x8x16xf32, #tpu.memory_space<vmem>>, vector<1x7x16xf32>
    %226 = vector.shape_cast %225 : vector<1x7x16xf32> to vector<7x16xf32>
    %c11_217 = arith.constant 11 : index
    %c0_218 = arith.constant 0 : index
    %c0_219 = arith.constant 0 : index
    %227 = vector.load %arg7[%c11_217, %c0_218, %c0_219] : memref<16x8x16xf32, #tpu.memory_space<vmem>>, vector<1x7x16xf32>
    %228 = vector.shape_cast %227 : vector<1x7x16xf32> to vector<7x16xf32>
    %c11_220 = arith.constant 11 : index
    %c0_221 = arith.constant 0 : index
    %c0_222 = arith.constant 0 : index
    %229 = vector.load %arg8[%c11_220, %c0_221, %c0_222] : memref<16x8x16xf32, #tpu.memory_space<vmem>>, vector<1x7x16xf32>
    %230 = vector.shape_cast %229 : vector<1x7x16xf32> to vector<7x16xf32>
    %c11_223 = arith.constant 11 : index
    %c1_224 = arith.constant 1 : index
    %c0_225 = arith.constant 0 : index
    %231 = vector.load %arg7[%c11_223, %c1_224, %c0_225] : memref<16x8x16xf32, #tpu.memory_space<vmem>>, vector<1x7x16xf32>
    %232 = vector.shape_cast %231 : vector<1x7x16xf32> to vector<7x16xf32>
    %c11_226 = arith.constant 11 : index
    %c1_227 = arith.constant 1 : index
    %c0_228 = arith.constant 0 : index
    %233 = vector.load %arg8[%c11_226, %c1_227, %c0_228] : memref<16x8x16xf32, #tpu.memory_space<vmem>>, vector<1x7x16xf32>
    %234 = vector.shape_cast %233 : vector<1x7x16xf32> to vector<7x16xf32>
    %c12_229 = arith.constant 12 : index
    %c0_230 = arith.constant 0 : index
    %c0_231 = arith.constant 0 : index
    %235 = vector.load %arg7[%c12_229, %c0_230, %c0_231] : memref<16x8x16xf32, #tpu.memory_space<vmem>>, vector<1x7x16xf32>
    %236 = vector.shape_cast %235 : vector<1x7x16xf32> to vector<7x16xf32>
    %c12_232 = arith.constant 12 : index
    %c0_233 = arith.constant 0 : index
    %c0_234 = arith.constant 0 : index
    %237 = vector.load %arg8[%c12_232, %c0_233, %c0_234] : memref<16x8x16xf32, #tpu.memory_space<vmem>>, vector<1x7x16xf32>
    %238 = vector.shape_cast %237 : vector<1x7x16xf32> to vector<7x16xf32>
    %c12_235 = arith.constant 12 : index
    %c1_236 = arith.constant 1 : index
    %c0_237 = arith.constant 0 : index
    %239 = vector.load %arg7[%c12_235, %c1_236, %c0_237] : memref<16x8x16xf32, #tpu.memory_space<vmem>>, vector<1x7x16xf32>
    %240 = vector.shape_cast %239 : vector<1x7x16xf32> to vector<7x16xf32>
    %c12_238 = arith.constant 12 : index
    %c1_239 = arith.constant 1 : index
    %c0_240 = arith.constant 0 : index
    %241 = vector.load %arg8[%c12_238, %c1_239, %c0_240] : memref<16x8x16xf32, #tpu.memory_space<vmem>>, vector<1x7x16xf32>
    %242 = vector.shape_cast %241 : vector<1x7x16xf32> to vector<7x16xf32>
    %c13_241 = arith.constant 13 : index
    %c0_242 = arith.constant 0 : index
    %c0_243 = arith.constant 0 : index
    %243 = vector.load %arg7[%c13_241, %c0_242, %c0_243] : memref<16x8x16xf32, #tpu.memory_space<vmem>>, vector<1x7x16xf32>
    %244 = vector.shape_cast %243 : vector<1x7x16xf32> to vector<7x16xf32>
    %c13_244 = arith.constant 13 : index
    %c0_245 = arith.constant 0 : index
    %c0_246 = arith.constant 0 : index
    %245 = vector.load %arg8[%c13_244, %c0_245, %c0_246] : memref<16x8x16xf32, #tpu.memory_space<vmem>>, vector<1x7x16xf32>
    %246 = vector.shape_cast %245 : vector<1x7x16xf32> to vector<7x16xf32>
    %c13_247 = arith.constant 13 : index
    %c1_248 = arith.constant 1 : index
    %c0_249 = arith.constant 0 : index
    %247 = vector.load %arg7[%c13_247, %c1_248, %c0_249] : memref<16x8x16xf32, #tpu.memory_space<vmem>>, vector<1x7x16xf32>
    %248 = vector.shape_cast %247 : vector<1x7x16xf32> to vector<7x16xf32>
    %c13_250 = arith.constant 13 : index
    %c1_251 = arith.constant 1 : index
    %c0_252 = arith.constant 0 : index
    %249 = vector.load %arg8[%c13_250, %c1_251, %c0_252] : memref<16x8x16xf32, #tpu.memory_space<vmem>>, vector<1x7x16xf32>
    %250 = vector.shape_cast %249 : vector<1x7x16xf32> to vector<7x16xf32>
    %c14_253 = arith.constant 14 : index
    %c0_254 = arith.constant 0 : index
    %c0_255 = arith.constant 0 : index
    %251 = vector.load %arg7[%c14_253, %c0_254, %c0_255] : memref<16x8x16xf32, #tpu.memory_space<vmem>>, vector<1x7x16xf32>
    %252 = vector.shape_cast %251 : vector<1x7x16xf32> to vector<7x16xf32>
    %c14_256 = arith.constant 14 : index
    %c0_257 = arith.constant 0 : index
    %c0_258 = arith.constant 0 : index
    %253 = vector.load %arg8[%c14_256, %c0_257, %c0_258] : memref<16x8x16xf32, #tpu.memory_space<vmem>>, vector<1x7x16xf32>
    %254 = vector.shape_cast %253 : vector<1x7x16xf32> to vector<7x16xf32>
    %c14_259 = arith.constant 14 : index
    %c1_260 = arith.constant 1 : index
    %c0_261 = arith.constant 0 : index
    %255 = vector.load %arg7[%c14_259, %c1_260, %c0_261] : memref<16x8x16xf32, #tpu.memory_space<vmem>>, vector<1x7x16xf32>
    %256 = vector.shape_cast %255 : vector<1x7x16xf32> to vector<7x16xf32>
    %c14_262 = arith.constant 14 : index
    %c1_263 = arith.constant 1 : index
    %c0_264 = arith.constant 0 : index
    %257 = vector.load %arg8[%c14_262, %c1_263, %c0_264] : memref<16x8x16xf32, #tpu.memory_space<vmem>>, vector<1x7x16xf32>
    %258 = vector.shape_cast %257 : vector<1x7x16xf32> to vector<7x16xf32>
    %c15 = arith.constant 15 : index
    %c0_265 = arith.constant 0 : index
    %c0_266 = arith.constant 0 : index
    %259 = vector.load %arg7[%c15, %c0_265, %c0_266] : memref<16x8x16xf32, #tpu.memory_space<vmem>>, vector<1x7x16xf32>
    %260 = vector.shape_cast %259 : vector<1x7x16xf32> to vector<7x16xf32>
    %c15_267 = arith.constant 15 : index
    %c0_268 = arith.constant 0 : index
    %c0_269 = arith.constant 0 : index
    %261 = vector.load %arg8[%c15_267, %c0_268, %c0_269] : memref<16x8x16xf32, #tpu.memory_space<vmem>>, vector<1x7x16xf32>
    %262 = vector.shape_cast %261 : vector<1x7x16xf32> to vector<7x16xf32>
    %c15_270 = arith.constant 15 : index
    %c1_271 = arith.constant 1 : index
    %c0_272 = arith.constant 0 : index
    %263 = vector.load %arg7[%c15_270, %c1_271, %c0_272] : memref<16x8x16xf32, #tpu.memory_space<vmem>>, vector<1x7x16xf32>
    %264 = vector.shape_cast %263 : vector<1x7x16xf32> to vector<7x16xf32>
    %c15_273 = arith.constant 15 : index
    %c1_274 = arith.constant 1 : index
    %c0_275 = arith.constant 0 : index
    %265 = vector.load %arg8[%c15_273, %c1_274, %c0_275] : memref<16x8x16xf32, #tpu.memory_space<vmem>>, vector<1x7x16xf32>
    %266 = vector.shape_cast %265 : vector<1x7x16xf32> to vector<7x16xf32>
    %267 = tpu.concatenate %140, %142, %144, %148, %150, %152, %156, %158, %160 in 1 : vector<7x16xf32>, vector<7x16xf32>, vector<7x16xf32>, vector<7x16xf32>, vector<7x16xf32>, vector<7x16xf32>, vector<7x16xf32>, vector<7x16xf32>, vector<7x16xf32> -> vector<7x144xf32>
    %268 = tpu.concatenate %156, %158, %160, %164, %166, %168, %172, %174, %176 in 1 : vector<7x16xf32>, vector<7x16xf32>, vector<7x16xf32>, vector<7x16xf32>, vector<7x16xf32>, vector<7x16xf32>, vector<7x16xf32>, vector<7x16xf32>, vector<7x16xf32> -> vector<7x144xf32>
    %269 = tpu.concatenate %172, %174, %176, %180, %182, %184, %188, %190, %192 in 1 : vector<7x16xf32>, vector<7x16xf32>, vector<7x16xf32>, vector<7x16xf32>, vector<7x16xf32>, vector<7x16xf32>, vector<7x16xf32>, vector<7x16xf32>, vector<7x16xf32> -> vector<7x144xf32>
    %270 = tpu.concatenate %188, %190, %192, %196, %198, %200, %204, %206, %208 in 1 : vector<7x16xf32>, vector<7x16xf32>, vector<7x16xf32>, vector<7x16xf32>, vector<7x16xf32>, vector<7x16xf32>, vector<7x16xf32>, vector<7x16xf32>, vector<7x16xf32> -> vector<7x144xf32>
    %271 = tpu.concatenate %204, %206, %208, %212, %214, %216, %220, %222, %224 in 1 : vector<7x16xf32>, vector<7x16xf32>, vector<7x16xf32>, vector<7x16xf32>, vector<7x16xf32>, vector<7x16xf32>, vector<7x16xf32>, vector<7x16xf32>, vector<7x16xf32> -> vector<7x144xf32>
    %272 = tpu.concatenate %220, %222, %224, %228, %230, %232, %236, %238, %240 in 1 : vector<7x16xf32>, vector<7x16xf32>, vector<7x16xf32>, vector<7x16xf32>, vector<7x16xf32>, vector<7x16xf32>, vector<7x16xf32>, vector<7x16xf32>, vector<7x16xf32> -> vector<7x144xf32>
    %273 = tpu.concatenate %236, %238, %240, %244, %246, %248, %252, %254, %256 in 1 : vector<7x16xf32>, vector<7x16xf32>, vector<7x16xf32>, vector<7x16xf32>, vector<7x16xf32>, vector<7x16xf32>, vector<7x16xf32>, vector<7x16xf32>, vector<7x16xf32> -> vector<7x144xf32>
    %274 = tpu.concatenate %267, %268, %269, %270, %271, %272, %273 in 0 : vector<7x144xf32>, vector<7x144xf32>, vector<7x144xf32>, vector<7x144xf32>, vector<7x144xf32>, vector<7x144xf32>, vector<7x144xf32> -> vector<49x144xf32>
    %275 = tpu.concatenate %142, %144, %146, %150, %152, %154, %158, %160, %162 in 1 : vector<7x16xf32>, vector<7x16xf32>, vector<7x16xf32>, vector<7x16xf32>, vector<7x16xf32>, vector<7x16xf32>, vector<7x16xf32>, vector<7x16xf32>, vector<7x16xf32> -> vector<7x144xf32>
    %276 = tpu.concatenate %158, %160, %162, %166, %168, %170, %174, %176, %178 in 1 : vector<7x16xf32>, vector<7x16xf32>, vector<7x16xf32>, vector<7x16xf32>, vector<7x16xf32>, vector<7x16xf32>, vector<7x16xf32>, vector<7x16xf32>, vector<7x16xf32> -> vector<7x144xf32>
    %277 = tpu.concatenate %174, %176, %178, %182, %184, %186, %190, %192, %194 in 1 : vector<7x16xf32>, vector<7x16xf32>, vector<7x16xf32>, vector<7x16xf32>, vector<7x16xf32>, vector<7x16xf32>, vector<7x16xf32>, vector<7x16xf32>, vector<7x16xf32> -> vector<7x144xf32>
    %278 = tpu.concatenate %190, %192, %194, %198, %200, %202, %206, %208, %210 in 1 : vector<7x16xf32>, vector<7x16xf32>, vector<7x16xf32>, vector<7x16xf32>, vector<7x16xf32>, vector<7x16xf32>, vector<7x16xf32>, vector<7x16xf32>, vector<7x16xf32> -> vector<7x144xf32>
    %279 = tpu.concatenate %206, %208, %210, %214, %216, %218, %222, %224, %226 in 1 : vector<7x16xf32>, vector<7x16xf32>, vector<7x16xf32>, vector<7x16xf32>, vector<7x16xf32>, vector<7x16xf32>, vector<7x16xf32>, vector<7x16xf32>, vector<7x16xf32> -> vector<7x144xf32>
    %280 = tpu.concatenate %222, %224, %226, %230, %232, %234, %238, %240, %242 in 1 : vector<7x16xf32>, vector<7x16xf32>, vector<7x16xf32>, vector<7x16xf32>, vector<7x16xf32>, vector<7x16xf32>, vector<7x16xf32>, vector<7x16xf32>, vector<7x16xf32> -> vector<7x144xf32>
    %281 = tpu.concatenate %238, %240, %242, %246, %248, %250, %254, %256, %258 in 1 : vector<7x16xf32>, vector<7x16xf32>, vector<7x16xf32>, vector<7x16xf32>, vector<7x16xf32>, vector<7x16xf32>, vector<7x16xf32>, vector<7x16xf32>, vector<7x16xf32> -> vector<7x144xf32>
    %282 = tpu.concatenate %275, %276, %277, %278, %279, %280, %281 in 0 : vector<7x144xf32>, vector<7x144xf32>, vector<7x144xf32>, vector<7x144xf32>, vector<7x144xf32>, vector<7x144xf32>, vector<7x144xf32> -> vector<49x144xf32>
    %283 = tpu.concatenate %148, %150, %152, %156, %158, %160, %164, %166, %168 in 1 : vector<7x16xf32>, vector<7x16xf32>, vector<7x16xf32>, vector<7x16xf32>, vector<7x16xf32>, vector<7x16xf32>, vector<7x16xf32>, vector<7x16xf32>, vector<7x16xf32> -> vector<7x144xf32>
    %284 = tpu.concatenate %164, %166, %168, %172, %174, %176, %180, %182, %184 in 1 : vector<7x16xf32>, vector<7x16xf32>, vector<7x16xf32>, vector<7x16xf32>, vector<7x16xf32>, vector<7x16xf32>, vector<7x16xf32>, vector<7x16xf32>, vector<7x16xf32> -> vector<7x144xf32>
    %285 = tpu.concatenate %180, %182, %184, %188, %190, %192, %196, %198, %200 in 1 : vector<7x16xf32>, vector<7x16xf32>, vector<7x16xf32>, vector<7x16xf32>, vector<7x16xf32>, vector<7x16xf32>, vector<7x16xf32>, vector<7x16xf32>, vector<7x16xf32> -> vector<7x144xf32>
    %286 = tpu.concatenate %196, %198, %200, %204, %206, %208, %212, %214, %216 in 1 : vector<7x16xf32>, vector<7x16xf32>, vector<7x16xf32>, vector<7x16xf32>, vector<7x16xf32>, vector<7x16xf32>, vector<7x16xf32>, vector<7x16xf32>, vector<7x16xf32> -> vector<7x144xf32>
    %287 = tpu.concatenate %212, %214, %216, %220, %222, %224, %228, %230, %232 in 1 : vector<7x16xf32>, vector<7x16xf32>, vector<7x16xf32>, vector<7x16xf32>, vector<7x16xf32>, vector<7x16xf32>, vector<7x16xf32>, vector<7x16xf32>, vector<7x16xf32> -> vector<7x144xf32>
    %288 = tpu.concatenate %228, %230, %232, %236, %238, %240, %244, %246, %248 in 1 : vector<7x16xf32>, vector<7x16xf32>, vector<7x16xf32>, vector<7x16xf32>, vector<7x16xf32>, vector<7x16xf32>, vector<7x16xf32>, vector<7x16xf32>, vector<7x16xf32> -> vector<7x144xf32>
    %289 = tpu.concatenate %244, %246, %248, %252, %254, %256, %260, %262, %264 in 1 : vector<7x16xf32>, vector<7x16xf32>, vector<7x16xf32>, vector<7x16xf32>, vector<7x16xf32>, vector<7x16xf32>, vector<7x16xf32>, vector<7x16xf32>, vector<7x16xf32> -> vector<7x144xf32>
    %290 = tpu.concatenate %283, %284, %285, %286, %287, %288, %289 in 0 : vector<7x144xf32>, vector<7x144xf32>, vector<7x144xf32>, vector<7x144xf32>, vector<7x144xf32>, vector<7x144xf32>, vector<7x144xf32> -> vector<49x144xf32>
    %291 = tpu.concatenate %150, %152, %154, %158, %160, %162, %166, %168, %170 in 1 : vector<7x16xf32>, vector<7x16xf32>, vector<7x16xf32>, vector<7x16xf32>, vector<7x16xf32>, vector<7x16xf32>, vector<7x16xf32>, vector<7x16xf32>, vector<7x16xf32> -> vector<7x144xf32>
    %292 = tpu.concatenate %166, %168, %170, %174, %176, %178, %182, %184, %186 in 1 : vector<7x16xf32>, vector<7x16xf32>, vector<7x16xf32>, vector<7x16xf32>, vector<7x16xf32>, vector<7x16xf32>, vector<7x16xf32>, vector<7x16xf32>, vector<7x16xf32> -> vector<7x144xf32>
    %293 = tpu.concatenate %182, %184, %186, %190, %192, %194, %198, %200, %202 in 1 : vector<7x16xf32>, vector<7x16xf32>, vector<7x16xf32>, vector<7x16xf32>, vector<7x16xf32>, vector<7x16xf32>, vector<7x16xf32>, vector<7x16xf32>, vector<7x16xf32> -> vector<7x144xf32>
    %294 = tpu.concatenate %198, %200, %202, %206, %208, %210, %214, %216, %218 in 1 : vector<7x16xf32>, vector<7x16xf32>, vector<7x16xf32>, vector<7x16xf32>, vector<7x16xf32>, vector<7x16xf32>, vector<7x16xf32>, vector<7x16xf32>, vector<7x16xf32> -> vector<7x144xf32>
    %295 = tpu.concatenate %214, %216, %218, %222, %224, %226, %230, %232, %234 in 1 : vector<7x16xf32>, vector<7x16xf32>, vector<7x16xf32>, vector<7x16xf32>, vector<7x16xf32>, vector<7x16xf32>, vector<7x16xf32>, vector<7x16xf32>, vector<7x16xf32> -> vector<7x144xf32>
    %296 = tpu.concatenate %230, %232, %234, %238, %240, %242, %246, %248, %250 in 1 : vector<7x16xf32>, vector<7x16xf32>, vector<7x16xf32>, vector<7x16xf32>, vector<7x16xf32>, vector<7x16xf32>, vector<7x16xf32>, vector<7x16xf32>, vector<7x16xf32> -> vector<7x144xf32>
    %297 = tpu.concatenate %246, %248, %250, %254, %256, %258, %262, %264, %266 in 1 : vector<7x16xf32>, vector<7x16xf32>, vector<7x16xf32>, vector<7x16xf32>, vector<7x16xf32>, vector<7x16xf32>, vector<7x16xf32>, vector<7x16xf32>, vector<7x16xf32> -> vector<7x144xf32>
    %298 = tpu.concatenate %291, %292, %293, %294, %295, %296, %297 in 0 : vector<7x144xf32>, vector<7x144xf32>, vector<7x144xf32>, vector<7x144xf32>, vector<7x144xf32>, vector<7x144xf32>, vector<7x144xf32> -> vector<49x144xf32>
    %299 = tpu.concatenate %274, %282, %290, %298 in 0 : vector<49x144xf32>, vector<49x144xf32>, vector<49x144xf32>, vector<49x144xf32> -> vector<196x144xf32>
    %300 = arith.truncf %299 : vector<196x144xf32> to vector<196x144xbf16>
    %c0_276 = arith.constant 0 : index
    %c0_277 = arith.constant 0 : index
    %301 = vector.load %arg4[%c0_276, %c0_277] : memref<144x16xbf16, #tpu.memory_space<vmem>>, vector<144x16xbf16>
    %cst_278 = arith.constant dense<0.000000e+00> : vector<196x16xf32>
    %302 = tpu.matmul %300, %301, %cst_278 {dimension_numbers = #tpu.dot_dimension_numbers<[1], [0], [0], [1], [0, 0, 1, 1], [], []>} : vector<196x144xbf16>, vector<144x16xbf16>, vector<196x16xf32> -> vector<196x16xf32>
    %c0_279 = arith.constant 0 : index
    %c0_280 = arith.constant 0 : index
    %303 = vector.load %arg5[%c0_279, %c0_280] : memref<1x16xf32, #tpu.memory_space<vmem>>, vector<1x16xf32>
    %304 = vector.broadcast %303 : vector<1x16xf32> to vector<196x16xf32>
    %305 = arith.addf %302, %304 : vector<196x16xf32>
    %cst_281 = arith.constant 0.000000e+00 : f32
    %306 = vector.broadcast %cst_281 : f32 to vector<196x16xf32>
    %307 = arith.maximumf %305, %306 : vector<196x16xf32>
    %308 = vector.extract_strided_slice %307 {offsets = [0, 0], sizes = [49, 16], strides = [1, 1]} : vector<196x16xf32> to vector<49x16xf32>
    %309 = vector.extract_strided_slice %307 {offsets = [49, 0], sizes = [49, 16], strides = [1, 1]} : vector<196x16xf32> to vector<49x16xf32>
    %310 = arith.maximumf %308, %309 : vector<49x16xf32>
    %311 = vector.extract_strided_slice %307 {offsets = [98, 0], sizes = [49, 16], strides = [1, 1]} : vector<196x16xf32> to vector<49x16xf32>
    %312 = vector.extract_strided_slice %307 {offsets = [147, 0], sizes = [49, 16], strides = [1, 1]} : vector<196x16xf32> to vector<49x16xf32>
    %313 = arith.maximumf %311, %312 : vector<49x16xf32>
    %314 = arith.maximumf %310, %313 : vector<49x16xf32>
    %315 = arith.truncf %314 : vector<49x16xf32> to vector<49x16xbf16>
    %c0_282 = arith.constant 0 : index
    %c0_283 = arith.constant 0 : index
    %c0_284 = arith.constant 0 : index
    %316 = vector.load %arg6[%c0_282, %c0_283, %c0_284] : memref<1x49x16xbf16, #tpu.memory_space<vmem>>, vector<1x49x16xbf16>
    %317 = vector.shape_cast %316 : vector<1x49x16xbf16> to vector<49x16xbf16>
    %318 = vector.shape_cast %315 : vector<49x16xbf16> to vector<1x49x16xbf16>
    tpu.vector_store %arg6[%c0_282, %c0_283, %c0_284], %318 {strides = array<i32>} : memref<1x49x16xbf16, #tpu.memory_space<vmem>>, vector<1x49x16xbf16>,
    return
  }
  func.func @transform_0(%arg0: i32) -> (i32, i32, i32) {
    %c0_i32 = arith.constant 0 : i32
    %c0_i32_0 = arith.constant 0 : i32
    %c0_i32_1 = arith.constant 0 : i32
    return %arg0, %c0_i32, %c0_i32_0 : i32, i32, i32
  }
  func.func @transform_1(%arg0: i32) -> (i32, i32) {
    %c0_i32 = arith.constant 0 : i32
    %c0_i32_0 = arith.constant 0 : i32
    %c0_i32_1 = arith.constant 0 : i32
    return %c0_i32, %c0_i32_0 : i32, i32
  }
  func.func @transform_2(%arg0: i32) -> (i32, i32) {
    %c0_i32 = arith.constant 0 : i32
    %c0_i32_0 = arith.constant 0 : i32
    %c0_i32_1 = arith.constant 0 : i32
    return %c0_i32, %c0_i32_0 : i32, i32
  }
  func.func @transform_3(%arg0: i32) -> (i32, i32) {
    %c0_i32 = arith.constant 0 : i32
    %c0_i32_0 = arith.constant 0 : i32
    %c0_i32_1 = arith.constant 0 : i32
    return %c0_i32, %c0_i32_0 : i32, i32
  }
  func.func @transform_4(%arg0: i32) -> (i32, i32) {
    %c0_i32 = arith.constant 0 : i32
    %c0_i32_0 = arith.constant 0 : i32
    %c0_i32_1 = arith.constant 0 : i32
    return %c0_i32, %c0_i32_0 : i32, i32
  }
  func.func @transform_5(%arg0: i32) -> (i32, i32, i32) {
    %c0_i32 = arith.constant 0 : i32
    %c0_i32_0 = arith.constant 0 : i32
    %c0_i32_1 = arith.constant 0 : i32
    return %arg0, %c0_i32, %c0_i32_0 : i32, i32, i32
  }
}

module attributes {stable_mosaic.version = 11 : i64} {
  func.func @mlp_kernel(%arg0: i32, %arg1: memref<2x784xbf16, #tpu.memory_space<vmem>>, %arg2: memref<784x128xbf16, #tpu.memory_space<vmem>>, %arg3: memref<1x128xf32, #tpu.memory_space<vmem>>, %arg4: memref<128x64xbf16, #tpu.memory_space<vmem>>, %arg5: memref<1x64xf32, #tpu.memory_space<vmem>>, %arg6: memref<64x10xbf16, #tpu.memory_space<vmem>>, %arg7: memref<1x10xf32, #tpu.memory_space<vmem>>, %arg8: memref<2x10xf32, #tpu.memory_space<vmem>>) attributes {dimension_semantics = [#tpu.dimension_semantics<parallel>], iteration_bounds = array<i64: 1>, scalar_prefetch = 0 : i64, scratch_operands = 0 : i64, tpu.core_type = #tpu.core_type<tc>, window_params = [{transform_indices = @transform_0, window_bounds = array<i64: 2, 784>}, {pipeline_mode = #tpu.pipeline_mode<synchronous>, transform_indices = @transform_1, window_bounds = array<i64: 784, 128>}, {pipeline_mode = #tpu.pipeline_mode<synchronous>, transform_indices = @transform_2, window_bounds = array<i64: 1, 128>}, {pipeline_mode = #tpu.pipeline_mode<synchronous>, transform_indices = @transform_3, window_bounds = array<i64: 128, 64>}, {pipeline_mode = #tpu.pipeline_mode<synchronous>, transform_indices = @transform_4, window_bounds = array<i64: 1, 64>}, {pipeline_mode = #tpu.pipeline_mode<synchronous>, transform_indices = @transform_5, window_bounds = array<i64: 64, 10>}, {pipeline_mode = #tpu.pipeline_mode<synchronous>, transform_indices = @transform_6, window_bounds = array<i64: 1, 10>}, {transform_indices = @transform_7, window_bounds = array<i64: 2, 10>}]} {
    %c0 = arith.constant 0 : index
    %c0_0 = arith.constant 0 : index
    %0 = vector.load %arg1[%c0, %c0_0] : memref<2x784xbf16, #tpu.memory_space<vmem>>, vector<2x784xbf16>
    %c0_1 = arith.constant 0 : index
    %c0_2 = arith.constant 0 : index
    %1 = vector.load %arg2[%c0_1, %c0_2] : memref<784x128xbf16, #tpu.memory_space<vmem>>, vector<784x128xbf16>
    %cst = arith.constant dense<0.000000e+00> : vector<2x128xf32>
    %2 = tpu.matmul %0, %1, %cst {dimension_numbers = #tpu.dot_dimension_numbers<[1], [0], [0], [1], [0, 0, 1, 1], [], []>} : vector<2x784xbf16>, vector<784x128xbf16>, vector<2x128xf32> -> vector<2x128xf32>
    %c0_3 = arith.constant 0 : index
    %c0_4 = arith.constant 0 : index
    %3 = vector.load %arg3[%c0_3, %c0_4] : memref<1x128xf32, #tpu.memory_space<vmem>>, vector<1x128xf32>
    %4 = vector.broadcast %3 : vector<1x128xf32> to vector<2x128xf32>
    %5 = arith.addf %2, %4 : vector<2x128xf32>
    %cst_5 = arith.constant 0.000000e+00 : f32
    %6 = vector.broadcast %cst_5 : f32 to vector<2x128xf32>
    %7 = arith.maximumf %5, %6 : vector<2x128xf32>
    %8 = arith.truncf %7 : vector<2x128xf32> to vector<2x128xbf16>
    %c0_6 = arith.constant 0 : index
    %c0_7 = arith.constant 0 : index
    %9 = vector.load %arg4[%c0_6, %c0_7] : memref<128x64xbf16, #tpu.memory_space<vmem>>, vector<128x64xbf16>
    %cst_8 = arith.constant dense<0.000000e+00> : vector<2x64xf32>
    %10 = tpu.matmul %8, %9, %cst_8 {dimension_numbers = #tpu.dot_dimension_numbers<[1], [0], [0], [1], [0, 0, 1, 1], [], []>} : vector<2x128xbf16>, vector<128x64xbf16>, vector<2x64xf32> -> vector<2x64xf32>
    %c0_9 = arith.constant 0 : index
    %c0_10 = arith.constant 0 : index
    %11 = vector.load %arg5[%c0_9, %c0_10] : memref<1x64xf32, #tpu.memory_space<vmem>>, vector<1x64xf32>
    %12 = vector.broadcast %11 : vector<1x64xf32> to vector<2x64xf32>
    %13 = arith.addf %10, %12 : vector<2x64xf32>
    %cst_11 = arith.constant 0.000000e+00 : f32
    %14 = vector.broadcast %cst_11 : f32 to vector<2x64xf32>
    %15 = arith.maximumf %13, %14 : vector<2x64xf32>
    %16 = arith.truncf %15 : vector<2x64xf32> to vector<2x64xbf16>
    %c0_12 = arith.constant 0 : index
    %c0_13 = arith.constant 0 : index
    %17 = vector.load %arg6[%c0_12, %c0_13] : memref<64x10xbf16, #tpu.memory_space<vmem>>, vector<64x10xbf16>
    %cst_14 = arith.constant dense<0.000000e+00> : vector<2x10xf32>
    %18 = tpu.matmul %16, %17, %cst_14 {dimension_numbers = #tpu.dot_dimension_numbers<[1], [0], [0], [1], [0, 0, 1, 1], [], []>} : vector<2x64xbf16>, vector<64x10xbf16>, vector<2x10xf32> -> vector<2x10xf32>
    %c0_15 = arith.constant 0 : index
    %c0_16 = arith.constant 0 : index
    %19 = vector.load %arg7[%c0_15, %c0_16] : memref<1x10xf32, #tpu.memory_space<vmem>>, vector<1x10xf32>
    %20 = vector.broadcast %19 : vector<1x10xf32> to vector<2x10xf32>
    %21 = arith.addf %18, %20 : vector<2x10xf32>
    %cst_17 = arith.constant dense<0xFF800000> : vector<2xf32>
    %22 = vector.multi_reduction <maximumf>, %21, %cst_17 [1] : vector<2x10xf32> to vector<2xf32>
    %23 = vector.shape_cast %22 : vector<2xf32> to vector<2x1xf32>
    %24 = vector.broadcast %23 : vector<2x1xf32> to vector<2x10xf32>
    %25 = arith.subf %21, %24 : vector<2x10xf32>
    %26 = math.exp %25 : vector<2x10xf32>
    %cst_18 = arith.constant dense<0.000000e+00> : vector<2xf32>
    %27 = vector.multi_reduction <add>, %26, %cst_18 [1] : vector<2x10xf32> to vector<2xf32>
    %28 = vector.shape_cast %27 : vector<2xf32> to vector<2x1xf32>
    %29 = vector.broadcast %28 : vector<2x1xf32> to vector<2x10xf32>
    %30 = arith.divf %26, %29 : vector<2x10xf32>
    %c0_19 = arith.constant 0 : index
    %c0_20 = arith.constant 0 : index
    %31 = vector.load %arg8[%c0_19, %c0_20] : memref<2x10xf32, #tpu.memory_space<vmem>>, vector<2x10xf32>
    tpu.vector_store %arg8[%c0_19, %c0_20], %30 {strides = array<i32>} : memref<2x10xf32, #tpu.memory_space<vmem>>, vector<2x10xf32>,
    return
  }
  func.func @transform_0(%arg0: i32) -> (i32, i32) {
    %c0_i32 = arith.constant 0 : i32
    %c0_i32_0 = arith.constant 0 : i32
    return %arg0, %c0_i32 : i32, i32
  }
  func.func @transform_1(%arg0: i32) -> (i32, i32) {
    %c0_i32 = arith.constant 0 : i32
    %c0_i32_0 = arith.constant 0 : i32
    %c0_i32_1 = arith.constant 0 : i32
    return %c0_i32, %c0_i32_0 : i32, i32
  }
  func.func @transform_2(%arg0: i32) -> (i32, i32) {
    %c0_i32 = arith.constant 0 : i32
    %c0_i32_0 = arith.constant 0 : i32
    %c0_i32_1 = arith.constant 0 : i32
    return %c0_i32, %c0_i32_0 : i32, i32
  }
  func.func @transform_3(%arg0: i32) -> (i32, i32) {
    %c0_i32 = arith.constant 0 : i32
    %c0_i32_0 = arith.constant 0 : i32
    %c0_i32_1 = arith.constant 0 : i32
    return %c0_i32, %c0_i32_0 : i32, i32
  }
  func.func @transform_4(%arg0: i32) -> (i32, i32) {
    %c0_i32 = arith.constant 0 : i32
    %c0_i32_0 = arith.constant 0 : i32
    %c0_i32_1 = arith.constant 0 : i32
    return %c0_i32, %c0_i32_0 : i32, i32
  }
  func.func @transform_5(%arg0: i32) -> (i32, i32) {
    %c0_i32 = arith.constant 0 : i32
    %c0_i32_0 = arith.constant 0 : i32
    %c0_i32_1 = arith.constant 0 : i32
    return %c0_i32, %c0_i32_0 : i32, i32
  }
  func.func @transform_6(%arg0: i32) -> (i32, i32) {
    %c0_i32 = arith.constant 0 : i32
    %c0_i32_0 = arith.constant 0 : i32
    %c0_i32_1 = arith.constant 0 : i32
    return %c0_i32, %c0_i32_0 : i32, i32
  }
  func.func @transform_7(%arg0: i32) -> (i32, i32) {
    %c0_i32 = arith.constant 0 : i32
    %c0_i32_0 = arith.constant 0 : i32
    return %arg0, %c0_i32 : i32, i32
  }
}

</mosaic_0001>

<llo_original>
// kernel: convnet_forward.3
$region0: #{convnet_forward.3}
  #allocation0 [shape = 'u32[]', space=smem, size = 0x4, offset = 0x4, fixed_abs, tag = 'smem constant byte address 0x4 - core index']
  #allocation1 [shape = 'u32[144,128]{1,0:T(1,128)}', space=vmem, size = 0x12000, scoped, tag = 'internal scratch']
  %s0 = inlined_call_operand.vmem [shape: bf16[2,784], index: 0, kind: input, shape index: {}]
  %s1 = inlined_call_operand.vmem [shape: bf16[784,128], index: 1, kind: input, shape index: {}]
  %s2 = inlined_call_operand.vmem [shape: f32[1,128], index: 2, kind: input, shape index: {}]
  %s3 = inlined_call_operand.vmem [shape: bf16[128,64], index: 3, kind: input, shape index: {}]
  %s4 = inlined_call_operand.vmem [shape: f32[1,64], index: 4, kind: input, shape index: {}]
  %s5 = inlined_call_operand.vmem [shape: bf16[64,10], index: 5, kind: input, shape index: {}]
  %s6 = inlined_call_operand.vmem [shape: f32[1,10], index: 6, kind: input, shape index: {}]
  %s7 = inlined_call_operand.hbm [shape: f32[2,10], index: 7, kind: output, shape index: {}]
  %s8 = sld [smem:[#allocation0]]
  $region38: #{convnet_forward.3} parent=0
    _
  %s10 = ssub.s32 1, %s8
  %s11 = scalar_select 0, %s10, %s8
  $region1: #{convnet_forward.3} parent=0
    #allocation2 [shape = 'u8[1024]{0}', space=vmem, size = 0x400, scoped, tag = 'output window, operand 0, single buffered']
    #allocation3 [shape = 's32[1]{0}', space=sflag, size = 0x4, scoped, tag = 'scoped memory for convnet_forward.3']
    %12 = vsyncpa [#allocation3], 0
    // Predicated region
    $region2: #{convnet_forward.3} parent=1 // pred_check
      _
    $region3: #{convnet_forward.3} parent=1 // pred_check_branch
      %14 = sbr.rel (0) target = $region5
    $region4: #{convnet_forward.3} parent=1 // pred_region
      _
    $region5: #{convnet_forward.3} parent=1 // pred_fallthru
      _
    // Predicated region
    $region6: #{convnet_forward.3} parent=1 // pred_check
      _
    $region7: #{convnet_forward.3} parent=1 // pred_check_branch
      %16 = sbr.rel (0) target = $region9
    $region8: #{convnet_forward.3} parent=1 // pred_region
      _
    $region9: #{convnet_forward.3} parent=1 // pred_fallthru
      _
    // Predicated region
    $region10: #{convnet_forward.3} parent=1 // pred_check
      _
    $region11: #{convnet_forward.3} parent=1 // pred_check_branch
      %18 = sbr.rel (0) target = $region13
    $region12: #{convnet_forward.3} parent=1 // pred_region
      _
    $region13: #{convnet_forward.3} parent=1 // pred_fallthru
      _
    // Predicated region
    $region14: #{convnet_forward.3} parent=1 // pred_check
      _
    $region15: #{convnet_forward.3} parent=1 // pred_check_branch
      %20 = sbr.rel (0) target = $region17
    $region16: #{convnet_forward.3} parent=1 // pred_region
      _
    $region17: #{convnet_forward.3} parent=1 // pred_fallthru
      _
    // Predicated region
    $region18: #{convnet_forward.3} parent=1 // pred_check
      _
    $region19: #{convnet_forward.3} parent=1 // pred_check_branch
      %22 = sbr.rel (0) target = $region21
    $region20: #{convnet_forward.3} parent=1 // pred_region
      _
    $region21: #{convnet_forward.3} parent=1 // pred_fallthru
      _
    // Predicated region
    $region22: #{convnet_forward.3} parent=1 // pred_check
      _
    $region23: #{convnet_forward.3} parent=1 // pred_check_branch
      %24 = sbr.rel (0) target = $region25
    $region24: #{convnet_forward.3} parent=1 // pred_region
      _
    $region25: #{convnet_forward.3} parent=1 // pred_fallthru
      _
    // Predicated region
    $region26: #{convnet_forward.3} parent=1 // pred_check
      _
    $region27: #{convnet_forward.3} parent=1 // pred_check_branch
      %26 = sbr.rel (0) target = $region29
    $region28: #{convnet_forward.3} parent=1 // pred_region
      _
    $region29: #{convnet_forward.3} parent=1 // pred_fallthru
      _
    %v28 = vld [vmem:[%s0] sm:$0x7f]
    %v29 = vld [vmem:[%s1] sm:$0xf]
    %v30 = vld [vmem:[%s1 + $0x4] sm:$0xf]
    %v31 = vld [vmem:[%s1 + $0x8] sm:$0xf]
    %v32 = vld [vmem:[%s1 + $0xc] sm:$0xf]
    %v33 = vld [vmem:[%s1 + $0x10] sm:$0xf]
    %v34 = vld [vmem:[%s1 + $0x14] sm:$0xf]
    %v35 = vld [vmem:[%s1 + $0x18] sm:$0xf]
    %v36 = vld [vmem:[%s1 + $0x1c] sm:$0xf]
    %v37 = vld [vmem:[%s1 + $0x20] sm:$0xf]
    %v38 = vld [vmem:[%s1 + $0x24] sm:$0xf]
    %v39 = vld [vmem:[%s1 + $0x28] sm:$0xf]
    %v40 = vld [vmem:[%s1 + $0x2c] sm:$0xf]
    %v41 = vld [vmem:[%s1 + $0x30] sm:$0xf]
    %v42 = vld [vmem:[%s1 + $0x34] sm:$0xf]
    %v43 = vld [vmem:[%s1 + $0x38] sm:$0xf]
    %v44 = vld [vmem:[%s1 + $0x3c] sm:$0xf]
    %v45 = vld [vmem:[%s1 + $0x40] sm:$0xf]
    %v46 = vld [vmem:[%s1 + $0x44] sm:$0xf]
    %v47 = vld [vmem:[%s1 + $0x48] sm:$0xf]
    %v48 = vld [vmem:[%s1 + $0x4c] sm:$0xf]
    %v49 = vld [vmem:[%s1 + $0x50] sm:$0xf]
    %v50 = vld [vmem:[%s1 + $0x54] sm:$0xf]
    %v51 = vld [vmem:[%s1 + $0x58] sm:$0xf]
    %v52 = vld [vmem:[%s1 + $0x5c] sm:$0xf]
    %v53 = vld [vmem:[%s1 + $0x60] sm:$0xf]
    %v54 = vld [vmem:[%s1 + $0x64] sm:$0xf]
    %v55 = vld [vmem:[%s1 + $0x68] sm:$0xf]
    %v56 = vld [vmem:[%s1 + $0x6c] sm:$0xf]
    %v57 = vld [vmem:[%s1 + $0x70] sm:$0xf]
    %v58 = vld [vmem:[%s1 + $0x74] sm:$0xf]
    %v59 = vld [vmem:[%s1 + $0x78] sm:$0xf]
    %v60 = vld [vmem:[%s1 + $0x7c] sm:$0xf]
    %v61 = vld [vmem:[%s1 + $0x80] sm:$0xf]
    %v62 = vld [vmem:[%s1 + $0x84] sm:$0xf]
    %v63 = vld [vmem:[%s1 + $0x88] sm:$0xf]
    %v64 = vld [vmem:[%s1 + $0x8c] sm:$0xf]
    %v65 = vld [vmem:[%s1 + $0x90] sm:$0xf]
    %v66 = vld [vmem:[%s1 + $0x94] sm:$0xf]
    %v67 = vld [vmem:[%s1 + $0x98] sm:$0xf]
    %v68 = vld [vmem:[%s1 + $0x9c] sm:$0xf]
    %v69 = vld [vmem:[%s1 + $0xa0] sm:$0xf]
    %v70 = vld [vmem:[%s1 + $0xa4] sm:$0xf]
    %v71 = vld [vmem:[%s1 + $0xa8] sm:$0xf]
    %v72 = vld [vmem:[%s1 + $0xac] sm:$0xf]
    %v73 = vld [vmem:[%s1 + $0xb0] sm:$0xf]
    %v74 = vld [vmem:[%s1 + $0xb4] sm:$0xf]
    %v75 = vld [vmem:[%s1 + $0xb8] sm:$0xf]
    %v76 = vld [vmem:[%s1 + $0xbc] sm:$0xf]
    %v77 = vld [vmem:[%s1 + $0xc0] sm:$0xf]
    %v78 = vld [vmem:[%s1 + $0xc4] sm:$0xf]
    %v79 = vld [vmem:[%s1 + $0xc8] sm:$0xf]
    %v80 = vld [vmem:[%s1 + $0xcc] sm:$0xf]
    %v81 = vld [vmem:[%s1 + $0xd0] sm:$0xf]
    %v82 = vld [vmem:[%s1 + $0xd4] sm:$0xf]
    %v83 = vld [vmem:[%s1 + $0xd8] sm:$0xf]
    %v84 = vld [vmem:[%s1 + $0xdc] sm:$0xf]
    %v85 = vld [vmem:[%s1 + $0xe0] sm:$0xf]
    %v86 = vld [vmem:[%s1 + $0xe4] sm:$0xf]
    %v87 = vld [vmem:[%s1 + $0xe8] sm:$0xf]
    %v88 = vld [vmem:[%s1 + $0xec] sm:$0xf]
    %v89 = vld [vmem:[%s1 + $0xf0] sm:$0xf]
    %v90 = vld [vmem:[%s1 + $0xf4] sm:$0xf]
    %v91 = vld [vmem:[%s1 + $0xf8] sm:$0xf]
    %v92 = vld [vmem:[%s1 + $0xfc] sm:$0xf]
    %v93 = vld [vmem:[%s1 + $0x100] sm:$0xf]
    %v94 = vld [vmem:[%s1 + $0x104] sm:$0xf]
    %v95 = vld [vmem:[%s1 + $0x108] sm:$0xf]
    %v96 = vld [vmem:[%s1 + $0x10c] sm:$0xf]
    %v97 = vld [vmem:[%s1 + $0x110] sm:$0xf]
    %v98 = vld [vmem:[%s1 + $0x114] sm:$0xf]
    %v99 = vld [vmem:[%s1 + $0x118] sm:$0xf]
    %v100 = vld [vmem:[%s1 + $0x11c] sm:$0xf]
    %v101 = vld [vmem:[%s1 + $0x120] sm:$0xf]
    %v102 = vld [vmem:[%s1 + $0x124] sm:$0xf]
    %v103 = vld [vmem:[%s1 + $0x128] sm:$0xf]
    %v104 = vld [vmem:[%s1 + $0x12c] sm:$0xf]
    %v105 = vld [vmem:[%s1 + $0x130] sm:$0xf]
    %v106 = vld [vmem:[%s1 + $0x134] sm:$0xf]
    %v107 = vld [vmem:[%s1 + $0x138] sm:$0xf]
    %v108 = vld [vmem:[%s1 + $0x13c] sm:$0xf]
    %v109 = vld [vmem:[%s1 + $0x140] sm:$0xf]
    %v110 = vld [vmem:[%s1 + $0x144] sm:$0xf]
    %v111 = vld [vmem:[%s1 + $0x148] sm:$0xf]
    %v112 = vld [vmem:[%s1 + $0x14c] sm:$0xf]
    %v113 = vld [vmem:[%s1 + $0x150] sm:$0xf]
    %v114 = vld [vmem:[%s1 + $0x154] sm:$0xf]
    %v115 = vld [vmem:[%s1 + $0x158] sm:$0xf]
    %v116 = vld [vmem:[%s1 + $0x15c] sm:$0xf]
    %v117 = vld [vmem:[%s1 + $0x160] sm:$0xf]
    %v118 = vld [vmem:[%s1 + $0x164] sm:$0xf]
    %v119 = vld [vmem:[%s1 + $0x168] sm:$0xf]
    %v120 = vld [vmem:[%s1 + $0x16c] sm:$0xf]
    %v121 = vld [vmem:[%s1 + $0x170] sm:$0xf]
    %v122 = vld [vmem:[%s1 + $0x174] sm:$0xf]
    %v123 = vld [vmem:[%s1 + $0x178] sm:$0xf]
    %v124 = vld [vmem:[%s1 + $0x17c] sm:$0xf]
    %v125 = vld [vmem:[%s1 + $0x180] sm:$0xf]
    %v126 = vld [vmem:[%s1 + $0x184] sm:$0xf]
    %v127 = vld [vmem:[%s2] sm:$0x1]
    %v129 = vlaneseq
    %v130 = vshrl.u32 %v129, 7
    %v131 = vsub.s32 0, %v130
    %v132 = vrot.slane %v127, %v131
    %v135 = vcombine.high %v28, %v28
    %v137 = vunpack.c.l.s4 1966171168
    %v138 = vunpack.c.0.s8 %v137
    %v139 = vlaneseq
    %v140 = vshrl.u32 %v139, 7
    %v141 = vsub.s32 %v138, %v140
    %v142 = vrot.slane %v28, %v141
    %v144 = vunpack.c.l.s4 1966171168
    %v145 = vunpack.c.0.s8 %v144
    %v146 = vlaneseq
    %v147 = vshrl.u32 %v146, 7
    %v148 = vsub.s32 %v145, %v147
    %v149 = vrot.slane %v135, %v148
    %v150 = vcombine.high %v142, %v142
    %v151 = vcombine.high %v149, %v149
    %v153 = vunpack.c.l.s4 1966171168
    %v154 = vunpack.c.0.s8 %v153
    %v155 = vlaneseq
    %v156 = vshrl.u32 %v155, 7
    %v157 = vsub.s32 %v154, %v156
    %v158 = vrot.slane %v142, %v157
    %v160 = vunpack.c.l.s4 1966171168
    %v161 = vunpack.c.0.s8 %v160
    %v162 = vlaneseq
    %v163 = vshrl.u32 %v162, 7
    %v164 = vsub.s32 %v161, %v163
    %v165 = vrot.slane %v149, %v164
    %v167 = vunpack.c.l.s4 1966171168
    %v168 = vunpack.c.0.s8 %v167
    %v169 = vlaneseq
    %v170 = vshrl.u32 %v169, 7
    %v171 = vsub.s32 %v168, %v170
    %v172 = vrot.slane %v150, %v171
    %v174 = vunpack.c.l.s4 1966171168
    %v175 = vunpack.c.0.s8 %v174
    %v176 = vlaneseq
    %v177 = vshrl.u32 %v176, 7
    %v178 = vsub.s32 %v175, %v177
    %v179 = vrot.slane %v151, %v178
    %v180 = vcombine.high %v158, %v158
    %v181 = vcombine.high %v165, %v165
    %v182 = vcombine.high %v172, %v172
    %v287 = vunpack.c.l.b16 %v29
    %v288 = vunpack.c.l.b16 %v30
    %v289 = vunpack.c.l.b16 %v31
    %v290 = vunpack.c.l.b16 %v32
    %v291 = vunpack.c.l.b16 %v33
    %v292 = vunpack.c.l.b16 %v34
    %v293 = vunpack.c.l.b16 %v35
    %v294 = vunpack.c.l.b16 %v36
    %v295 = vunpack.c.l.b16 %v37
    %v296 = vunpack.c.l.b16 %v38
    %v297 = vunpack.c.l.b16 %v39
    %v298 = vunpack.c.l.b16 %v40
    %v299 = vunpack.c.l.b16 %v41
    %v300 = vunpack.c.l.b16 %v42
    %v301 = vunpack.c.l.b16 %v43
    %v302 = vunpack.c.l.b16 %v44
    %v303 = vunpack.c.l.b16 %v45
    %v304 = vunpack.c.l.b16 %v46
    %v305 = vunpack.c.l.b16 %v47
    %v306 = vunpack.c.l.b16 %v48
    %v307 = vunpack.c.l.b16 %v49
    %v308 = vunpack.c.l.b16 %v50
    %v309 = vunpack.c.l.b16 %v51
    %v310 = vunpack.c.l.b16 %v52
    %v311 = vunpack.c.l.b16 %v53
    %v312 = vunpack.c.l.b16 %v54
    %v313 = vunpack.c.l.b16 %v55
    %v314 = vunpack.c.l.b16 %v56
    %v315 = vunpack.c.l.b16 %v57
    %v316 = vunpack.c.l.b16 %v58
    %v317 = vunpack.c.l.b16 %v59
    %v318 = vunpack.c.l.b16 %v60
    %v319 = vunpack.c.l.b16 %v61
    %v320 = vunpack.c.l.b16 %v62
    %v321 = vunpack.c.l.b16 %v63
    %v322 = vunpack.c.l.b16 %v64
    %v323 = vunpack.c.l.b16 %v65
    %v324 = vunpack.c.l.b16 %v66
    %v325 = vunpack.c.l.b16 %v67
    %v326 = vunpack.c.l.b16 %v68
    %v327 = vunpack.c.l.b16 %v69
    %v328 = vunpack.c.l.b16 %v70
    %v329 = vunpack.c.l.b16 %v71
    %v330 = vunpack.c.l.b16 %v72
    %v331 = vunpack.c.l.b16 %v73
    %v332 = vunpack.c.l.b16 %v74
    %v333 = vunpack.c.l.b16 %v75
    %v334 = vunpack.c.l.b16 %v76
    %v335 = vunpack.c.l.b16 %v77
    %v336 = vunpack.c.l.b16 %v78
    %v337 = vunpack.c.l.b16 %v79
    %v338 = vunpack.c.l.b16 %v80
    %v339 = vunpack.c.l.b16 %v81
    %v340 = vunpack.c.l.b16 %v82
    %v341 = vunpack.c.l.b16 %v83
    %v342 = vunpack.c.l.b16 %v84
    %v343 = vunpack.c.l.b16 %v85
    %v344 = vunpack.c.l.b16 %v86
    %v345 = vunpack.c.l.b16 %v87
    %v346 = vunpack.c.l.b16 %v88
    %v347 = vunpack.c.l.b16 %v89
    %v348 = vunpack.c.l.b16 %v90
    %v349 = vunpack.c.l.b16 %v91
    %v350 = vunpack.c.l.b16 %v92
    %v351 = vunpack.c.l.b16 %v93
    %v352 = vunpack.c.l.b16 %v94
    %v353 = vunpack.c.l.b16 %v95
    %v354 = vunpack.c.l.b16 %v96
    %v355 = vunpack.c.l.b16 %v97
    %v356 = vunpack.c.l.b16 %v98
    %v357 = vunpack.c.l.b16 %v99
    %v358 = vunpack.c.l.b16 %v100
    %v359 = vunpack.c.l.b16 %v101
    %v360 = vunpack.c.l.b16 %v102
    %v361 = vunpack.c.l.b16 %v103
    %v362 = vunpack.c.l.b16 %v104
    %v363 = vunpack.c.l.b16 %v105
    %v364 = vunpack.c.l.b16 %v106
    %v365 = vunpack.c.l.b16 %v107
    %v366 = vunpack.c.l.b16 %v108
    %v367 = vunpack.c.l.b16 %v109
    %v368 = vunpack.c.l.b16 %v110
    %v369 = vunpack.c.l.b16 %v111
    %v370 = vunpack.c.l.b16 %v112
    %v371 = vunpack.c.l.b16 %v113
    %v372 = vunpack.c.l.b16 %v114
    %v373 = vunpack.c.l.b16 %v115
    %v374 = vunpack.c.l.b16 %v116
    %v375 = vunpack.c.l.b16 %v117
    %v376 = vunpack.c.l.b16 %v118
    %v377 = vunpack.c.l.b16 %v119
    %v378 = vunpack.c.l.b16 %v120
    %v379 = vunpack.c.l.b16 %v121
    %v380 = vunpack.c.l.b16 %v122
    %v381 = vunpack.c.l.b16 %v123
    %v382 = vunpack.c.l.b16 %v124
    %v383 = vunpack.c.l.b16 %v125
    %v384 = vunpack.c.l.b16 %v126
    %v385 = vpack.c.b16 %v288, %v287
    %v386 = vpack.c.b16 %v290, %v289
    %v387 = vpack.c.b16 %v292, %v291
    %v388 = vpack.c.b16 %v294, %v293
    %v389 = vpack.c.b16 %v296, %v295
    %v390 = vpack.c.b16 %v298, %v297
    %v391 = vpack.c.b16 %v300, %v299
    %v392 = vpack.c.b16 %v302, %v301
    %v393 = vpack.c.b16 %v304, %v303
    %v394 = vpack.c.b16 %v306, %v305
    %v395 = vpack.c.b16 %v308, %v307
    %v396 = vpack.c.b16 %v310, %v309
    %v397 = vpack.c.b16 %v312, %v311
    %v398 = vpack.c.b16 %v314, %v313
    %v399 = vpack.c.b16 %v316, %v315
    %v400 = vpack.c.b16 %v318, %v317
    %v401 = vpack.c.b16 %v320, %v319
    %v402 = vpack.c.b16 %v322, %v321
    %v403 = vpack.c.b16 %v324, %v323
    %v404 = vpack.c.b16 %v326, %v325
    %v405 = vpack.c.b16 %v328, %v327
    %v406 = vpack.c.b16 %v330, %v329
    %v407 = vpack.c.b16 %v332, %v331
    %v408 = vpack.c.b16 %v334, %v333
    %v409 = vpack.c.b16 %v336, %v335
    %v410 = vpack.c.b16 %v338, %v337
    %v411 = vpack.c.b16 %v340, %v339
    %v412 = vpack.c.b16 %v342, %v341
    %v413 = vpack.c.b16 %v344, %v343
    %v414 = vpack.c.b16 %v346, %v345
    %v415 = vpack.c.b16 %v348, %v347
    %v416 = vpack.c.b16 %v350, %v349
    %v417 = vpack.c.b16 %v352, %v351
    %v418 = vpack.c.b16 %v354, %v353
    %v419 = vpack.c.b16 %v356, %v355
    %v420 = vpack.c.b16 %v358, %v357
    %v421 = vpack.c.b16 %v360, %v359
    %v422 = vpack.c.b16 %v362, %v361
    %v423 = vpack.c.b16 %v364, %v363
    %v424 = vpack.c.b16 %v366, %v365
    %v425 = vpack.c.b16 %v368, %v367
    %v426 = vpack.c.b16 %v370, %v369
    %v427 = vpack.c.b16 %v372, %v371
    %v428 = vpack.c.b16 %v374, %v373
    %v429 = vpack.c.b16 %v376, %v375
    %v430 = vpack.c.b16 %v378, %v377
    %v431 = vpack.c.b16 %v380, %v379
    %v432 = vpack.c.b16 %v382, %v381
    %v433 = vpack.c.b16 %v384, %v383
    %vm483 = vcmask 130048
    %v485 = vsel %vm483, %v181, 0
    %487 = vmatprep.subr.bf16.mxu0 0
    %488 = vmatpush1.bf16.msra.mxu0 %v385
    %489 = vmatprep.subr.bf16.mxu0 0
    %490 = vmatpush1.bf16.msra.mxu0 %v386
    %491 = vmatprep.subr.bf16.mxu0 0
    %492 = vmatpush1.bf16.msra.mxu0 %v387
    %493 = vmatprep.subr.bf16.mxu0 0
    %494 = vmatpush1.bf16.msra.mxu0 %v388
    %495 = vmatprep.subr.bf16.mxu0 0
    %496 = vmatpush1.bf16.msra.mxu0 %v389
    %497 = vmatprep.subr.bf16.mxu0 0
    %498 = vmatpush1.bf16.msra.mxu0 %v390
    %499 = vmatprep.subr.bf16.mxu0 0
    %500 = vmatpush1.bf16.msra.mxu0 %v391
    %501 = vmatprep.subr.bf16.mxu0 0
    %502 = vmatpush1.bf16.msra.mxu0 %v392
    %503 = vmatprep.subr.bf16.mxu0 0
    %504 = vmatpush1.bf16.msra.mxu0 %v393
    %505 = vmatprep.subr.bf16.mxu0 0
    %506 = vmatpush1.bf16.msra.mxu0 %v394
    %507 = vmatprep.subr.bf16.mxu0 0
    %508 = vmatpush1.bf16.msra.mxu0 %v395
    %509 = vmatprep.subr.bf16.mxu0 0
    %510 = vmatpush1.bf16.msra.mxu0 %v396
    %511 = vmatprep.subr.bf16.mxu0 0
    %512 = vmatpush1.bf16.msra.mxu0 %v397
    %513 = vmatprep.subr.bf16.mxu0 0
    %514 = vmatpush1.bf16.msra.mxu0 %v398
    %515 = vmatprep.subr.bf16.mxu0 0
    %516 = vmatpush1.bf16.msra.mxu0 %v399
    %517 = vmatprep.subr.bf16.mxu0 0
    %518 = vmatpush1.bf16.msra.mxu0 %v400
    %519 = vmatprep.mubr.bf16.mxu0 %v172
    %520 = vmatmul.mubr.bf16.gmra.mrb[0].mxu0 %v158
    %v521 = vpop.f32.mrb[0].mxu0
    %v522 = vadd.f32 %v132, %v521
    %v523 = vpop.f32.mrb[0].mxu0
    %v524 = vpop.f32.mrb[0].mxu0
    %v525 = vpop.f32.mrb[0].mxu0
    %526 = vdwg.mxu0
    %527 = vmatprep.subr.bf16.mxu0 0
    %528 = vmatpush1.bf16.msra.mxu0 %v401
    %529 = vmatprep.subr.bf16.mxu0 0
    %530 = vmatpush1.bf16.msra.mxu0 %v402
    %531 = vmatprep.subr.bf16.mxu0 0
    %532 = vmatpush1.bf16.msra.mxu0 %v403
    %533 = vmatprep.subr.bf16.mxu0 0
    %534 = vmatpush1.bf16.msra.mxu0 %v404
    %535 = vmatprep.subr.bf16.mxu0 0
    %536 = vmatpush1.bf16.msra.mxu0 %v405
    %537 = vmatprep.subr.bf16.mxu0 0
    %538 = vmatpush1.bf16.msra.mxu0 %v406
    %539 = vmatprep.subr.bf16.mxu0 0
    %540 = vmatpush1.bf16.msra.mxu0 %v407
    %541 = vmatprep.subr.bf16.mxu0 0
    %542 = vmatpush1.bf16.msra.mxu0 %v408
    %543 = vmatprep.subr.bf16.mxu0 0
    %544 = vmatpush1.bf16.msra.mxu0 %v409
    %545 = vmatprep.subr.bf16.mxu0 0
    %546 = vmatpush1.bf16.msra.mxu0 %v410
    %547 = vmatprep.subr.bf16.mxu0 0
    %548 = vmatpush1.bf16.msra.mxu0 %v411
    %549 = vmatprep.subr.bf16.mxu0 0
    %550 = vmatpush1.bf16.msra.mxu0 %v412
    %551 = vmatprep.subr.bf16.mxu0 0
    %552 = vmatpush1.bf16.msra.mxu0 %v413
    %553 = vmatprep.subr.bf16.mxu0 0
    %554 = vmatpush1.bf16.msra.mxu0 %v414
    %555 = vmatprep.subr.bf16.mxu0 0
    %556 = vmatpush1.bf16.msra.mxu0 %v415
    %557 = vmatprep.subr.bf16.mxu0 0
    %558 = vmatpush1.bf16.msra.mxu0 %v416
    %559 = vmatprep.mubr.bf16.mxu0 %v182
    %560 = vmatmul.mubr.bf16.gmra.mrb[0].mxu0 %v180
    %v561 = vpop.f32.mrb[0].mxu0
    %v562 = vadd.f32 %v522, %v561
    %v563 = vpop.f32.mrb[0].mxu0
    %v564 = vpop.f32.mrb[0].mxu0
    %v565 = vpop.f32.mrb[0].mxu0
    %566 = vdwg.mxu0
    %567 = vmatprep.subr.bf16.mxu0 0
    %568 = vmatpush1.bf16.msra.mxu0 %v417
    %569 = vmatprep.subr.bf16.mxu0 0
    %570 = vmatpush1.bf16.msra.mxu0 %v418
    %571 = vmatprep.subr.bf16.mxu0 0
    %572 = vmatpush1.bf16.msra.mxu0 %v419
    %573 = vmatprep.subr.bf16.mxu0 0
    %574 = vmatpush1.bf16.msra.mxu0 %v420
    %575 = vmatprep.subr.bf16.mxu0 0
    %576 = vmatpush1.bf16.msra.mxu0 %v421
    %577 = vmatprep.subr.bf16.mxu0 0
    %578 = vmatpush1.bf16.msra.mxu0 %v422
    %579 = vmatprep.subr.bf16.mxu0 0
    %580 = vmatpush1.bf16.msra.mxu0 %v423
    %581 = vmatprep.subr.bf16.mxu0 0
    %582 = vmatpush1.bf16.msra.mxu0 %v424
    %583 = vmatprep.subr.bf16.mxu0 0
    %584 = vmatpush1.bf16.msra.mxu0 %v425
    %585 = vmatprep.subr.bf16.mxu0 0
    %586 = vmatpush1.bf16.msra.mxu0 %v426
    %587 = vmatprep.subr.bf16.mxu0 0
    %588 = vmatpush1.bf16.msra.mxu0 %v427
    %589 = vmatprep.subr.bf16.mxu0 0
    %590 = vmatpush1.bf16.msra.mxu0 %v428
    %591 = vmatprep.subr.bf16.mxu0 0
    %592 = vmatpush1.bf16.msra.mxu0 %v429
    %593 = vmatprep.subr.bf16.mxu0 0
    %594 = vmatpush1.bf16.msra.mxu0 %v430
    %595 = vmatprep.subr.bf16.mxu0 0
    %596 = vmatpush1.bf16.msra.mxu0 %v431
    %597 = vmatprep.subr.bf16.mxu0 0
    %598 = vmatpush1.bf16.msra.mxu0 %v432
    %599 = vmatprep.mubr.bf16.mxu0 %v179
    %600 = vmatmul.mubr.bf16.gmra.mrb[0].mxu0 %v165
    %v601 = vpop.f32.mrb[0].mxu0
    %v602 = vadd.f32 %v562, %v601
    %v603 = vpop.f32.mrb[0].mxu0
    %v604 = vpop.f32.mrb[0].mxu0
    %v605 = vpop.f32.mrb[0].mxu0
    %606 = vdwg.mxu0
    %607 = vmatprep.subr.bf16.mxu0 0
    %608 = vmatpush1.bf16.msra.mxu0 %v433
    %609 = vmatprep.subr.bf16.mxu0 0
    %610 = vmatpush1.bf16.msra.mxu0 0
    %611 = vmatprep.subr.bf16.mxu0 0
    %612 = vmatpush1.bf16.msra.mxu0 0
    %613 = vmatprep.subr.bf16.mxu0 0
    %614 = vmatpush1.bf16.msra.mxu0 0
    %615 = vmatprep.subr.bf16.mxu0 0
    %616 = vmatpush1.bf16.msra.mxu0 0
    %617 = vmatprep.subr.bf16.mxu0 0
    %618 = vmatpush1.bf16.msra.mxu0 0
    %619 = vmatprep.subr.bf16.mxu0 0
    %620 = vmatpush1.bf16.msra.mxu0 0
    %621 = vmatprep.subr.bf16.mxu0 0
    %622 = vmatpush1.bf16.msra.mxu0 0
    %623 = vmatprep.subr.bf16.mxu0 0
    %624 = vmatpush1.bf16.msra.mxu0 0
    %625 = vmatprep.subr.bf16.mxu0 0
    %626 = vmatpush1.bf16.msra.mxu0 0
    %627 = vmatprep.subr.bf16.mxu0 0
    %628 = vmatpush1.bf16.msra.mxu0 0
    %629 = vmatprep.subr.bf16.mxu0 0
    %630 = vmatpush1.bf16.msra.mxu0 0
    %631 = vmatprep.subr.bf16.mxu0 0
    %632 = vmatpush1.bf16.msra.mxu0 0
    %633 = vmatprep.subr.bf16.mxu0 0
    %634 = vmatpush1.bf16.msra.mxu0 0
    %635 = vmatprep.subr.bf16.mxu0 0
    %636 = vmatpush1.bf16.msra.mxu0 0
    %637 = vmatprep.subr.bf16.mxu0 0
    %638 = vmatpush1.bf16.msra.mxu0 0
    %639 = vmatprep.mubr.bf16.mxu0 0
    %640 = vmatmul.mubr.bf16.gmra.mrb[0].mxu0 %v485
    %v641 = vpop.f32.mrb[0].mxu0
    %v642 = vadd.f32 %v602, %v641
    %v643 = vpop.f32.mrb[0].mxu0
    %v644 = vpop.f32.mrb[0].mxu0
    %v645 = vpop.f32.mrb[0].mxu0
    %646 = vdwg.mxu0
    %v647 = vmax.f32 %v642, 0.0
    %v648 = vpack.c.bf16 %v647, %v647
    %v649 = vld [vmem:[%s3] sm:$0xf]
    %v650 = vld [vmem:[%s3 + $0x4] sm:$0xf]
    %v651 = vld [vmem:[%s3 + $0x8] sm:$0xf]
    %v652 = vld [vmem:[%s3 + $0xc] sm:$0xf]
    %v653 = vld [vmem:[%s3 + $0x10] sm:$0xf]
    %v654 = vld [vmem:[%s3 + $0x14] sm:$0xf]
    %v655 = vld [vmem:[%s3 + $0x18] sm:$0xf]
    %v656 = vld [vmem:[%s3 + $0x1c] sm:$0xf]
    %v657 = vld [vmem:[%s3 + $0x20] sm:$0xf]
    %v658 = vld [vmem:[%s3 + $0x24] sm:$0xf]
    %v659 = vld [vmem:[%s3 + $0x28] sm:$0xf]
    %v660 = vld [vmem:[%s3 + $0x2c] sm:$0xf]
    %v661 = vld [vmem:[%s3 + $0x30] sm:$0xf]
    %v662 = vld [vmem:[%s3 + $0x34] sm:$0xf]
    %v663 = vld [vmem:[%s3 + $0x38] sm:$0xf]
    %v664 = vld [vmem:[%s3 + $0x3c] sm:$0xf]
    %v665 = vld [vmem:[%s4] sm:$0x1]
    %v667 = vlaneseq
    %v668 = vshrl.u32 %v667, 7
    %v669 = vsub.s32 0, %v668
    %v670 = vrot.slane %v665, %v669
    %v688 = vunpack.c.l.b16 %v649
    %v689 = vunpack.c.l.b16 %v650
    %v690 = vunpack.c.l.b16 %v651
    %v691 = vunpack.c.l.b16 %v652
    %v692 = vunpack.c.l.b16 %v653
    %v693 = vunpack.c.l.b16 %v654
    %v694 = vunpack.c.l.b16 %v655
    %v695 = vunpack.c.l.b16 %v656
    %v696 = vunpack.c.l.b16 %v657
    %v697 = vunpack.c.l.b16 %v658
    %v698 = vunpack.c.l.b16 %v659
    %v699 = vunpack.c.l.b16 %v660
    %v700 = vunpack.c.l.b16 %v661
    %v701 = vunpack.c.l.b16 %v662
    %v702 = vunpack.c.l.b16 %v663
    %v703 = vunpack.c.l.b16 %v664
    %v704 = vpack.c.b16 %v689, %v688
    %v705 = vpack.c.b16 %v691, %v690
    %v706 = vpack.c.b16 %v693, %v692
    %v707 = vpack.c.b16 %v695, %v694
    %v708 = vpack.c.b16 %v697, %v696
    %v709 = vpack.c.b16 %v699, %v698
    %v710 = vpack.c.b16 %v701, %v700
    %v711 = vpack.c.b16 %v703, %v702
    %720 = vmatprep.subr.bf16.mxu0 0
    %721 = vmatpush1.bf16.msra.mxu0 %v704
    %722 = vmatprep.subr.bf16.mxu0 0
    %723 = vmatpush1.bf16.msra.mxu0 %v705
    %724 = vmatprep.subr.bf16.mxu0 0
    %725 = vmatpush1.bf16.msra.mxu0 %v706
    %726 = vmatprep.subr.bf16.mxu0 0
    %727 = vmatpush1.bf16.msra.mxu0 %v707
    %728 = vmatprep.subr.bf16.mxu0 0
    %729 = vmatpush1.bf16.msra.mxu0 %v708
    %730 = vmatprep.subr.bf16.mxu0 0
    %731 = vmatpush1.bf16.msra.mxu0 %v709
    %732 = vmatprep.subr.bf16.mxu0 0
    %733 = vmatpush1.bf16.msra.mxu0 %v710
    %734 = vmatprep.subr.bf16.mxu0 0
    %735 = vmatpush1.bf16.msra.mxu0 %v711
    %736 = vmatprep.subr.bf16.mxu0 0
    %737 = vmatpush1.bf16.msra.mxu0 0
    %738 = vmatprep.subr.bf16.mxu0 0
    %739 = vmatpush1.bf16.msra.mxu0 0
    %740 = vmatprep.subr.bf16.mxu0 0
    %741 = vmatpush1.bf16.msra.mxu0 0
    %742 = vmatprep.subr.bf16.mxu0 0
    %743 = vmatpush1.bf16.msra.mxu0 0
    %744 = vmatprep.subr.bf16.mxu0 0
    %745 = vmatpush1.bf16.msra.mxu0 0
    %746 = vmatprep.subr.bf16.mxu0 0
    %747 = vmatpush1.bf16.msra.mxu0 0
    %748 = vmatprep.subr.bf16.mxu0 0
    %749 = vmatpush1.bf16.msra.mxu0 0
    %750 = vmatprep.subr.bf16.mxu0 0
    %751 = vmatpush1.bf16.msra.mxu0 0
    %752 = vmatprep.mubr.bf16.mxu0 0
    %753 = vmatmul.mubr.bf16.gmra.mrb[0].mxu0 %v648
    %v754 = vpop.f32.mrb[0].mxu0
    %v755 = vadd.f32 %v670, %v754
    %v756 = vpop.f32.mrb[0].mxu0
    %v757 = vpop.f32.mrb[0].mxu0
    %v758 = vpop.f32.mrb[0].mxu0
    %759 = vdwg.mxu0
    %v760 = vmax.f32 %v755, 0.0
    %v761 = vpack.c.bf16 %v760, %v760
    %v762 = vld [vmem:[%s5] sm:$0xf]
    %v763 = vld [vmem:[%s5 + $0x4] sm:$0xf]
    %v764 = vld [vmem:[%s5 + $0x8] sm:$0xf]
    %v765 = vld [vmem:[%s5 + $0xc] sm:$0xf]
    %v766 = vld [vmem:[%s5 + $0x10] sm:$0xf]
    %v767 = vld [vmem:[%s5 + $0x14] sm:$0xf]
    %v768 = vld [vmem:[%s5 + $0x18] sm:$0xf]
    %v769 = vld [vmem:[%s5 + $0x1c] sm:$0xf]
    %v770 = vld [vmem:[%s6] sm:$0x1]
    %v772 = vlaneseq
    %v773 = vshrl.u32 %v772, 7
    %v774 = vsub.s32 0, %v773
    %v775 = vrot.slane %v770, %v774
    %v785 = vunpack.c.l.b16 %v762
    %v786 = vunpack.c.l.b16 %v763
    %v787 = vunpack.c.l.b16 %v764
    %v788 = vunpack.c.l.b16 %v765
    %v789 = vunpack.c.l.b16 %v766
    %v790 = vunpack.c.l.b16 %v767
    %v791 = vunpack.c.l.b16 %v768
    %v792 = vunpack.c.l.b16 %v769
    %v793 = vpack.c.b16 %v786, %v785
    %v794 = vpack.c.b16 %v788, %v787
    %v795 = vpack.c.b16 %v790, %v789
    %v796 = vpack.c.b16 %v792, %v791
    %vm801 = vcmask 523264
    %v803 = vsel %vm801, %v761, 0
    %805 = vmatprep.subr.bf16.mxu0 0
    %806 = vmatpush1.bf16.msra.mxu0 %v793
    %807 = vmatprep.subr.bf16.mxu0 0
    %808 = vmatpush1.bf16.msra.mxu0 %v794
    %809 = vmatprep.subr.bf16.mxu0 0
    %810 = vmatpush1.bf16.msra.mxu0 %v795
    %811 = vmatprep.subr.bf16.mxu0 0
    %812 = vmatpush1.bf16.msra.mxu0 %v796
    %813 = vmatprep.subr.bf16.mxu0 0
    %814 = vmatpush1.bf16.msra.mxu0 0
    %815 = vmatprep.subr.bf16.mxu0 0
    %816 = vmatpush1.bf16.msra.mxu0 0
    %817 = vmatprep.subr.bf16.mxu0 0
    %818 = vmatpush1.bf16.msra.mxu0 0
    %819 = vmatprep.subr.bf16.mxu0 0
    %820 = vmatpush1.bf16.msra.mxu0 0
    %821 = vmatprep.subr.bf16.mxu0 0
    %822 = vmatpush1.bf16.msra.mxu0 0
    %823 = vmatprep.subr.bf16.mxu0 0
    %824 = vmatpush1.bf16.msra.mxu0 0
    %825 = vmatprep.subr.bf16.mxu0 0
    %826 = vmatpush1.bf16.msra.mxu0 0
    %827 = vmatprep.subr.bf16.mxu0 0
    %828 = vmatpush1.bf16.msra.mxu0 0
    %829 = vmatprep.subr.bf16.mxu0 0
    %830 = vmatpush1.bf16.msra.mxu0 0
    %831 = vmatprep.subr.bf16.mxu0 0
    %832 = vmatpush1.bf16.msra.mxu0 0
    %833 = vmatprep.subr.bf16.mxu0 0
    %834 = vmatpush1.bf16.msra.mxu0 0
    %835 = vmatprep.subr.bf16.mxu0 0
    %836 = vmatpush1.bf16.msra.mxu0 0
    %837 = vmatprep.mubr.bf16.mxu0 0
    %838 = vmatmul.mubr.bf16.gmra.mrb[0].mxu0 %v803
    %v839 = vpop.f32.mrb[0].mxu0
    %v840 = vadd.f32 %v775, %v839
    %v841 = vpop.f32.mrb[0].mxu0
    %v842 = vpop.f32.mrb[0].mxu0
    %v843 = vpop.f32.mrb[0].mxu0
    %844 = vdwg.mxu0
    %vm845 = vcmask 74752
    %v846 = vsel %vm845, %v840, -inf
    %847 = vmax.xlane.f32.xlu0 %v846
    %v848 = vpop.xlane.xlu0 %847
    %v849 = vsub.f32 %v840, %v848
    %v850 = vmul.f32 %v849, 1.442695
    %v851 = vpow.pop %v850
    %v852 = vsel %vm845, %v851, 0.0
    %853 = vadd.xlane.f32.xlu0 %v852
    %v854 = vpop.xlane.xlu0 %853
    %v855 = vrcp.pop %v854
    %v856 = vmul.f32 %v851, %v855
    %857 = vst.msk [vmem:[#allocation2] sm:$0x3] %vm845, %v856
    // Predicated region
    $region30: #{convnet_forward.3} parent=1 // pred_check
      _
    $region31: #{convnet_forward.3} parent=1 // pred_check_branch
      %859 = sbr.rel (0) target = $region33
    $region32: #{convnet_forward.3} parent=1 // pred_region
      %s861 = ssub.s32 32, 32
      %862 = vsyncadd [#allocation3], %s861
      %s864 = sshll.u32 [#allocation2], 4
      %s865 = int_to_ptr.vmem [resolvable:$true] %s864
      %867 = dma.vmem_to_hbm [thread:$0]  %s865, 32, %s7, [#allocation3]
    $region33: #{convnet_forward.3} parent=1 // pred_fallthru
      _
    // Predicated region
    $region34: #{convnet_forward.3} parent=1 // pred_check
      _
    $region35: #{convnet_forward.3} parent=1 // pred_check_branch
      %869 = sbr.rel (0) target = $region37
    $region36: #{convnet_forward.3} parent=1 // pred_region
      %870 = dma.done [#allocation3], 32
    $region37: #{convnet_forward.3} parent=1 // pred_fallthru
      _
    %871 = vsyncpa [#allocation3], 1

// kernel: convnet_forward.2
$region0: #{convnet_forward.2}
  #allocation0 [shape = 'u32[]', space=smem, size = 0x4, offset = 0x4, fixed_abs, tag = 'smem constant byte address 0x4 - core index']
  #allocation1 [shape = 'u32[144,128]{1,0:T(1,128)}', space=vmem, size = 0x12000, scoped, tag = 'internal scratch']
  #allocation2 [shape = 'f32[16,8,16]{2,1,0:T(8,128)}', space=vmem, size = 0x10000, scoped, tag = 'scratch operand']
  #allocation3 [shape = 'f32[16,8,16]{2,1,0:T(8,128)}', space=vmem, size = 0x10000, scoped, tag = 'scratch operand']
  %s0 = inlined_call_operand.vmem [shape: bf16[2,784,9], index: 0, kind: input, shape index: {}]
  %s1 = inlined_call_operand.vmem [shape: bf16[9,16], index: 1, kind: input, shape index: {}]
  %s2 = inlined_call_operand.vmem [shape: f32[1,16], index: 2, kind: input, shape index: {}]
  %s3 = inlined_call_operand.vmem [shape: bf16[144,16], index: 3, kind: input, shape index: {}]
  %s4 = inlined_call_operand.vmem [shape: f32[1,16], index: 4, kind: input, shape index: {}]
  %s5 = inlined_call_operand.vmem [shape: bf16[2,49,16], index: 5, kind: output, shape index: {}]
  %s6 = sld [smem:[#allocation0]]
  $region53: #{convnet_forward.2} parent=0
    _
  %s8 = ssub.s32 1, %s6
  %s9 = scalar_select 0, %s8, %s6
  loop: start=0, step=1, limit=4
  $region2: #{convnet_forward.2} parent=0 // loop_pre_header
    _
  $region3: #{convnet_forward.2} parent=0 // loop_header
    %s11 = sphi 0, %s15
    %p12 = scmp.ge.s32.totalorder %s11, 4
    %s21 = sphi 0, %s23
    %s24 = sphi 0, %s21
    %s25 = sphi 0, %s24
    %s41 = sphi 0, %s25
    %s45 = sphi 0, %s45
    %s47 = sphi 0, %s45
    %s48 = sphi 0, %s47
    %s62 = sphi 0, %s48
    %s66 = sphi 0, %s66
    %s68 = sphi 0, %s66
    %s69 = sphi 0, %s68
    %s83 = sphi 0, %s69
    %s87 = sphi 0, %s87
    %s89 = sphi 0, %s87
    %s90 = sphi 0, %s89
    %s104 = sphi 0, %s90
    %s108 = sphi 0, %s108
    %s110 = sphi 0, %s108
    %s111 = sphi 0, %s110
    %s125 = sphi 0, %s111
    %s131 = sphi 0, %s133
    %s134 = sphi 0, %s131
    %s135 = sphi 0, %s134
    %s151 = sphi 0, %s135
  $region4: #{convnet_forward.2} parent=0 // loop_header_branch
    %14 = sbr.rel (%p12) target = $region8
  $region5: #{convnet_forward.2} parent=0 // loop_body
    %s16 = ssub.s32 %s11, 1
    %s17 = ssub.s32 %s11, 2
    %s18 = sadd.s32 %s11, 1
    %s19 = ssub.s32 %s11, %s18
    %p20 = scmp.eq.s32.totalorder %s19, 0
    %s22 = sadd.s32 %s21, 1
    %s23 = scalar_select %p20, %s21, %s22
    %p26 = pneg %p20
    %p27 = scmp.eq.s32.totalorder %s11, 1
    %p28 = por %p26, %p27
    %p29 = scmp.ne.s32.totalorder %s21, %s24
    %p30 = scmp.eq.s32.totalorder %s11, 0
    %p31 = por %p29, %p30
    %p32 = scmp.ne.s32.totalorder %s21, %s24
    %p33 = scmp.eq.s32.totalorder %s16, 1
    %p34 = por %p32, %p33
    %p35 = scmp.ne.s32.totalorder %s24, %s25
    %p36 = scmp.eq.s32.totalorder %s16, 0
    %p37 = por %p35, %p36
    %p38 = scmp.ne.s32.totalorder %s24, %s25
    %p39 = scmp.eq.s32.totalorder %s17, 1
    %p40 = por %p38, %p39
    %p42 = scmp.ne.s32.totalorder %s25, %s41
    %p43 = scmp.eq.s32.totalorder %s17, 0
    %p44 = por %p42, %p43
    %s46 = sadd.s32 %s45, 1
    %p49 = scmp.eq.s32.totalorder %s11, 1
    %p50 = scmp.ne.s32.totalorder %s45, %s47
    %p51 = scmp.eq.s32.totalorder %s11, 0
    %p52 = por %p50, %p51
    %p53 = scmp.ne.s32.totalorder %s45, %s47
    %p54 = scmp.eq.s32.totalorder %s16, 1
    %p55 = por %p53, %p54
    %p56 = scmp.ne.s32.totalorder %s47, %s48
    %p57 = scmp.eq.s32.totalorder %s16, 0
    %p58 = por %p56, %p57
    %p59 = scmp.ne.s32.totalorder %s47, %s48
    %p60 = scmp.eq.s32.totalorder %s17, 1
    %p61 = por %p59, %p60
    %p63 = scmp.ne.s32.totalorder %s48, %s62
    %p64 = scmp.eq.s32.totalorder %s17, 0
    %p65 = por %p63, %p64
    %s67 = sadd.s32 %s66, 1
    %p70 = scmp.eq.s32.totalorder %s11, 1
    %p71 = scmp.ne.s32.totalorder %s66, %s68
    %p72 = scmp.eq.s32.totalorder %s11, 0
    %p73 = por %p71, %p72
    %p74 = scmp.ne.s32.totalorder %s66, %s68
    %p75 = scmp.eq.s32.totalorder %s16, 1
    %p76 = por %p74, %p75
    %p77 = scmp.ne.s32.totalorder %s68, %s69
    %p78 = scmp.eq.s32.totalorder %s16, 0
    %p79 = por %p77, %p78
    %p80 = scmp.ne.s32.totalorder %s68, %s69
    %p81 = scmp.eq.s32.totalorder %s17, 1
    %p82 = por %p80, %p81
    %p84 = scmp.ne.s32.totalorder %s69, %s83
    %p85 = scmp.eq.s32.totalorder %s17, 0
    %p86 = por %p84, %p85
    %s88 = sadd.s32 %s87, 1
    %p91 = scmp.eq.s32.totalorder %s11, 1
    %p92 = scmp.ne.s32.totalorder %s87, %s89
    %p93 = scmp.eq.s32.totalorder %s11, 0
    %p94 = por %p92, %p93
    %p95 = scmp.ne.s32.totalorder %s87, %s89
    %p96 = scmp.eq.s32.totalorder %s16, 1
    %p97 = por %p95, %p96
    %p98 = scmp.ne.s32.totalorder %s89, %s90
    %p99 = scmp.eq.s32.totalorder %s16, 0
    %p100 = por %p98, %p99
    %p101 = scmp.ne.s32.totalorder %s89, %s90
    %p102 = scmp.eq.s32.totalorder %s17, 1
    %p103 = por %p101, %p102
    %p105 = scmp.ne.s32.totalorder %s90, %s104
    %p106 = scmp.eq.s32.totalorder %s17, 0
    %p107 = por %p105, %p106
    %s109 = sadd.s32 %s108, 1
    %p112 = scmp.eq.s32.totalorder %s11, 1
    %p113 = scmp.ne.s32.totalorder %s108, %s110
    %p114 = scmp.eq.s32.totalorder %s11, 0
    %p115 = por %p113, %p114
    %p116 = scmp.ne.s32.totalorder %s108, %s110
    %p117 = scmp.eq.s32.totalorder %s16, 1
    %p118 = por %p116, %p117
    %p119 = scmp.ne.s32.totalorder %s110, %s111
    %p120 = scmp.eq.s32.totalorder %s16, 0
    %p121 = por %p119, %p120
    %p122 = scmp.ne.s32.totalorder %s110, %s111
    %p123 = scmp.eq.s32.totalorder %s17, 1
    %p124 = por %p122, %p123
    %p126 = scmp.ne.s32.totalorder %s111, %s125
    %p127 = scmp.eq.s32.totalorder %s17, 0
    %p128 = por %p126, %p127
    %s129 = ssub.s32 %s11, %s18
    %p130 = scmp.eq.s32.totalorder %s129, 0
    %s132 = sadd.s32 %s131, 1
    %s133 = scalar_select %p130, %s131, %s132
    %p136 = pneg %p130
    %p137 = scmp.eq.s32.totalorder %s11, 1
    %p138 = por %p136, %p137
    %p139 = scmp.ne.s32.totalorder %s131, %s134
    %p140 = scmp.eq.s32.totalorder %s11, 0
    %p141 = por %p139, %p140
    %p142 = scmp.ne.s32.totalorder %s131, %s134
    %p143 = scmp.eq.s32.totalorder %s16, 1
    %p144 = por %p142, %p143
    %p145 = scmp.ne.s32.totalorder %s134, %s135
    %p146 = scmp.eq.s32.totalorder %s16, 0
    %p147 = por %p145, %p146
    %p148 = scmp.ne.s32.totalorder %s134, %s135
    %p149 = scmp.eq.s32.totalorder %s17, 1
    %p150 = por %p148, %p149
    %p152 = scmp.ne.s32.totalorder %s135, %s151
    %p153 = scmp.eq.s32.totalorder %s17, 0
    %p154 = por %p152, %p153
    %p155 = scmp.le.s32.totalorder 1, %s11
    %p156 = scmp.lt.s32.totalorder %s11, 3
    %p157 = pnand %p155, %p156
    %p158 = pneg %p157
    // Predicated region
    $region9: #{convnet_forward.2} parent=5 // pred_check
      _
    $region10: #{convnet_forward.2} parent=5 // pred_check_branch
      %160 = sbr.rel (%p157) target = $region12
    $region11: #{convnet_forward.2} parent=5 // pred_region
      %s161 = ssub.s32 %s11, 1
      // Predicated region
      $region13: #{convnet_forward.2} parent=11 // pred_check
        %p162 = pneg %p58
      $region14: #{convnet_forward.2} parent=11 // pred_check_branch
        %164 = sbr.rel (%p162) target = $region16
      $region15: #{convnet_forward.2} parent=11 // pred_region
        _
      $region16: #{convnet_forward.2} parent=11 // pred_fallthru
        _
      // Predicated region
      $region17: #{convnet_forward.2} parent=11 // pred_check
        %p165 = pneg %p79
      $region18: #{convnet_forward.2} parent=11 // pred_check_branch
        %167 = sbr.rel (%p165) target = $region20
      $region19: #{convnet_forward.2} parent=11 // pred_region
        _
      $region20: #{convnet_forward.2} parent=11 // pred_fallthru
        _
      // Predicated region
      $region21: #{convnet_forward.2} parent=11 // pred_check
        %p168 = pneg %p100
      $region22: #{convnet_forward.2} parent=11 // pred_check_branch
        %170 = sbr.rel (%p168) target = $region24
      $region23: #{convnet_forward.2} parent=11 // pred_region
        _
      $region24: #{convnet_forward.2} parent=11 // pred_fallthru
        _
      // Predicated region
      $region25: #{convnet_forward.2} parent=11 // pred_check
        %p171 = pneg %p121
      $region26: #{convnet_forward.2} parent=11 // pred_check_branch
        %173 = sbr.rel (%p171) target = $region28
      $region27: #{convnet_forward.2} parent=11 // pred_region
        _
      $region28: #{convnet_forward.2} parent=11 // pred_fallthru
        _
    $region12: #{convnet_forward.2} parent=5 // pred_fallthru
      _
    %p174 = scmp.lt.s32.totalorder %s11, 2
    // Predicated region
    $region29: #{convnet_forward.2} parent=5 // pred_check
      %p175 = pneg %p174
    $region30: #{convnet_forward.2} parent=5 // pred_check_branch
      %177 = sbr.rel (%p175) target = $region32
    $region31: #{convnet_forward.2} parent=5 // pred_region
      // Predicated region
      $region33: #{convnet_forward.2} parent=31 // pred_check
        %p178 = pneg %p31
      $region34: #{convnet_forward.2} parent=31 // pred_check_branch
        %180 = sbr.rel (%p178) target = $region36
      $region35: #{convnet_forward.2} parent=31 // pred_region
        %p181 = scmp.lt.s32.totalorder %s11, 1
        %s182 = scalar_select %p181, %s11, 1
        %s183 = smul.addr %s182, 98
        %s184 = smul.addr %s183, 4
        %s185 = scalar_lea.vmem %s0, %s184
      $region36: #{convnet_forward.2} parent=31 // pred_fallthru
        _
    $region32: #{convnet_forward.2} parent=5 // pred_fallthru
      _
    %p186 = scmp.le.s32.totalorder 1, %s11
    %p187 = scmp.lt.s32.totalorder %s11, 3
    %p188 = pnand %p186, %p187
    %p189 = pneg %p188
    // Predicated region
    $region37: #{convnet_forward.2} parent=5 // pred_check
      _
    $region38: #{convnet_forward.2} parent=5 // pred_check_branch
      %191 = sbr.rel (%p188) target = $region40
    $region39: #{convnet_forward.2} parent=5 // pred_region
      %s192 = ssub.s32 %s11, 1
      %p193 = scmp.lt.s32.totalorder %s16, 1
      %s194 = scalar_select %p193, %s16, 1
      %s195 = smul.addr %s194, 98
      %s196 = smul.addr %s195, 4
      %s197 = scalar_lea.vmem %s0, %s196
      %p198 = pneg %p37
      %p199 = pneg %p34
      %p200 = pneg %p58
      %p201 = pneg %p55
      %p202 = pneg %p79
      %p203 = pneg %p76
      %p204 = pneg %p100
      %p205 = pneg %p97
      %p206 = pneg %p121
      %p207 = pneg %p118
      %p208 = pneg %p147
      %p209 = pneg %p144
      %p210 = scmp.lt.s32.totalorder %s16, 1
      %s211 = scalar_select %p210, %s16, 1
      %s212 = smul.addr %s211, 7
      %s213 = smul.addr %s212, 4
      %s214 = scalar_lea.vmem %s5, %s213
      %p215 = scmp.lt.s32.totalorder %s16, 1
      %s216 = scalar_select %p215, %s16, 1
      %s217 = smul.addr %s216, 98
      %s218 = smul.addr %s217, 4
      %s219 = scalar_lea.vmem %s0, %s218
      %p220 = scmp.lt.s32.totalorder %s16, 1
      %s221 = scalar_select %p220, %s16, 1
      %s222 = smul.addr %s221, 7
      %s223 = smul.addr %s222, 4
      %s224 = scalar_lea.vmem %s5, %s223
      %v226 = vld [vmem:[%s219] sm:$0xf]
      %v227 = vld [vmem:[%s219 + $0x4] sm:$0xf]
      %v228 = vld [vmem:[%s219 + $0x8] sm:$0xf]
      %v229 = vld [vmem:[%s219 + $0xc] sm:$0xf]
      %v230 = vld [vmem:[%s219 + $0x10] sm:$0xf]
      %v231 = vld [vmem:[%s219 + $0x14] sm:$0xf]
      %v232 = vld [vmem:[%s219 + $0x18] sm:$0xf]
      %v233 = vld [vmem:[%s219 + $0x1c] sm:$0xf]
      %v234 = vld [vmem:[%s219 + $0x20] sm:$0xf]
      %v235 = vld [vmem:[%s219 + $0x24] sm:$0xf]
      %v236 = vld [vmem:[%s219 + $0x28] sm:$0xf]
      %v237 = vld [vmem:[%s219 + $0x2c] sm:$0xf]
      %v238 = vld [vmem:[%s219 + $0x30] sm:$0xf]
      %v239 = vld [vmem:[%s219 + $0x34] sm:$0xf]
      %v240 = vld [vmem:[%s219 + $0x38] sm:$0xf]
      %v241 = vld [vmem:[%s219 + $0x3c] sm:$0xf]
      %v242 = vld [vmem:[%s219 + $0x40] sm:$0xf]
      %v243 = vld [vmem:[%s219 + $0x44] sm:$0xf]
      %v244 = vld [vmem:[%s219 + $0x48] sm:$0xf]
      %v245 = vld [vmem:[%s219 + $0x4c] sm:$0xf]
      %v246 = vld [vmem:[%s219 + $0x50] sm:$0xf]
      %v247 = vld [vmem:[%s219 + $0x54] sm:$0xf]
      %v248 = vld [vmem:[%s219 + $0x58] sm:$0xf]
      %v249 = vld [vmem:[%s219 + $0x5c] sm:$0xf]
      %v250 = vld [vmem:[%s219 + $0x60] sm:$0xf]
      %v251 = vld [vmem:[%s219 + $0x64] sm:$0xf]
      %v252 = vld [vmem:[%s219 + $0x68] sm:$0xf]
      %v253 = vld [vmem:[%s219 + $0x6c] sm:$0xf]
      %v254 = vld [vmem:[%s219 + $0x70] sm:$0xf]
      %v255 = vld [vmem:[%s219 + $0x74] sm:$0xf]
      %v256 = vld [vmem:[%s219 + $0x78] sm:$0xf]
      %v257 = vld [vmem:[%s219 + $0x7c] sm:$0xf]
      %v258 = vld [vmem:[%s219 + $0x80] sm:$0xf]
      %v259 = vld [vmem:[%s219 + $0x84] sm:$0xf]
      %v260 = vld [vmem:[%s219 + $0x88] sm:$0xf]
      %v261 = vld [vmem:[%s219 + $0x8c] sm:$0xf]
      %v262 = vld [vmem:[%s219 + $0x90] sm:$0xf]
      %v263 = vld [vmem:[%s219 + $0x94] sm:$0xf]
      %v264 = vld [vmem:[%s219 + $0x98] sm:$0xf]
      %v265 = vld [vmem:[%s219 + $0x9c] sm:$0xf]
      %v266 = vld [vmem:[%s219 + $0xa0] sm:$0xf]
      %v267 = vld [vmem:[%s219 + $0xa4] sm:$0xf]
      %v268 = vld [vmem:[%s219 + $0xa8] sm:$0xf]
      %v269 = vld [vmem:[%s219 + $0xac] sm:$0xf]
      %v270 = vld [vmem:[%s219 + $0xb0] sm:$0xf]
      %v271 = vld [vmem:[%s219 + $0xb4] sm:$0xf]
      %v272 = vld [vmem:[%s219 + $0xb8] sm:$0xf]
      %v273 = vld [vmem:[%s219 + $0xbc] sm:$0xf]
      %v274 = vld [vmem:[%s219 + $0xc0] sm:$0xf]
      %v275 = vld [vmem:[%s219 + $0xc4] sm:$0xf]
      %v276 = vld [vmem:[%s219 + $0xc8] sm:$0xf]
      %v277 = vld [vmem:[%s219 + $0xcc] sm:$0xf]
      %v278 = vld [vmem:[%s219 + $0xd0] sm:$0xf]
      %v279 = vld [vmem:[%s219 + $0xd4] sm:$0xf]
      %v280 = vld [vmem:[%s219 + $0xd8] sm:$0xf]
      %v281 = vld [vmem:[%s219 + $0xdc] sm:$0xf]
      %v282 = vld [vmem:[%s219 + $0xe0] sm:$0xf]
      %v283 = vld [vmem:[%s219 + $0xe4] sm:$0xf]
      %v284 = vld [vmem:[%s219 + $0xe8] sm:$0xf]
      %v285 = vld [vmem:[%s219 + $0xec] sm:$0xf]
      %v286 = vld [vmem:[%s219 + $0xf0] sm:$0xf]
      %v287 = vld [vmem:[%s219 + $0xf4] sm:$0xf]
      %v288 = vld [vmem:[%s219 + $0xf8] sm:$0xf]
      %v289 = vld [vmem:[%s219 + $0xfc] sm:$0xf]
      %v290 = vld [vmem:[%s219 + $0x100] sm:$0xf]
      %v291 = vld [vmem:[%s219 + $0x104] sm:$0xf]
      %v292 = vld [vmem:[%s219 + $0x108] sm:$0xf]
      %v293 = vld [vmem:[%s219 + $0x10c] sm:$0xf]
      %v294 = vld [vmem:[%s219 + $0x110] sm:$0xf]
      %v295 = vld [vmem:[%s219 + $0x114] sm:$0xf]
      %v296 = vld [vmem:[%s219 + $0x118] sm:$0xf]
      %v297 = vld [vmem:[%s219 + $0x11c] sm:$0xf]
      %v298 = vld [vmem:[%s219 + $0x120] sm:$0xf]
      %v299 = vld [vmem:[%s219 + $0x124] sm:$0xf]
      %v300 = vld [vmem:[%s219 + $0x128] sm:$0xf]
      %v301 = vld [vmem:[%s219 + $0x12c] sm:$0xf]
      %v302 = vld [vmem:[%s219 + $0x130] sm:$0xf]
      %v303 = vld [vmem:[%s219 + $0x134] sm:$0xf]
      %v304 = vld [vmem:[%s219 + $0x138] sm:$0xf]
      %v305 = vld [vmem:[%s219 + $0x13c] sm:$0xf]
      %v306 = vld [vmem:[%s219 + $0x140] sm:$0xf]
      %v307 = vld [vmem:[%s219 + $0x144] sm:$0xf]
      %v308 = vld [vmem:[%s219 + $0x148] sm:$0xf]
      %v309 = vld [vmem:[%s219 + $0x14c] sm:$0xf]
      %v310 = vld [vmem:[%s219 + $0x150] sm:$0xf]
      %v311 = vld [vmem:[%s219 + $0x154] sm:$0xf]
      %v312 = vld [vmem:[%s219 + $0x158] sm:$0xf]
      %v313 = vld [vmem:[%s219 + $0x15c] sm:$0xf]
      %v314 = vld [vmem:[%s219 + $0x160] sm:$0xf]
      %v315 = vld [vmem:[%s219 + $0x164] sm:$0xf]
      %v316 = vld [vmem:[%s219 + $0x168] sm:$0xf]
      %v317 = vld [vmem:[%s219 + $0x16c] sm:$0xf]
      %v318 = vld [vmem:[%s219 + $0x170] sm:$0xf]
      %v319 = vld [vmem:[%s219 + $0x174] sm:$0xf]
      %v320 = vld [vmem:[%s219 + $0x178] sm:$0xf]
      %v321 = vld [vmem:[%s219 + $0x17c] sm:$0xf]
      %v322 = vld [vmem:[%s219 + $0x180] sm:$0xf]
      %v323 = vld [vmem:[%s219 + $0x184] sm:$0xf]
      %v324 = vld [vmem:[%s1] sm:$0xf]
      %v325 = vld [vmem:[%s1 + $0x4] sm:$0x1]
      %v326 = vld [vmem:[%s2] sm:$0x1]
      %v328 = vlaneseq
      %v329 = vshrl.u32 %v328, 7
      %v330 = vsub.s32 0, %v329
      %v331 = vrot.slane %v326, %v330
      %v431 = vunpack.c.l.b16 %v226
      %v432 = vunpack.c.l.b16 %v227
      %v433 = vunpack.c.l.b16 %v228
      %v434 = vunpack.c.l.b16 %v229
      %v435 = vunpack.c.l.b16 %v230
      %v436 = vunpack.c.l.b16 %v231
      %v437 = vunpack.c.l.b16 %v232
      %v438 = vunpack.c.l.b16 %v233
      %v439 = vunpack.c.l.b16 %v234
      %v440 = vunpack.c.l.b16 %v235
      %v441 = vunpack.c.l.b16 %v236
      %v442 = vunpack.c.l.b16 %v237
      %v443 = vunpack.c.l.b16 %v238
      %v444 = vunpack.c.l.b16 %v239
      %v445 = vunpack.c.l.b16 %v240
      %v446 = vunpack.c.l.b16 %v241
      %v447 = vunpack.c.l.b16 %v242
      %v448 = vunpack.c.l.b16 %v243
      %v449 = vunpack.c.l.b16 %v244
      %v450 = vunpack.c.l.b16 %v245
      %v451 = vunpack.c.l.b16 %v246
      %v452 = vunpack.c.l.b16 %v247
      %v453 = vunpack.c.l.b16 %v248
      %v454 = vunpack.c.l.b16 %v249
      %v455 = vunpack.c.l.b16 %v250
      %v456 = vunpack.c.l.b16 %v251
      %v457 = vunpack.c.l.b16 %v252
      %v458 = vunpack.c.l.b16 %v253
      %v459 = vunpack.c.l.b16 %v254
      %v460 = vunpack.c.l.b16 %v255
      %v461 = vunpack.c.l.b16 %v256
      %v462 = vunpack.c.l.b16 %v257
      %v463 = vunpack.c.l.b16 %v258
      %v464 = vunpack.c.l.b16 %v259
      %v465 = vunpack.c.l.b16 %v260
      %v466 = vunpack.c.l.b16 %v261
      %v467 = vunpack.c.l.b16 %v262
      %v468 = vunpack.c.l.b16 %v263
      %v469 = vunpack.c.l.b16 %v264
      %v470 = vunpack.c.l.b16 %v265
      %v471 = vunpack.c.l.b16 %v266
      %v472 = vunpack.c.l.b16 %v267
      %v473 = vunpack.c.l.b16 %v268
      %v474 = vunpack.c.l.b16 %v269
      %v475 = vunpack.c.l.b16 %v270
      %v476 = vunpack.c.l.b16 %v271
      %v477 = vunpack.c.l.b16 %v272
      %v478 = vunpack.c.l.b16 %v273
      %v479 = vunpack.c.l.b16 %v274
      %v480 = vunpack.c.l.b16 %v275
      %v481 = vunpack.c.l.b16 %v276
      %v482 = vunpack.c.l.b16 %v277
      %v483 = vunpack.c.l.b16 %v278
      %v484 = vunpack.c.l.b16 %v279
      %v485 = vunpack.c.l.b16 %v280
      %v486 = vunpack.c.l.b16 %v281
      %v487 = vunpack.c.l.b16 %v282
      %v488 = vunpack.c.l.b16 %v283
      %v489 = vunpack.c.l.b16 %v284
      %v490 = vunpack.c.l.b16 %v285
      %v491 = vunpack.c.l.b16 %v286
      %v492 = vunpack.c.l.b16 %v287
      %v493 = vunpack.c.l.b16 %v288
      %v494 = vunpack.c.l.b16 %v289
      %v495 = vunpack.c.l.b16 %v290
      %v496 = vunpack.c.l.b16 %v291
      %v497 = vunpack.c.l.b16 %v292
      %v498 = vunpack.c.l.b16 %v293
      %v499 = vunpack.c.l.b16 %v294
      %v500 = vunpack.c.l.b16 %v295
      %v501 = vunpack.c.l.b16 %v296
      %v502 = vunpack.c.l.b16 %v297
      %v503 = vunpack.c.l.b16 %v298
      %v504 = vunpack.c.l.b16 %v299
      %v505 = vunpack.c.l.b16 %v300
      %v506 = vunpack.c.l.b16 %v301
      %v507 = vunpack.c.l.b16 %v302
      %v508 = vunpack.c.l.b16 %v303
      %v509 = vunpack.c.l.b16 %v304
      %v510 = vunpack.c.l.b16 %v305
      %v511 = vunpack.c.l.b16 %v306
      %v512 = vunpack.c.l.b16 %v307
      %v513 = vunpack.c.l.b16 %v308
      %v514 = vunpack.c.l.b16 %v309
      %v515 = vunpack.c.l.b16 %v310
      %v516 = vunpack.c.l.b16 %v311
      %v517 = vunpack.c.l.b16 %v312
      %v518 = vunpack.c.l.b16 %v313
      %v519 = vunpack.c.l.b16 %v314
      %v520 = vunpack.c.l.b16 %v315
      %v521 = vunpack.c.l.b16 %v316
      %v522 = vunpack.c.l.b16 %v317
      %v523 = vunpack.c.l.b16 %v318
      %v524 = vunpack.c.l.b16 %v319
      %v525 = vunpack.c.l.b16 %v320
      %v526 = vunpack.c.l.b16 %v321
      %v527 = vunpack.c.l.b16 %v322
      %v528 = vunpack.c.l.b16 %v323
      %v529 = vpack.c.b16 %v432, %v431
      %v530 = vpack.c.b16 %v434, %v433
      %v531 = vpack.c.b16 %v436, %v435
      %v532 = vpack.c.b16 %v438, %v437
      %v533 = vpack.c.b16 %v440, %v439
      %v534 = vpack.c.b16 %v442, %v441
      %v535 = vpack.c.b16 %v444, %v443
      %v536 = vpack.c.b16 %v446, %v445
      %v537 = vpack.c.b16 %v448, %v447
      %v538 = vpack.c.b16 %v450, %v449
      %v539 = vpack.c.b16 %v452, %v451
      %v540 = vpack.c.b16 %v454, %v453
      %v541 = vpack.c.b16 %v456, %v455
      %v542 = vpack.c.b16 %v458, %v457
      %v543 = vpack.c.b16 %v460, %v459
      %v544 = vpack.c.b16 %v462, %v461
      %v545 = vpack.c.b16 %v464, %v463
      %v546 = vpack.c.b16 %v466, %v465
      %v547 = vpack.c.b16 %v468, %v467
      %v548 = vpack.c.b16 %v470, %v469
      %v549 = vpack.c.b16 %v472, %v471
      %v550 = vpack.c.b16 %v474, %v473
      %v551 = vpack.c.b16 %v476, %v475
      %v552 = vpack.c.b16 %v478, %v477
      %v553 = vpack.c.b16 %v480, %v479
      %v554 = vpack.c.b16 %v482, %v481
      %v555 = vpack.c.b16 %v484, %v483
      %v556 = vpack.c.b16 %v486, %v485
      %v557 = vpack.c.b16 %v488, %v487
      %v558 = vpack.c.b16 %v490, %v489
      %v559 = vpack.c.b16 %v492, %v491
      %v560 = vpack.c.b16 %v494, %v493
      %v561 = vpack.c.b16 %v496, %v495
      %v562 = vpack.c.b16 %v498, %v497
      %v563 = vpack.c.b16 %v500, %v499
      %v564 = vpack.c.b16 %v502, %v501
      %v565 = vpack.c.b16 %v504, %v503
      %v566 = vpack.c.b16 %v506, %v505
      %v567 = vpack.c.b16 %v508, %v507
      %v568 = vpack.c.b16 %v510, %v509
      %v569 = vpack.c.b16 %v512, %v511
      %v570 = vpack.c.b16 %v514, %v513
      %v571 = vpack.c.b16 %v516, %v515
      %v572 = vpack.c.b16 %v518, %v517
      %v573 = vpack.c.b16 %v520, %v519
      %v574 = vpack.c.b16 %v522, %v521
      %v575 = vpack.c.b16 %v524, %v523
      %v576 = vpack.c.b16 %v526, %v525
      %v577 = vpack.c.b16 %v528, %v527
      %v580 = vunpack.c.l.b16 %v324
      %v581 = vunpack.c.l.b16 %v325
      %v582 = vpack.c.b16 %v581, %v580
      %vm583 = vcmask 72704
      %v585 = vsel %vm583, %v529, 0
      %v588 = vsel %vm583, %v530, 0
      %v591 = vsel %vm583, %v531, 0
      %v594 = vsel %vm583, %v532, 0
      %v597 = vsel %vm583, %v533, 0
      %v600 = vsel %vm583, %v534, 0
      %v603 = vsel %vm583, %v535, 0
      %v606 = vsel %vm583, %v536, 0
      %v609 = vsel %vm583, %v537, 0
      %v612 = vsel %vm583, %v538, 0
      %v615 = vsel %vm583, %v539, 0
      %v618 = vsel %vm583, %v540, 0
      %v621 = vsel %vm583, %v541, 0
      %v624 = vsel %vm583, %v542, 0
      %v627 = vsel %vm583, %v543, 0
      %v630 = vsel %vm583, %v544, 0
      %v633 = vsel %vm583, %v545, 0
      %v636 = vsel %vm583, %v546, 0
      %v639 = vsel %vm583, %v547, 0
      %v642 = vsel %vm583, %v548, 0
      %v645 = vsel %vm583, %v549, 0
      %v648 = vsel %vm583, %v550, 0
      %v651 = vsel %vm583, %v551, 0
      %v654 = vsel %vm583, %v552, 0
      %v657 = vsel %vm583, %v553, 0
      %v660 = vsel %vm583, %v554, 0
      %v663 = vsel %vm583, %v555, 0
      %v666 = vsel %vm583, %v556, 0
      %v669 = vsel %vm583, %v557, 0
      %v672 = vsel %vm583, %v558, 0
      %v675 = vsel %vm583, %v559, 0
      %v678 = vsel %vm583, %v560, 0
      %v681 = vsel %vm583, %v561, 0
      %v684 = vsel %vm583, %v562, 0
      %v687 = vsel %vm583, %v563, 0
      %v690 = vsel %vm583, %v564, 0
      %v693 = vsel %vm583, %v565, 0
      %v696 = vsel %vm583, %v566, 0
      %v699 = vsel %vm583, %v567, 0
      %v702 = vsel %vm583, %v568, 0
      %v705 = vsel %vm583, %v569, 0
      %v708 = vsel %vm583, %v570, 0
      %v711 = vsel %vm583, %v571, 0
      %v714 = vsel %vm583, %v572, 0
      %v717 = vsel %vm583, %v573, 0
      %v720 = vsel %vm583, %v574, 0
      %v723 = vsel %vm583, %v575, 0
      %v726 = vsel %vm583, %v576, 0
      %v729 = vsel %vm583, %v577, 0
      %vm731 = vcmask 1043456
      %vm732 = vcmask 1044480
      %v733 = vsel %vm731, 4294967295, 65535
      %v734 = vsel %vm732, %v733, 0
      %v736 = vand.u32 %v582, %v734
      %738 = vmatprep.subr.bf16.mxu0 0
      %739 = vmatpush1.bf16.msra.mxu0 %v736
      %740 = vmatprep.subr.bf16.mxu0 0
      %741 = vmatpush1.bf16.msra.mxu0 0
      %742 = vmatprep.subr.bf16.mxu0 0
      %743 = vmatpush1.bf16.msra.mxu0 0
      %744 = vmatprep.subr.bf16.mxu0 0
      %745 = vmatpush1.bf16.msra.mxu0 0
      %746 = vmatprep.subr.bf16.mxu0 0
      %747 = vmatpush1.bf16.msra.mxu0 0
      %748 = vmatprep.subr.bf16.mxu0 0
      %749 = vmatpush1.bf16.msra.mxu0 0
      %750 = vmatprep.subr.bf16.mxu0 0
      %751 = vmatpush1.bf16.msra.mxu0 0
      %752 = vmatprep.subr.bf16.mxu0 0
      %753 = vmatpush1.bf16.msra.mxu0 0
      %754 = vmatprep.subr.bf16.mxu0 0
      %755 = vmatpush1.bf16.msra.mxu0 0
      %756 = vmatprep.subr.bf16.mxu0 0
      %757 = vmatpush1.bf16.msra.mxu0 0
      %758 = vmatprep.subr.bf16.mxu0 0
      %759 = vmatpush1.bf16.msra.mxu0 0
      %760 = vmatprep.subr.bf16.mxu0 0
      %761 = vmatpush1.bf16.msra.mxu0 0
      %762 = vmatprep.subr.bf16.mxu0 0
      %763 = vmatpush1.bf16.msra.mxu0 0
      %764 = vmatprep.subr.bf16.mxu0 0
      %765 = vmatpush1.bf16.msra.mxu0 0
      %766 = vmatprep.subr.bf16.mxu0 0
      %767 = vmatpush1.bf16.msra.mxu0 0
      %768 = vmatprep.subr.bf16.mxu0 0
      %769 = vmatpush1.bf16.msra.mxu0 0
      %770 = vmatprep.mubr.bf16.mxu0 0
      %771 = vmatmul.mubr.bf16.gmra.mrb[0].mxu0 %v585
      %v772 = vpop.f32.mrb[0].mxu0
      %v773 = vadd.f32 %v331, %v772
      %v774 = vpop.f32.mrb[0].mxu0
      %v775 = vpop.f32.mrb[0].mxu0
      %v776 = vadd.f32 %v331, %v775
      %v777 = vpop.f32.mrb[0].mxu0
      %778 = vmatprep.mubr.bf16.mxu0 0
      %779 = vmatmul.mubr.bf16.gmra.mrb[0].mxu0 %v588
      %v780 = vpop.f32.mrb[0].mxu0
      %v781 = vadd.f32 %v331, %v780
      %v782 = vpop.f32.mrb[0].mxu0
      %v783 = vpop.f32.mrb[0].mxu0
      %v784 = vadd.f32 %v331, %v783
      %v785 = vpop.f32.mrb[0].mxu0
      %786 = vmatprep.mubr.bf16.mxu0 0
      %787 = vmatmul.mubr.bf16.gmra.mrb[0].mxu0 %v591
      %v788 = vpop.f32.mrb[0].mxu0
      %v789 = vadd.f32 %v331, %v788
      %v790 = vpop.f32.mrb[0].mxu0
      %v791 = vpop.f32.mrb[0].mxu0
      %v792 = vadd.f32 %v331, %v791
      %v793 = vpop.f32.mrb[0].mxu0
      %794 = vmatprep.mubr.bf16.mxu0 0
      %795 = vmatmul.mubr.bf16.gmra.mrb[0].mxu0 %v594
      %v796 = vpop.f32.mrb[0].mxu0
      %v797 = vadd.f32 %v331, %v796
      %v798 = vpop.f32.mrb[0].mxu0
      %v799 = vpop.f32.mrb[0].mxu0
      %v800 = vadd.f32 %v331, %v799
      %v801 = vpop.f32.mrb[0].mxu0
      %802 = vmatprep.mubr.bf16.mxu0 0
      %803 = vmatmul.mubr.bf16.gmra.mrb[0].mxu0 %v597
      %v804 = vpop.f32.mrb[0].mxu0
      %v805 = vadd.f32 %v331, %v804
      %v806 = vpop.f32.mrb[0].mxu0
      %v807 = vpop.f32.mrb[0].mxu0
      %v808 = vadd.f32 %v331, %v807
      %v809 = vpop.f32.mrb[0].mxu0
      %810 = vmatprep.mubr.bf16.mxu0 0
      %811 = vmatmul.mubr.bf16.gmra.mrb[0].mxu0 %v600
      %v812 = vpop.f32.mrb[0].mxu0
      %v813 = vadd.f32 %v331, %v812
      %v814 = vpop.f32.mrb[0].mxu0
      %v815 = vpop.f32.mrb[0].mxu0
      %v816 = vadd.f32 %v331, %v815
      %v817 = vpop.f32.mrb[0].mxu0
      %818 = vmatprep.mubr.bf16.mxu0 0
      %819 = vmatmul.mubr.bf16.gmra.mrb[0].mxu0 %v603
      %v820 = vpop.f32.mrb[0].mxu0
      %v821 = vadd.f32 %v331, %v820
      %v822 = vpop.f32.mrb[0].mxu0
      %v823 = vpop.f32.mrb[0].mxu0
      %v824 = vadd.f32 %v331, %v823
      %v825 = vpop.f32.mrb[0].mxu0
      %826 = vmatprep.mubr.bf16.mxu0 0
      %827 = vmatmul.mubr.bf16.gmra.mrb[0].mxu0 %v606
      %v828 = vpop.f32.mrb[0].mxu0
      %v829 = vadd.f32 %v331, %v828
      %v830 = vpop.f32.mrb[0].mxu0
      %v831 = vpop.f32.mrb[0].mxu0
      %v832 = vadd.f32 %v331, %v831
      %v833 = vpop.f32.mrb[0].mxu0
      %834 = vmatprep.mubr.bf16.mxu0 0
      %835 = vmatmul.mubr.bf16.gmra.mrb[0].mxu0 %v609
      %v836 = vpop.f32.mrb[0].mxu0
      %v837 = vadd.f32 %v331, %v836
      %v838 = vpop.f32.mrb[0].mxu0
      %v839 = vpop.f32.mrb[0].mxu0
      %v840 = vadd.f32 %v331, %v839
      %v841 = vpop.f32.mrb[0].mxu0
      %842 = vmatprep.mubr.bf16.mxu0 0
      %843 = vmatmul.mubr.bf16.gmra.mrb[0].mxu0 %v612
      %v844 = vpop.f32.mrb[0].mxu0
      %v845 = vadd.f32 %v331, %v844
      %v846 = vpop.f32.mrb[0].mxu0
      %v847 = vpop.f32.mrb[0].mxu0
      %v848 = vadd.f32 %v331, %v847
      %v849 = vpop.f32.mrb[0].mxu0
      %850 = vmatprep.mubr.bf16.mxu0 0
      %851 = vmatmul.mubr.bf16.gmra.mrb[0].mxu0 %v615
      %v852 = vpop.f32.mrb[0].mxu0
      %v853 = vadd.f32 %v331, %v852
      %v854 = vpop.f32.mrb[0].mxu0
      %v855 = vpop.f32.mrb[0].mxu0
      %v856 = vadd.f32 %v331, %v855
      %v857 = vpop.f32.mrb[0].mxu0
      %858 = vmatprep.mubr.bf16.mxu0 0
      %859 = vmatmul.mubr.bf16.gmra.mrb[0].mxu0 %v618
      %v860 = vpop.f32.mrb[0].mxu0
      %v861 = vadd.f32 %v331, %v860
      %v862 = vpop.f32.mrb[0].mxu0
      %v863 = vpop.f32.mrb[0].mxu0
      %v864 = vadd.f32 %v331, %v863
      %v865 = vpop.f32.mrb[0].mxu0
      %866 = vmatprep.mubr.bf16.mxu0 0
      %867 = vmatmul.mubr.bf16.gmra.mrb[0].mxu0 %v621
      %v868 = vpop.f32.mrb[0].mxu0
      %v869 = vadd.f32 %v331, %v868
      %v870 = vpop.f32.mrb[0].mxu0
      %v871 = vpop.f32.mrb[0].mxu0
      %v872 = vadd.f32 %v331, %v871
      %v873 = vpop.f32.mrb[0].mxu0
      %874 = vmatprep.mubr.bf16.mxu0 0
      %875 = vmatmul.mubr.bf16.gmra.mrb[0].mxu0 %v624
      %v876 = vpop.f32.mrb[0].mxu0
      %v877 = vadd.f32 %v331, %v876
      %v878 = vpop.f32.mrb[0].mxu0
      %v879 = vpop.f32.mrb[0].mxu0
      %v880 = vadd.f32 %v331, %v879
      %v881 = vpop.f32.mrb[0].mxu0
      %882 = vmatprep.mubr.bf16.mxu0 0
      %883 = vmatmul.mubr.bf16.gmra.mrb[0].mxu0 %v627
      %v884 = vpop.f32.mrb[0].mxu0
      %v885 = vadd.f32 %v331, %v884
      %v886 = vpop.f32.mrb[0].mxu0
      %v887 = vpop.f32.mrb[0].mxu0
      %v888 = vadd.f32 %v331, %v887
      %v889 = vpop.f32.mrb[0].mxu0
      %890 = vmatprep.mubr.bf16.mxu0 0
      %891 = vmatmul.mubr.bf16.gmra.mrb[0].mxu0 %v630
      %v892 = vpop.f32.mrb[0].mxu0
      %v893 = vadd.f32 %v331, %v892
      %v894 = vpop.f32.mrb[0].mxu0
      %v895 = vpop.f32.mrb[0].mxu0
      %v896 = vadd.f32 %v331, %v895
      %v897 = vpop.f32.mrb[0].mxu0
      %898 = vmatprep.mubr.bf16.mxu0 0
      %899 = vmatmul.mubr.bf16.gmra.mrb[0].mxu0 %v633
      %v900 = vpop.f32.mrb[0].mxu0
      %v901 = vadd.f32 %v331, %v900
      %v902 = vpop.f32.mrb[0].mxu0
      %v903 = vpop.f32.mrb[0].mxu0
      %v904 = vadd.f32 %v331, %v903
      %v905 = vpop.f32.mrb[0].mxu0
      %906 = vmatprep.mubr.bf16.mxu0 0
      %907 = vmatmul.mubr.bf16.gmra.mrb[0].mxu0 %v636
      %v908 = vpop.f32.mrb[0].mxu0
      %v909 = vadd.f32 %v331, %v908
      %v910 = vpop.f32.mrb[0].mxu0
      %v911 = vpop.f32.mrb[0].mxu0
      %v912 = vadd.f32 %v331, %v911
      %v913 = vpop.f32.mrb[0].mxu0
      %914 = vmatprep.mubr.bf16.mxu0 0
      %915 = vmatmul.mubr.bf16.gmra.mrb[0].mxu0 %v639
      %v916 = vpop.f32.mrb[0].mxu0
      %v917 = vadd.f32 %v331, %v916
      %v918 = vpop.f32.mrb[0].mxu0
      %v919 = vpop.f32.mrb[0].mxu0
      %v920 = vadd.f32 %v331, %v919
      %v921 = vpop.f32.mrb[0].mxu0
      %922 = vmatprep.mubr.bf16.mxu0 0
      %923 = vmatmul.mubr.bf16.gmra.mrb[0].mxu0 %v642
      %v924 = vpop.f32.mrb[0].mxu0
      %v925 = vadd.f32 %v331, %v924
      %v926 = vpop.f32.mrb[0].mxu0
      %v927 = vpop.f32.mrb[0].mxu0
      %v928 = vadd.f32 %v331, %v927
      %v929 = vpop.f32.mrb[0].mxu0
      %930 = vmatprep.mubr.bf16.mxu0 0
      %931 = vmatmul.mubr.bf16.gmra.mrb[0].mxu0 %v645
      %v932 = vpop.f32.mrb[0].mxu0
      %v933 = vadd.f32 %v331, %v932
      %v934 = vpop.f32.mrb[0].mxu0
      %v935 = vpop.f32.mrb[0].mxu0
      %v936 = vadd.f32 %v331, %v935
      %v937 = vpop.f32.mrb[0].mxu0
      %938 = vmatprep.mubr.bf16.mxu0 0
      %939 = vmatmul.mubr.bf16.gmra.mrb[0].mxu0 %v648
      %v940 = vpop.f32.mrb[0].mxu0
      %v941 = vadd.f32 %v331, %v940
      %v942 = vpop.f32.mrb[0].mxu0
      %v943 = vpop.f32.mrb[0].mxu0
      %v944 = vadd.f32 %v331, %v943
      %v945 = vpop.f32.mrb[0].mxu0
      %946 = vmatprep.mubr.bf16.mxu0 0
      %947 = vmatmul.mubr.bf16.gmra.mrb[0].mxu0 %v651
      %v948 = vpop.f32.mrb[0].mxu0
      %v949 = vadd.f32 %v331, %v948
      %v950 = vpop.f32.mrb[0].mxu0
      %v951 = vpop.f32.mrb[0].mxu0
      %v952 = vadd.f32 %v331, %v951
      %v953 = vpop.f32.mrb[0].mxu0
      %954 = vmatprep.mubr.bf16.mxu0 0
      %955 = vmatmul.mubr.bf16.gmra.mrb[0].mxu0 %v654
      %v956 = vpop.f32.mrb[0].mxu0
      %v957 = vadd.f32 %v331, %v956
      %v958 = vpop.f32.mrb[0].mxu0
      %v959 = vpop.f32.mrb[0].mxu0
      %v960 = vadd.f32 %v331, %v959
      %v961 = vpop.f32.mrb[0].mxu0
      %962 = vmatprep.mubr.bf16.mxu0 0
      %963 = vmatmul.mubr.bf16.gmra.mrb[0].mxu0 %v657
      %v964 = vpop.f32.mrb[0].mxu0
      %v965 = vadd.f32 %v331, %v964
      %v966 = vpop.f32.mrb[0].mxu0
      %v967 = vpop.f32.mrb[0].mxu0
      %v968 = vadd.f32 %v331, %v967
      %v969 = vpop.f32.mrb[0].mxu0
      %970 = vmatprep.mubr.bf16.mxu0 0
      %971 = vmatmul.mubr.bf16.gmra.mrb[0].mxu0 %v660
      %v972 = vpop.f32.mrb[0].mxu0
      %v973 = vadd.f32 %v331, %v972
      %v974 = vpop.f32.mrb[0].mxu0
      %v975 = vpop.f32.mrb[0].mxu0
      %v976 = vadd.f32 %v331, %v975
      %v977 = vpop.f32.mrb[0].mxu0
      %978 = vmatprep.mubr.bf16.mxu0 0
      %979 = vmatmul.mubr.bf16.gmra.mrb[0].mxu0 %v663
      %v980 = vpop.f32.mrb[0].mxu0
      %v981 = vadd.f32 %v331, %v980
      %v982 = vpop.f32.mrb[0].mxu0
      %v983 = vpop.f32.mrb[0].mxu0
      %v984 = vadd.f32 %v331, %v983
      %v985 = vpop.f32.mrb[0].mxu0
      %986 = vmatprep.mubr.bf16.mxu0 0
      %987 = vmatmul.mubr.bf16.gmra.mrb[0].mxu0 %v666
      %v988 = vpop.f32.mrb[0].mxu0
      %v989 = vadd.f32 %v331, %v988
      %v990 = vpop.f32.mrb[0].mxu0
      %v991 = vpop.f32.mrb[0].mxu0
      %v992 = vadd.f32 %v331, %v991
      %v993 = vpop.f32.mrb[0].mxu0
      %994 = vmatprep.mubr.bf16.mxu0 0
      %995 = vmatmul.mubr.bf16.gmra.mrb[0].mxu0 %v669
      %v996 = vpop.f32.mrb[0].mxu0
      %v997 = vadd.f32 %v331, %v996
      %v998 = vpop.f32.mrb[0].mxu0
      %v999 = vpop.f32.mrb[0].mxu0
      %v1000 = vadd.f32 %v331, %v999
      %v1001 = vpop.f32.mrb[0].mxu0
      %1002 = vmatprep.mubr.bf16.mxu0 0
      %1003 = vmatmul.mubr.bf16.gmra.mrb[0].mxu0 %v672
      %v1004 = vpop.f32.mrb[0].mxu0
      %v1005 = vadd.f32 %v331, %v1004
      %v1006 = vpop.f32.mrb[0].mxu0
      %v1007 = vpop.f32.mrb[0].mxu0
      %v1008 = vadd.f32 %v331, %v1007
      %v1009 = vpop.f32.mrb[0].mxu0
      %1010 = vmatprep.mubr.bf16.mxu0 0
      %1011 = vmatmul.mubr.bf16.gmra.mrb[0].mxu0 %v675
      %v1012 = vpop.f32.mrb[0].mxu0
      %v1013 = vadd.f32 %v331, %v1012
      %v1014 = vpop.f32.mrb[0].mxu0
      %v1015 = vpop.f32.mrb[0].mxu0
      %v1016 = vadd.f32 %v331, %v1015
      %v1017 = vpop.f32.mrb[0].mxu0
      %1018 = vmatprep.mubr.bf16.mxu0 0
      %1019 = vmatmul.mubr.bf16.gmra.mrb[0].mxu0 %v678
      %v1020 = vpop.f32.mrb[0].mxu0
      %v1021 = vadd.f32 %v331, %v1020
      %v1022 = vpop.f32.mrb[0].mxu0
      %v1023 = vpop.f32.mrb[0].mxu0
      %v1024 = vadd.f32 %v331, %v1023
      %v1025 = vpop.f32.mrb[0].mxu0
      %1026 = vmatprep.mubr.bf16.mxu0 0
      %1027 = vmatmul.mubr.bf16.gmra.mrb[0].mxu0 %v681
      %v1028 = vpop.f32.mrb[0].mxu0
      %v1029 = vadd.f32 %v331, %v1028
      %v1030 = vpop.f32.mrb[0].mxu0
      %v1031 = vpop.f32.mrb[0].mxu0
      %v1032 = vadd.f32 %v331, %v1031
      %v1033 = vpop.f32.mrb[0].mxu0
      %1034 = vmatprep.mubr.bf16.mxu0 0
      %1035 = vmatmul.mubr.bf16.gmra.mrb[0].mxu0 %v684
      %v1036 = vpop.f32.mrb[0].mxu0
      %v1037 = vadd.f32 %v331, %v1036
      %v1038 = vpop.f32.mrb[0].mxu0
      %v1039 = vpop.f32.mrb[0].mxu0
      %v1040 = vadd.f32 %v331, %v1039
      %v1041 = vpop.f32.mrb[0].mxu0
      %1042 = vmatprep.mubr.bf16.mxu0 0
      %1043 = vmatmul.mubr.bf16.gmra.mrb[0].mxu0 %v687
      %v1044 = vpop.f32.mrb[0].mxu0
      %v1045 = vadd.f32 %v331, %v1044
      %v1046 = vpop.f32.mrb[0].mxu0
      %v1047 = vpop.f32.mrb[0].mxu0
      %v1048 = vadd.f32 %v331, %v1047
      %v1049 = vpop.f32.mrb[0].mxu0
      %1050 = vmatprep.mubr.bf16.mxu0 0
      %1051 = vmatmul.mubr.bf16.gmra.mrb[0].mxu0 %v690
      %v1052 = vpop.f32.mrb[0].mxu0
      %v1053 = vadd.f32 %v331, %v1052
      %v1054 = vpop.f32.mrb[0].mxu0
      %v1055 = vpop.f32.mrb[0].mxu0
      %v1056 = vadd.f32 %v331, %v1055
      %v1057 = vpop.f32.mrb[0].mxu0
      %1058 = vmatprep.mubr.bf16.mxu0 0
      %1059 = vmatmul.mubr.bf16.gmra.mrb[0].mxu0 %v693
      %v1060 = vpop.f32.mrb[0].mxu0
      %v1061 = vadd.f32 %v331, %v1060
      %v1062 = vpop.f32.mrb[0].mxu0
      %v1063 = vpop.f32.mrb[0].mxu0
      %v1064 = vadd.f32 %v331, %v1063
      %v1065 = vpop.f32.mrb[0].mxu0
      %1066 = vmatprep.mubr.bf16.mxu0 0
      %1067 = vmatmul.mubr.bf16.gmra.mrb[0].mxu0 %v696
      %v1068 = vpop.f32.mrb[0].mxu0
      %v1069 = vadd.f32 %v331, %v1068
      %v1070 = vpop.f32.mrb[0].mxu0
      %v1071 = vpop.f32.mrb[0].mxu0
      %v1072 = vadd.f32 %v331, %v1071
      %v1073 = vpop.f32.mrb[0].mxu0
      %1074 = vmatprep.mubr.bf16.mxu0 0
      %1075 = vmatmul.mubr.bf16.gmra.mrb[0].mxu0 %v699
      %v1076 = vpop.f32.mrb[0].mxu0
      %v1077 = vadd.f32 %v331, %v1076
      %v1078 = vpop.f32.mrb[0].mxu0
      %v1079 = vpop.f32.mrb[0].mxu0
      %v1080 = vadd.f32 %v331, %v1079
      %v1081 = vpop.f32.mrb[0].mxu0
      %1082 = vmatprep.mubr.bf16.mxu0 0
      %1083 = vmatmul.mubr.bf16.gmra.mrb[0].mxu0 %v702
      %v1084 = vpop.f32.mrb[0].mxu0
      %v1085 = vadd.f32 %v331, %v1084
      %v1086 = vpop.f32.mrb[0].mxu0
      %v1087 = vpop.f32.mrb[0].mxu0
      %v1088 = vadd.f32 %v331, %v1087
      %v1089 = vpop.f32.mrb[0].mxu0
      %1090 = vmatprep.mubr.bf16.mxu0 0
      %1091 = vmatmul.mubr.bf16.gmra.mrb[0].mxu0 %v705
      %v1092 = vpop.f32.mrb[0].mxu0
      %v1093 = vadd.f32 %v331, %v1092
      %v1094 = vpop.f32.mrb[0].mxu0
      %v1095 = vpop.f32.mrb[0].mxu0
      %v1096 = vadd.f32 %v331, %v1095
      %v1097 = vpop.f32.mrb[0].mxu0
      %1098 = vmatprep.mubr.bf16.mxu0 0
      %1099 = vmatmul.mubr.bf16.gmra.mrb[0].mxu0 %v708
      %v1100 = vpop.f32.mrb[0].mxu0
      %v1101 = vadd.f32 %v331, %v1100
      %v1102 = vpop.f32.mrb[0].mxu0
      %v1103 = vpop.f32.mrb[0].mxu0
      %v1104 = vadd.f32 %v331, %v1103
      %v1105 = vpop.f32.mrb[0].mxu0
      %1106 = vmatprep.mubr.bf16.mxu0 0
      %1107 = vmatmul.mubr.bf16.gmra.mrb[0].mxu0 %v711
      %v1108 = vpop.f32.mrb[0].mxu0
      %v1109 = vadd.f32 %v331, %v1108
      %v1110 = vpop.f32.mrb[0].mxu0
      %v1111 = vpop.f32.mrb[0].mxu0
      %v1112 = vadd.f32 %v331, %v1111
      %v1113 = vpop.f32.mrb[0].mxu0
      %1114 = vmatprep.mubr.bf16.mxu0 0
      %1115 = vmatmul.mubr.bf16.gmra.mrb[0].mxu0 %v714
      %v1116 = vpop.f32.mrb[0].mxu0
      %v1117 = vadd.f32 %v331, %v1116
      %v1118 = vpop.f32.mrb[0].mxu0
      %v1119 = vpop.f32.mrb[0].mxu0
      %v1120 = vadd.f32 %v331, %v1119
      %v1121 = vpop.f32.mrb[0].mxu0
      %1122 = vmatprep.mubr.bf16.mxu0 0
      %1123 = vmatmul.mubr.bf16.gmra.mrb[0].mxu0 %v717
      %v1124 = vpop.f32.mrb[0].mxu0
      %v1125 = vadd.f32 %v331, %v1124
      %v1126 = vpop.f32.mrb[0].mxu0
      %v1127 = vpop.f32.mrb[0].mxu0
      %v1128 = vadd.f32 %v331, %v1127
      %v1129 = vpop.f32.mrb[0].mxu0
      %1130 = vmatprep.mubr.bf16.mxu0 0
      %1131 = vmatmul.mubr.bf16.gmra.mrb[0].mxu0 %v720
      %v1132 = vpop.f32.mrb[0].mxu0
      %v1133 = vadd.f32 %v331, %v1132
      %v1134 = vpop.f32.mrb[0].mxu0
      %v1135 = vpop.f32.mrb[0].mxu0
      %v1136 = vadd.f32 %v331, %v1135
      %v1137 = vpop.f32.mrb[0].mxu0
      %1138 = vmatprep.mubr.bf16.mxu0 0
      %1139 = vmatmul.mubr.bf16.gmra.mrb[0].mxu0 %v723
      %v1140 = vpop.f32.mrb[0].mxu0
      %v1141 = vadd.f32 %v331, %v1140
      %v1142 = vpop.f32.mrb[0].mxu0
      %v1143 = vpop.f32.mrb[0].mxu0
      %v1144 = vadd.f32 %v331, %v1143
      %v1145 = vpop.f32.mrb[0].mxu0
      %1146 = vmatprep.mubr.bf16.mxu0 0
      %1147 = vmatmul.mubr.bf16.gmra.mrb[0].mxu0 %v726
      %v1148 = vpop.f32.mrb[0].mxu0
      %v1149 = vadd.f32 %v331, %v1148
      %v1150 = vpop.f32.mrb[0].mxu0
      %v1151 = vpop.f32.mrb[0].mxu0
      %v1152 = vadd.f32 %v331, %v1151
      %v1153 = vpop.f32.mrb[0].mxu0
      %1154 = vmatprep.mubr.bf16.mxu0 0
      %1155 = vmatmul.mubr.bf16.gmra.mrb[0].mxu0 %v729
      %v1156 = vpop.f32.mrb[0].mxu0
      %v1157 = vadd.f32 %v331, %v1156
      %v1158 = vpop.f32.mrb[0].mxu0
      %v1159 = vpop.f32.mrb[0].mxu0
      %v1160 = vadd.f32 %v331, %v1159
      %v1161 = vpop.f32.mrb[0].mxu0
      %1162 = vdwg.mxu0
      %v1163 = vmax.f32 %v773, 0.0
      %v1164 = vmax.f32 %v776, 0.0
      %v1165 = vmax.f32 %v781, 0.0
      %v1166 = vmax.f32 %v784, 0.0
      %v1167 = vmax.f32 %v789, 0.0
      %v1168 = vmax.f32 %v792, 0.0
      %v1169 = vmax.f32 %v797, 0.0
      %v1170 = vmax.f32 %v800, 0.0
      %v1171 = vmax.f32 %v805, 0.0
      %v1172 = vmax.f32 %v808, 0.0
      %v1173 = vmax.f32 %v813, 0.0
      %v1174 = vmax.f32 %v816, 0.0
      %v1175 = vmax.f32 %v821, 0.0
      %v1176 = vmax.f32 %v824, 0.0
      %v1177 = vmax.f32 %v829, 0.0
      %v1178 = vmax.f32 %v832, 0.0
      %v1179 = vmax.f32 %v837, 0.0
      %v1180 = vmax.f32 %v840, 0.0
      %v1181 = vmax.f32 %v845, 0.0
      %v1182 = vmax.f32 %v848, 0.0
      %v1183 = vmax.f32 %v853, 0.0
      %v1184 = vmax.f32 %v856, 0.0
      %v1185 = vmax.f32 %v861, 0.0
      %v1186 = vmax.f32 %v864, 0.0
      %v1187 = vmax.f32 %v869, 0.0
      %v1188 = vmax.f32 %v872, 0.0
      %v1189 = vmax.f32 %v877, 0.0
      %v1190 = vmax.f32 %v880, 0.0
      %v1191 = vmax.f32 %v885, 0.0
      %v1192 = vmax.f32 %v888, 0.0
      %v1193 = vmax.f32 %v893, 0.0
      %v1194 = vmax.f32 %v896, 0.0
      %v1195 = vmax.f32 %v901, 0.0
      %v1196 = vmax.f32 %v904, 0.0
      %v1197 = vmax.f32 %v909, 0.0
      %v1198 = vmax.f32 %v912, 0.0
      %v1199 = vmax.f32 %v917, 0.0
      %v1200 = vmax.f32 %v920, 0.0
      %v1201 = vmax.f32 %v925, 0.0
      %v1202 = vmax.f32 %v928, 0.0
      %v1203 = vmax.f32 %v933, 0.0
      %v1204 = vmax.f32 %v936, 0.0
      %v1205 = vmax.f32 %v941, 0.0
      %v1206 = vmax.f32 %v944, 0.0
      %v1207 = vmax.f32 %v949, 0.0
      %v1208 = vmax.f32 %v952, 0.0
      %v1209 = vmax.f32 %v957, 0.0
      %v1210 = vmax.f32 %v960, 0.0
      %v1211 = vmax.f32 %v965, 0.0
      %v1212 = vmax.f32 %v968, 0.0
      %v1213 = vmax.f32 %v973, 0.0
      %v1214 = vmax.f32 %v976, 0.0
      %v1215 = vmax.f32 %v981, 0.0
      %v1216 = vmax.f32 %v984, 0.0
      %v1217 = vmax.f32 %v989, 0.0
      %v1218 = vmax.f32 %v992, 0.0
      %v1219 = vmax.f32 %v997, 0.0
      %v1220 = vmax.f32 %v1000, 0.0
      %v1221 = vmax.f32 %v1005, 0.0
      %v1222 = vmax.f32 %v1008, 0.0
      %v1223 = vmax.f32 %v1013, 0.0
      %v1224 = vmax.f32 %v1016, 0.0
      %v1225 = vmax.f32 %v1021, 0.0
      %v1226 = vmax.f32 %v1024, 0.0
      %v1227 = vmax.f32 %v1029, 0.0
      %v1228 = vmax.f32 %v1032, 0.0
      %v1229 = vmax.f32 %v1037, 0.0
      %v1230 = vmax.f32 %v1040, 0.0
      %v1231 = vmax.f32 %v1045, 0.0
      %v1232 = vmax.f32 %v1048, 0.0
      %v1233 = vmax.f32 %v1053, 0.0
      %v1234 = vmax.f32 %v1056, 0.0
      %v1235 = vmax.f32 %v1061, 0.0
      %v1236 = vmax.f32 %v1064, 0.0
      %v1237 = vmax.f32 %v1069, 0.0
      %v1238 = vmax.f32 %v1072, 0.0
      %v1239 = vmax.f32 %v1077, 0.0
      %v1240 = vmax.f32 %v1080, 0.0
      %v1241 = vmax.f32 %v1085, 0.0
      %v1242 = vmax.f32 %v1088, 0.0
      %v1243 = vmax.f32 %v1093, 0.0
      %v1244 = vmax.f32 %v1096, 0.0
      %v1245 = vmax.f32 %v1101, 0.0
      %v1246 = vmax.f32 %v1104, 0.0
      %v1247 = vmax.f32 %v1109, 0.0
      %v1248 = vmax.f32 %v1112, 0.0
      %v1249 = vmax.f32 %v1117, 0.0
      %v1250 = vmax.f32 %v1120, 0.0
      %v1251 = vmax.f32 %v1125, 0.0
      %v1252 = vmax.f32 %v1128, 0.0
      %v1253 = vmax.f32 %v1133, 0.0
      %v1254 = vmax.f32 %v1136, 0.0
      %v1255 = vmax.f32 %v1141, 0.0
      %v1256 = vmax.f32 %v1144, 0.0
      %v1257 = vmax.f32 %v1149, 0.0
      %v1258 = vmax.f32 %v1152, 0.0
      %v1259 = vmax.f32 %v1157, 0.0
      %v1260 = vmax.f32 %v1160, 0.0
      %v1274 = vrot.slane %v1187, 4
      %v1275 = vrot.slane %v1188, 4
      %v1276 = vsel %vm731, %v1274, %v1275
      %v1277 = vrot.slane %v1189, 4
      %v1278 = vsel %vm731, %v1275, %v1277
      %v1279 = vrot.slane %v1190, 4
      %v1280 = vsel %vm731, %v1277, %v1279
      %v1281 = vrot.slane %v1191, 4
      %v1282 = vsel %vm731, %v1279, %v1281
      %v1283 = vrot.slane %v1192, 4
      %v1284 = vsel %vm731, %v1281, %v1283
      %v1285 = vrot.slane %v1193, 4
      %v1286 = vsel %vm731, %v1283, %v1285
      %v1287 = vrot.slane %v1194, 4
      %v1288 = vsel %vm731, %v1285, %v1287
      %v1289 = vrot.slane %v1195, 4
      %v1290 = vsel %vm731, %v1287, %v1289
      %v1291 = vrot.slane %v1196, 4
      %v1292 = vsel %vm731, %v1289, %v1291
      %v1293 = vrot.slane %v1197, 4
      %v1294 = vsel %vm731, %v1291, %v1293
      %v1295 = vrot.slane %v1198, 4
      %v1296 = vsel %vm731, %v1293, %v1295
      %v1297 = vrot.slane %v1199, 4
      %v1298 = vsel %vm731, %v1295, %v1297
      %v1312 = vmax.f32 %v1163, %v1276
      %v1313 = vmax.f32 %v1164, %v1278
      %v1314 = vmax.f32 %v1165, %v1280
      %v1315 = vmax.f32 %v1166, %v1282
      %v1316 = vmax.f32 %v1167, %v1284
      %v1317 = vmax.f32 %v1168, %v1286
      %v1318 = vmax.f32 %v1169, %v1288
      %v1319 = vmax.f32 %v1170, %v1290
      %v1320 = vmax.f32 %v1171, %v1292
      %v1321 = vmax.f32 %v1172, %v1294
      %v1322 = vmax.f32 %v1173, %v1296
      %v1323 = vmax.f32 %v1174, %v1298
      %v1324 = vmax.f32 %v1175, %v1297
      %v1338 = vrot.slane %v1236, 4
      %v1339 = vrot.slane %v1237, 4
      %v1340 = vsel %vm731, %v1338, %v1339
      %v1341 = vrot.slane %v1238, 4
      %v1342 = vsel %vm731, %v1339, %v1341
      %v1343 = vrot.slane %v1239, 4
      %v1344 = vsel %vm731, %v1341, %v1343
      %v1345 = vrot.slane %v1240, 4
      %v1346 = vsel %vm731, %v1343, %v1345
      %v1347 = vrot.slane %v1241, 4
      %v1348 = vsel %vm731, %v1345, %v1347
      %v1349 = vrot.slane %v1242, 4
      %v1350 = vsel %vm731, %v1347, %v1349
      %v1351 = vrot.slane %v1243, 4
      %v1352 = vsel %vm731, %v1349, %v1351
      %v1353 = vrot.slane %v1244, 4
      %v1354 = vsel %vm731, %v1351, %v1353
      %v1355 = vrot.slane %v1245, 4
      %v1356 = vsel %vm731, %v1353, %v1355
      %v1357 = vrot.slane %v1246, 4
      %v1358 = vsel %vm731, %v1355, %v1357
      %v1359 = vrot.slane %v1247, 4
      %v1360 = vsel %vm731, %v1357, %v1359
      %v1361 = vrot.slane %v1248, 4
      %v1362 = vsel %vm731, %v1359, %v1361
      %v1376 = vmax.f32 %v1212, %v1340
      %v1377 = vmax.f32 %v1213, %v1342
      %v1378 = vmax.f32 %v1214, %v1344
      %v1379 = vmax.f32 %v1215, %v1346
      %v1380 = vmax.f32 %v1216, %v1348
      %v1381 = vmax.f32 %v1217, %v1350
      %v1382 = vmax.f32 %v1218, %v1352
      %v1383 = vmax.f32 %v1219, %v1354
      %v1384 = vmax.f32 %v1220, %v1356
      %v1385 = vmax.f32 %v1221, %v1358
      %v1386 = vmax.f32 %v1222, %v1360
      %v1387 = vmax.f32 %v1223, %v1362
      %v1388 = vmax.f32 %v1224, %v1361
      %v1389 = vmax.f32 %v1312, %v1376
      %v1390 = vmax.f32 %v1313, %v1377
      %v1391 = vmax.f32 %v1314, %v1378
      %v1392 = vmax.f32 %v1315, %v1379
      %v1393 = vmax.f32 %v1316, %v1380
      %v1394 = vmax.f32 %v1317, %v1381
      %v1395 = vmax.f32 %v1318, %v1382
      %v1396 = vmax.f32 %v1319, %v1383
      %v1397 = vmax.f32 %v1320, %v1384
      %v1398 = vmax.f32 %v1321, %v1385
      %v1399 = vmax.f32 %v1322, %v1386
      %v1400 = vmax.f32 %v1323, %v1387
      %v1401 = vmax.f32 %v1324, %v1388
      %v1414 = vrot.slane %v1200, 4
      %v1415 = vsel %vm731, %v1297, %v1414
      %v1416 = vrot.slane %v1201, 4
      %v1417 = vsel %vm731, %v1414, %v1416
      %v1418 = vrot.slane %v1202, 4
      %v1419 = vsel %vm731, %v1416, %v1418
      %v1420 = vrot.slane %v1203, 4
      %v1421 = vsel %vm731, %v1418, %v1420
      %v1422 = vrot.slane %v1204, 4
      %v1423 = vsel %vm731, %v1420, %v1422
      %v1424 = vrot.slane %v1205, 4
      %v1425 = vsel %vm731, %v1422, %v1424
      %v1426 = vrot.slane %v1206, 4
      %v1427 = vsel %vm731, %v1424, %v1426
      %v1428 = vrot.slane %v1207, 4
      %v1429 = vsel %vm731, %v1426, %v1428
      %v1430 = vrot.slane %v1208, 4
      %v1431 = vsel %vm731, %v1428, %v1430
      %v1432 = vrot.slane %v1209, 4
      %v1433 = vsel %vm731, %v1430, %v1432
      %v1434 = vrot.slane %v1210, 4
      %v1435 = vsel %vm731, %v1432, %v1434
      %v1436 = vrot.slane %v1211, 4
      %v1437 = vsel %vm731, %v1434, %v1436
      %v1451 = vmax.f32 %v1175, %v1415
      %v1452 = vmax.f32 %v1176, %v1417
      %v1453 = vmax.f32 %v1177, %v1419
      %v1454 = vmax.f32 %v1178, %v1421
      %v1455 = vmax.f32 %v1179, %v1423
      %v1456 = vmax.f32 %v1180, %v1425
      %v1457 = vmax.f32 %v1181, %v1427
      %v1458 = vmax.f32 %v1182, %v1429
      %v1459 = vmax.f32 %v1183, %v1431
      %v1460 = vmax.f32 %v1184, %v1433
      %v1461 = vmax.f32 %v1185, %v1435
      %v1462 = vmax.f32 %v1186, %v1437
      %v1463 = vmax.f32 %v1187, %v1436
      %v1476 = vrot.slane %v1249, 4
      %v1477 = vsel %vm731, %v1361, %v1476
      %v1478 = vrot.slane %v1250, 4
      %v1479 = vsel %vm731, %v1476, %v1478
      %v1480 = vrot.slane %v1251, 4
      %v1481 = vsel %vm731, %v1478, %v1480
      %v1482 = vrot.slane %v1252, 4
      %v1483 = vsel %vm731, %v1480, %v1482
      %v1484 = vrot.slane %v1253, 4
      %v1485 = vsel %vm731, %v1482, %v1484
      %v1486 = vrot.slane %v1254, 4
      %v1487 = vsel %vm731, %v1484, %v1486
      %v1488 = vrot.slane %v1255, 4
      %v1489 = vsel %vm731, %v1486, %v1488
      %v1490 = vrot.slane %v1256, 4
      %v1491 = vsel %vm731, %v1488, %v1490
      %v1492 = vrot.slane %v1257, 4
      %v1493 = vsel %vm731, %v1490, %v1492
      %v1494 = vrot.slane %v1258, 4
      %v1495 = vsel %vm731, %v1492, %v1494
      %v1496 = vrot.slane %v1259, 4
      %v1497 = vsel %vm731, %v1494, %v1496
      %v1498 = vrot.slane %v1260, 4
      %v1499 = vsel %vm731, %v1496, %v1498
      %v1513 = vmax.f32 %v1224, %v1477
      %v1514 = vmax.f32 %v1225, %v1479
      %v1515 = vmax.f32 %v1226, %v1481
      %v1516 = vmax.f32 %v1227, %v1483
      %v1517 = vmax.f32 %v1228, %v1485
      %v1518 = vmax.f32 %v1229, %v1487
      %v1519 = vmax.f32 %v1230, %v1489
      %v1520 = vmax.f32 %v1231, %v1491
      %v1521 = vmax.f32 %v1232, %v1493
      %v1522 = vmax.f32 %v1233, %v1495
      %v1523 = vmax.f32 %v1234, %v1497
      %v1524 = vmax.f32 %v1235, %v1499
      %v1525 = vmax.f32 %v1236, %v1498
      %v1526 = vmax.f32 %v1451, %v1513
      %v1527 = vmax.f32 %v1452, %v1514
      %v1528 = vmax.f32 %v1453, %v1515
      %v1529 = vmax.f32 %v1454, %v1516
      %v1530 = vmax.f32 %v1455, %v1517
      %v1531 = vmax.f32 %v1456, %v1518
      %v1532 = vmax.f32 %v1457, %v1519
      %v1533 = vmax.f32 %v1458, %v1520
      %v1534 = vmax.f32 %v1459, %v1521
      %v1535 = vmax.f32 %v1460, %v1522
      %v1536 = vmax.f32 %v1461, %v1523
      %v1537 = vmax.f32 %v1462, %v1524
      %v1538 = vmax.f32 %v1463, %v1525
      %vm1539 = vcmask 130048
      %1540 = vst.msk [vmem:[#allocation2] sm:$0xff] %vm1539, 0.0
      %1541 = vst.msk [vmem:[#allocation2 + $0x8] sm:$0xff] %vm1539, 0.0
      %1542 = vst.msk [vmem:[#allocation2 + $0x10] sm:$0xff] %vm1539, 0.0
      %1543 = vst.msk [vmem:[#allocation2 + $0x18] sm:$0xff] %vm1539, 0.0
      %1544 = vst.msk [vmem:[#allocation2 + $0x20] sm:$0xff] %vm1539, 0.0
      %1545 = vst.msk [vmem:[#allocation2 + $0x28] sm:$0xff] %vm1539, 0.0
      %1546 = vst.msk [vmem:[#allocation2 + $0x30] sm:$0xff] %vm1539, 0.0
      %1547 = vst.msk [vmem:[#allocation2 + $0x38] sm:$0xff] %vm1539, 0.0
      %1548 = vst.msk [vmem:[#allocation2 + $0x40] sm:$0xff] %vm1539, 0.0
      %1549 = vst.msk [vmem:[#allocation2 + $0x48] sm:$0xff] %vm1539, 0.0
      %1550 = vst.msk [vmem:[#allocation2 + $0x50] sm:$0xff] %vm1539, 0.0
      %1551 = vst.msk [vmem:[#allocation2 + $0x58] sm:$0xff] %vm1539, 0.0
      %1552 = vst.msk [vmem:[#allocation2 + $0x60] sm:$0xff] %vm1539, 0.0
      %1553 = vst.msk [vmem:[#allocation2 + $0x68] sm:$0xff] %vm1539, 0.0
      %1554 = vst.msk [vmem:[#allocation2 + $0x70] sm:$0xff] %vm1539, 0.0
      %1555 = vst.msk [vmem:[#allocation2 + $0x78] sm:$0xff] %vm1539, 0.0
      %1556 = vst.msk [vmem:[#allocation3] sm:$0xff] %vm1539, 0.0
      %1557 = vst.msk [vmem:[#allocation3 + $0x8] sm:$0xff] %vm1539, 0.0
      %1558 = vst.msk [vmem:[#allocation3 + $0x10] sm:$0xff] %vm1539, 0.0
      %1559 = vst.msk [vmem:[#allocation3 + $0x18] sm:$0xff] %vm1539, 0.0
      %1560 = vst.msk [vmem:[#allocation3 + $0x20] sm:$0xff] %vm1539, 0.0
      %1561 = vst.msk [vmem:[#allocation3 + $0x28] sm:$0xff] %vm1539, 0.0
      %1562 = vst.msk [vmem:[#allocation3 + $0x30] sm:$0xff] %vm1539, 0.0
      %1563 = vst.msk [vmem:[#allocation3 + $0x38] sm:$0xff] %vm1539, 0.0
      %1564 = vst.msk [vmem:[#allocation3 + $0x40] sm:$0xff] %vm1539, 0.0
      %1565 = vst.msk [vmem:[#allocation3 + $0x48] sm:$0xff] %vm1539, 0.0
      %1566 = vst.msk [vmem:[#allocation3 + $0x50] sm:$0xff] %vm1539, 0.0
      %1567 = vst.msk [vmem:[#allocation3 + $0x58] sm:$0xff] %vm1539, 0.0
      %1568 = vst.msk [vmem:[#allocation3 + $0x60] sm:$0xff] %vm1539, 0.0
      %1569 = vst.msk [vmem:[#allocation3 + $0x68] sm:$0xff] %vm1539, 0.0
      %1570 = vst.msk [vmem:[#allocation3 + $0x70] sm:$0xff] %vm1539, 0.0
      %1571 = vst.msk [vmem:[#allocation3 + $0x78] sm:$0xff] %vm1539, 0.0
      %s1572 = scalar_lea.vmem [#allocation3], 8
      %vm1573 = vcmask 129024
      %1574 = vst.msk [vmem:[%s1572] sm:$0x7f] %vm1573, %v1389
      %s1575 = scalar_lea.vmem [#allocation2], 8
      %vm1576 = vcmask 130050
      %1577 = vst.msk [vmem:[%s1575 - $0x1] sm:$0xfc] %vm1576, %v1526
      %vm1578 = vcmask 122880
      %1579 = vst.msk [vmem:[%s1575 + $0x7] sm:$0x1] %vm1578, %v1527
      %s1580 = scalar_lea.vmem [#allocation3], 16
      %vm1581 = vcmask 130055
      %1582 = vst.msk [vmem:[%s1580 - $0x7] sm:$0x80] %vm1581, %v1389
      %vm1583 = vcmask 128000
      %1584 = vst.msk [vmem:[%s1580 + $0x1] sm:$0x3f] %vm1583, %v1390
      %s1585 = scalar_lea.vmem [#allocation2], 16
      %vm1586 = vcmask 130049
      %1587 = vst.msk [vmem:[%s1585] sm:$0xfe] %vm1586, %v1527
      %s1588 = scalar_lea.vmem [#allocation3], 24
      %vm1589 = vcmask 130054
      %1590 = vst.msk [vmem:[%s1588 - $0x6] sm:$0xc0] %vm1589, %v1390
      %vm1591 = vcmask 126976
      %1592 = vst.msk [vmem:[%s1588 + $0x2] sm:$0x1f] %vm1591, %v1391
      %s1593 = scalar_lea.vmem [#allocation2], 24
      %1594 = vst.msk [vmem:[%s1593 + $0x1] sm:$0x7f] %vm1573, %v1528
      %s1595 = scalar_lea.vmem [#allocation3], 32
      %vm1596 = vcmask 130053
      %1597 = vst.msk [vmem:[%s1595 - $0x5] sm:$0xe0] %vm1596, %v1391
      %vm1598 = vcmask 125952
      %1599 = vst.msk [vmem:[%s1595 + $0x3] sm:$0xf] %vm1598, %v1392
      %s1600 = scalar_lea.vmem [#allocation2], 32
      %1601 = vst.msk [vmem:[%s1600 - $0x6] sm:$0x80] %vm1581, %v1528
      %1602 = vst.msk [vmem:[%s1600 + $0x2] sm:$0x3f] %vm1583, %v1529
      %s1603 = scalar_lea.vmem [#allocation3], 40
      %vm1604 = vcmask 130052
      %1605 = vst.msk [vmem:[%s1603 - $0x4] sm:$0xf0] %vm1604, %v1392
      %vm1606 = vcmask 124928
      %1607 = vst.msk [vmem:[%s1603 + $0x4] sm:$0x7] %vm1606, %v1393
      %s1608 = scalar_lea.vmem [#allocation2], 40
      %1609 = vst.msk [vmem:[%s1608 - $0x5] sm:$0xc0] %vm1589, %v1529
      %1610 = vst.msk [vmem:[%s1608 + $0x3] sm:$0x1f] %vm1591, %v1530
      %s1611 = scalar_lea.vmem [#allocation3], 48
      %vm1612 = vcmask 130051
      %1613 = vst.msk [vmem:[%s1611 - $0x3] sm:$0xf8] %vm1612, %v1393
      %vm1614 = vcmask 123904
      %1615 = vst.msk [vmem:[%s1611 + $0x5] sm:$0x3] %vm1614, %v1394
      %s1616 = scalar_lea.vmem [#allocation2], 48
      %1617 = vst.msk [vmem:[%s1616 - $0x4] sm:$0xe0] %vm1596, %v1530
      %1618 = vst.msk [vmem:[%s1616 + $0x4] sm:$0xf] %vm1598, %v1531
      %s1619 = scalar_lea.vmem [#allocation3], 56
      %1620 = vst.msk [vmem:[%s1619 - $0x2] sm:$0xfc] %vm1576, %v1394
      %1621 = vst.msk [vmem:[%s1619 + $0x6] sm:$0x1] %vm1578, %v1395
      %s1622 = scalar_lea.vmem [#allocation2], 56
      %1623 = vst.msk [vmem:[%s1622 - $0x3] sm:$0xf0] %vm1604, %v1531
      %1624 = vst.msk [vmem:[%s1622 + $0x5] sm:$0x7] %vm1606, %v1532
      %s1625 = scalar_lea.vmem [#allocation3], 64
      %1626 = vst.msk [vmem:[%s1625 - $0x1] sm:$0xfe] %vm1586, %v1395
      %s1627 = scalar_lea.vmem [#allocation2], 64
      %1628 = vst.msk [vmem:[%s1627 - $0x2] sm:$0xf8] %vm1612, %v1532
      %1629 = vst.msk [vmem:[%s1627 + $0x6] sm:$0x3] %vm1614, %v1533
      %s1630 = scalar_lea.vmem [#allocation3], 72
      %1631 = vst.msk [vmem:[%s1630] sm:$0x7f] %vm1573, %v1396
      %s1632 = scalar_lea.vmem [#allocation2], 72
      %1633 = vst.msk [vmem:[%s1632 - $0x1] sm:$0xfc] %vm1576, %v1533
      %1634 = vst.msk [vmem:[%s1632 + $0x7] sm:$0x1] %vm1578, %v1534
      %s1635 = scalar_lea.vmem [#allocation3], 80
      %1636 = vst.msk [vmem:[%s1635 - $0x7] sm:$0x80] %vm1581, %v1396
      %1637 = vst.msk [vmem:[%s1635 + $0x1] sm:$0x3f] %vm1583, %v1397
      %s1638 = scalar_lea.vmem [#allocation2], 80
      %1639 = vst.msk [vmem:[%s1638] sm:$0xfe] %vm1586, %v1534
      %s1640 = scalar_lea.vmem [#allocation3], 88
      %1641 = vst.msk [vmem:[%s1640 - $0x6] sm:$0xc0] %vm1589, %v1397
      %1642 = vst.msk [vmem:[%s1640 + $0x2] sm:$0x1f] %vm1591, %v1398
      %s1643 = scalar_lea.vmem [#allocation2], 88
      %1644 = vst.msk [vmem:[%s1643 + $0x1] sm:$0x7f] %vm1573, %v1535
      %s1645 = scalar_lea.vmem [#allocation3], 96
      %1646 = vst.msk [vmem:[%s1645 - $0x5] sm:$0xe0] %vm1596, %v1398
      %1647 = vst.msk [vmem:[%s1645 + $0x3] sm:$0xf] %vm1598, %v1399
      %s1648 = scalar_lea.vmem [#allocation2], 96
      %1649 = vst.msk [vmem:[%s1648 - $0x6] sm:$0x80] %vm1581, %v1535
      %1650 = vst.msk [vmem:[%s1648 + $0x2] sm:$0x3f] %vm1583, %v1536
      %s1651 = scalar_lea.vmem [#allocation3], 104
      %1652 = vst.msk [vmem:[%s1651 - $0x4] sm:$0xf0] %vm1604, %v1399
      %1653 = vst.msk [vmem:[%s1651 + $0x4] sm:$0x7] %vm1606, %v1400
      %s1654 = scalar_lea.vmem [#allocation2], 104
      %1655 = vst.msk [vmem:[%s1654 - $0x5] sm:$0xc0] %vm1589, %v1536
      %1656 = vst.msk [vmem:[%s1654 + $0x3] sm:$0x1f] %vm1591, %v1537
      %s1657 = scalar_lea.vmem [#allocation3], 112
      %1658 = vst.msk [vmem:[%s1657 - $0x3] sm:$0xf8] %vm1612, %v1400
      %1659 = vst.msk [vmem:[%s1657 + $0x5] sm:$0x3] %vm1614, %v1401
      %s1660 = scalar_lea.vmem [#allocation2], 112
      %1661 = vst.msk [vmem:[%s1660 - $0x4] sm:$0xe0] %vm1596, %v1537
      %1662 = vst.msk [vmem:[%s1660 + $0x4] sm:$0xf] %vm1598, %v1538
      %v1663 = vld [vmem:[#allocation2] sm:$0x7f]
      %v1664 = vld [vmem:[#allocation3] sm:$0x7f]
      %v1665 = vld [vmem:[#allocation2 + $0x1] sm:$0x7f]
      %v1666 = vld [vmem:[#allocation3 + $0x1] sm:$0x7f]
      %v1667 = vld [vmem:[%s1575] sm:$0x7f]
      %v1668 = vld [vmem:[%s1572] sm:$0x7f]
      %v1669 = vld [vmem:[%s1575 + $0x1] sm:$0x7f]
      %v1670 = vld [vmem:[%s1572 + $0x1] sm:$0x7f]
      %v1671 = vld [vmem:[%s1585] sm:$0x7f]
      %v1672 = vld [vmem:[%s1580] sm:$0x7f]
      %v1673 = vld [vmem:[%s1585 + $0x1] sm:$0x7f]
      %v1674 = vld [vmem:[%s1580 + $0x1] sm:$0x7f]
      %v1675 = vld [vmem:[%s1593] sm:$0x7f]
      %v1676 = vld [vmem:[%s1588] sm:$0x7f]
      %v1677 = vld [vmem:[%s1593 + $0x1] sm:$0x7f]
      %v1678 = vld [vmem:[%s1588 + $0x1] sm:$0x7f]
      %v1679 = vld [vmem:[%s1600] sm:$0x7f]
      %v1680 = vld [vmem:[%s1595] sm:$0x7f]
      %v1681 = vld [vmem:[%s1600 + $0x1] sm:$0x7f]
      %v1682 = vld [vmem:[%s1595 + $0x1] sm:$0x7f]
      %v1683 = vld [vmem:[%s1608] sm:$0x7f]
      %v1684 = vld [vmem:[%s1603] sm:$0x7f]
      %v1685 = vld [vmem:[%s1608 + $0x1] sm:$0x7f]
      %v1686 = vld [vmem:[%s1603 + $0x1] sm:$0x7f]
      %v1687 = vld [vmem:[%s1616] sm:$0x7f]
      %v1688 = vld [vmem:[%s1611] sm:$0x7f]
      %v1689 = vld [vmem:[%s1616 + $0x1] sm:$0x7f]
      %v1690 = vld [vmem:[%s1611 + $0x1] sm:$0x7f]
      %v1691 = vld [vmem:[%s1622] sm:$0x7f]
      %v1692 = vld [vmem:[%s1619] sm:$0x7f]
      %v1693 = vld [vmem:[%s1622 + $0x1] sm:$0x7f]
      %v1694 = vld [vmem:[%s1619 + $0x1] sm:$0x7f]
      %v1695 = vld [vmem:[%s1627] sm:$0x7f]
      %v1696 = vld [vmem:[%s1625] sm:$0x7f]
      %v1697 = vld [vmem:[%s1627 + $0x1] sm:$0x7f]
      %v1698 = vld [vmem:[%s1625 + $0x1] sm:$0x7f]
      %v1699 = vld [vmem:[%s1632] sm:$0x7f]
      %v1700 = vld [vmem:[%s1630] sm:$0x7f]
      %v1701 = vld [vmem:[%s1632 + $0x1] sm:$0x7f]
      %v1702 = vld [vmem:[%s1630 + $0x1] sm:$0x7f]
      %v1703 = vld [vmem:[%s1638] sm:$0x7f]
      %v1704 = vld [vmem:[%s1635] sm:$0x7f]
      %v1705 = vld [vmem:[%s1638 + $0x1] sm:$0x7f]
      %v1706 = vld [vmem:[%s1635 + $0x1] sm:$0x7f]
      %v1707 = vld [vmem:[%s1643] sm:$0x7f]
      %v1708 = vld [vmem:[%s1640] sm:$0x7f]
      %v1709 = vld [vmem:[%s1643 + $0x1] sm:$0x7f]
      %v1710 = vld [vmem:[%s1640 + $0x1] sm:$0x7f]
      %v1711 = vld [vmem:[%s1648] sm:$0x7f]
      %v1712 = vld [vmem:[%s1645] sm:$0x7f]
      %v1713 = vld [vmem:[%s1648 + $0x1] sm:$0x7f]
      %v1714 = vld [vmem:[%s1645 + $0x1] sm:$0x7f]
      %v1715 = vld [vmem:[%s1654] sm:$0x7f]
      %v1716 = vld [vmem:[%s1651] sm:$0x7f]
      %v1717 = vld [vmem:[%s1654 + $0x1] sm:$0x7f]
      %v1718 = vld [vmem:[%s1651 + $0x1] sm:$0x7f]
      %v1719 = vld [vmem:[%s1660] sm:$0x7f]
      %v1720 = vld [vmem:[%s1657] sm:$0x7f]
      %v1721 = vld [vmem:[%s1660 + $0x1] sm:$0x7f]
      %v1722 = vld [vmem:[%s1657 + $0x1] sm:$0x7f]
      %s1723 = scalar_lea.vmem [#allocation2], 120
      %v1724 = vld [vmem:[%s1723] sm:$0x7f]
      %s1725 = scalar_lea.vmem [#allocation3], 120
      %v1726 = vld [vmem:[%s1725] sm:$0x7f]
      %v1727 = vld [vmem:[%s1723 + $0x1] sm:$0x7f]
      %v1728 = vld [vmem:[%s1725 + $0x1] sm:$0x7f]
      %1730 = vrot.lane.b32.xlu0 %v1664, 16
      %v1731 = vpop.permute.xlu0 %1730
      %1734 = vrot.lane.b32.xlu0 %v1665, 32
      %v1735 = vpop.permute.xlu0 %1734
      %1738 = vrot.lane.b32.xlu0 %v1667, 48
      %v1739 = vpop.permute.xlu0 %1738
      %1742 = vrot.lane.b32.xlu0 %v1668, 64
      %v1743 = vpop.permute.xlu0 %1742
      %1746 = vrot.lane.b32.xlu0 %v1669, 80
      %v1747 = vpop.permute.xlu0 %1746
      %1750 = vrot.lane.b32.xlu0 %v1671, 96
      %v1751 = vpop.permute.xlu0 %1750
      %1754 = vrot.lane.b32.xlu0 %v1672, 112
      %v1755 = vpop.permute.xlu0 %1754
      %v1757 = vsel %vm1539, %v1663, %v1731
      %vm1758 = vcmask 261120
      %v1759 = vsel %vm1758, %v1757, %v1735
      %vm1760 = vcmask 392192
      %v1761 = vsel %vm1760, %v1759, %v1739
      %vm1762 = vcmask 523264
      %v1763 = vsel %vm1762, %v1761, %v1743
      %vm1764 = vcmask 654336
      %v1765 = vsel %vm1764, %v1763, %v1747
      %vm1766 = vcmask 785408
      %v1767 = vsel %vm1766, %v1765, %v1751
      %vm1768 = vcmask 916480
      %v1769 = vsel %vm1768, %v1767, %v1755
      %1770 = vrot.lane.b32.xlu0 %v1672, 16
      %v1771 = vpop.permute.xlu0 %1770
      %1774 = vrot.lane.b32.xlu0 %v1673, 32
      %v1775 = vpop.permute.xlu0 %1774
      %1778 = vrot.lane.b32.xlu0 %v1675, 48
      %v1779 = vpop.permute.xlu0 %1778
      %1782 = vrot.lane.b32.xlu0 %v1676, 64
      %v1783 = vpop.permute.xlu0 %1782
      %1786 = vrot.lane.b32.xlu0 %v1677, 80
      %v1787 = vpop.permute.xlu0 %1786
      %1790 = vrot.lane.b32.xlu0 %v1679, 96
      %v1791 = vpop.permute.xlu0 %1790
      %1794 = vrot.lane.b32.xlu0 %v1680, 112
      %v1795 = vpop.permute.xlu0 %1794
      %v1797 = vsel %vm1539, %v1671, %v1771
      %v1798 = vsel %vm1758, %v1797, %v1775
      %v1799 = vsel %vm1760, %v1798, %v1779
      %v1800 = vsel %vm1762, %v1799, %v1783
      %v1801 = vsel %vm1764, %v1800, %v1787
      %v1802 = vsel %vm1766, %v1801, %v1791
      %v1803 = vsel %vm1768, %v1802, %v1795
      %1804 = vrot.lane.b32.xlu0 %v1680, 16
      %v1805 = vpop.permute.xlu0 %1804
      %1808 = vrot.lane.b32.xlu0 %v1681, 32
      %v1809 = vpop.permute.xlu0 %1808
      %1812 = vrot.lane.b32.xlu0 %v1683, 48
      %v1813 = vpop.permute.xlu0 %1812
      %1816 = vrot.lane.b32.xlu0 %v1684, 64
      %v1817 = vpop.permute.xlu0 %1816
      %1820 = vrot.lane.b32.xlu0 %v1685, 80
      %v1821 = vpop.permute.xlu0 %1820
      %1824 = vrot.lane.b32.xlu0 %v1687, 96
      %v1825 = vpop.permute.xlu0 %1824
      %1828 = vrot.lane.b32.xlu0 %v1688, 112
      %v1829 = vpop.permute.xlu0 %1828
      %v1831 = vsel %vm1539, %v1679, %v1805
      %v1832 = vsel %vm1758, %v1831, %v1809
      %v1833 = vsel %vm1760, %v1832, %v1813
      %v1834 = vsel %vm1762, %v1833, %v1817
      %v1835 = vsel %vm1764, %v1834, %v1821
      %v1836 = vsel %vm1766, %v1835, %v1825
      %v1837 = vsel %vm1768, %v1836, %v1829
      %1838 = vrot.lane.b32.xlu0 %v1688, 16
      %v1839 = vpop.permute.xlu0 %1838
      %1842 = vrot.lane.b32.xlu0 %v1689, 32
      %v1843 = vpop.permute.xlu0 %1842
      %1846 = vrot.lane.b32.xlu0 %v1691, 48
      %v1847 = vpop.permute.xlu0 %1846
      %1850 = vrot.lane.b32.xlu0 %v1692, 64
      %v1851 = vpop.permute.xlu0 %1850
      %1854 = vrot.lane.b32.xlu0 %v1693, 80
      %v1855 = vpop.permute.xlu0 %1854
      %1858 = vrot.lane.b32.xlu0 %v1695, 96
      %v1859 = vpop.permute.xlu0 %1858
      %1862 = vrot.lane.b32.xlu0 %v1696, 112
      %v1863 = vpop.permute.xlu0 %1862
      %v1865 = vsel %vm1539, %v1687, %v1839
      %v1866 = vsel %vm1758, %v1865, %v1843
      %v1867 = vsel %vm1760, %v1866, %v1847
      %v1868 = vsel %vm1762, %v1867, %v1851
      %v1869 = vsel %vm1764, %v1868, %v1855
      %v1870 = vsel %vm1766, %v1869, %v1859
      %v1871 = vsel %vm1768, %v1870, %v1863
      %1872 = vrot.lane.b32.xlu0 %v1696, 16
      %v1873 = vpop.permute.xlu0 %1872
      %1876 = vrot.lane.b32.xlu0 %v1697, 32
      %v1877 = vpop.permute.xlu0 %1876
      %1880 = vrot.lane.b32.xlu0 %v1699, 48
      %v1881 = vpop.permute.xlu0 %1880
      %1884 = vrot.lane.b32.xlu0 %v1700, 64
      %v1885 = vpop.permute.xlu0 %1884
      %1888 = vrot.lane.b32.xlu0 %v1701, 80
      %v1889 = vpop.permute.xlu0 %1888
      %1892 = vrot.lane.b32.xlu0 %v1703, 96
      %v1893 = vpop.permute.xlu0 %1892
      %1896 = vrot.lane.b32.xlu0 %v1704, 112
      %v1897 = vpop.permute.xlu0 %1896
      %v1899 = vsel %vm1539, %v1695, %v1873
      %v1900 = vsel %vm1758, %v1899, %v1877
      %v1901 = vsel %vm1760, %v1900, %v1881
      %v1902 = vsel %vm1762, %v1901, %v1885
      %v1903 = vsel %vm1764, %v1902, %v1889
      %v1904 = vsel %vm1766, %v1903, %v1893
      %v1905 = vsel %vm1768, %v1904, %v1897
      %1906 = vrot.lane.b32.xlu0 %v1704, 16
      %v1907 = vpop.permute.xlu0 %1906
      %1910 = vrot.lane.b32.xlu0 %v1705, 32
      %v1911 = vpop.permute.xlu0 %1910
      %1914 = vrot.lane.b32.xlu0 %v1707, 48
      %v1915 = vpop.permute.xlu0 %1914
      %1918 = vrot.lane.b32.xlu0 %v1708, 64
      %v1919 = vpop.permute.xlu0 %1918
      %1922 = vrot.lane.b32.xlu0 %v1709, 80
      %v1923 = vpop.permute.xlu0 %1922
      %1926 = vrot.lane.b32.xlu0 %v1711, 96
      %v1927 = vpop.permute.xlu0 %1926
      %1930 = vrot.lane.b32.xlu0 %v1712, 112
      %v1931 = vpop.permute.xlu0 %1930
      %v1933 = vsel %vm1539, %v1703, %v1907
      %v1934 = vsel %vm1758, %v1933, %v1911
      %v1935 = vsel %vm1760, %v1934, %v1915
      %v1936 = vsel %vm1762, %v1935, %v1919
      %v1937 = vsel %vm1764, %v1936, %v1923
      %v1938 = vsel %vm1766, %v1937, %v1927
      %v1939 = vsel %vm1768, %v1938, %v1931
      %1940 = vrot.lane.b32.xlu0 %v1712, 16
      %v1941 = vpop.permute.xlu0 %1940
      %1944 = vrot.lane.b32.xlu0 %v1713, 32
      %v1945 = vpop.permute.xlu0 %1944
      %1948 = vrot.lane.b32.xlu0 %v1715, 48
      %v1949 = vpop.permute.xlu0 %1948
      %1952 = vrot.lane.b32.xlu0 %v1716, 64
      %v1953 = vpop.permute.xlu0 %1952
      %1956 = vrot.lane.b32.xlu0 %v1717, 80
      %v1957 = vpop.permute.xlu0 %1956
      %1960 = vrot.lane.b32.xlu0 %v1719, 96
      %v1961 = vpop.permute.xlu0 %1960
      %1964 = vrot.lane.b32.xlu0 %v1720, 112
      %v1965 = vpop.permute.xlu0 %1964
      %v1967 = vsel %vm1539, %v1711, %v1941
      %v1968 = vsel %vm1758, %v1967, %v1945
      %v1969 = vsel %vm1760, %v1968, %v1949
      %v1970 = vsel %vm1762, %v1969, %v1953
      %v1971 = vsel %vm1764, %v1970, %v1957
      %v1972 = vsel %vm1766, %v1971, %v1961
      %v1973 = vsel %vm1768, %v1972, %v1965
      %v1975 = vrot.slane %v1803, 1
      %v1976 = vrot.slane %v1681, 1
      %v1980 = vrot.slane %v1837, 2
      %v1981 = vrot.slane %v1689, 2
      %v1985 = vrot.slane %v1871, 3
      %v1986 = vrot.slane %v1697, 3
      %v1990 = vrot.slane %v1905, 4
      %v1991 = vrot.slane %v1705, 4
      %v1995 = vrot.slane %v1939, 5
      %v1996 = vrot.slane %v1713, 5
      %v2001 = vrot.slane %v1973, 6
      %v2002 = vrot.slane %v1721, 6
      %vm2005 = vcmask 1046528
      %v2006 = vsel %vm2005, %v1769, %v1975
      %v2007 = vsel %vm2005, %v1673, %v1976
      %vm2008 = vcmask 1045504
      %v2009 = vsel %vm2008, %v1975, %v1980
      %v2010 = vsel %vm2008, %v1976, %v1981
      %v2011 = vsel %vm732, %v1980, %v1985
      %v2012 = vsel %vm732, %v1981, %v1986
      %v2013 = vsel %vm731, %v1985, %v1990
      %v2014 = vsel %vm731, %v1986, %v1991
      %vm2015 = vcmask 1042432
      %v2016 = vsel %vm2015, %v1990, %v1995
      %v2017 = vsel %vm2015, %v1991, %v1996
      %vm2018 = vcmask 1041408
      %v2019 = vsel %vm2018, %v1995, %v2001
      %v2020 = vsel %vm2018, %v1996, %v2002
      %2021 = vrot.lane.b32.xlu0 %v1665, 16
      %v2022 = vpop.permute.xlu0 %2021
      %2025 = vrot.lane.b32.xlu0 %v1666, 32
      %v2026 = vpop.permute.xlu0 %2025
      %2028 = vrot.lane.b32.xlu0 %v1668, 48
      %v2029 = vpop.permute.xlu0 %2028
      %2031 = vrot.lane.b32.xlu0 %v1669, 64
      %v2032 = vpop.permute.xlu0 %2031
      %2035 = vrot.lane.b32.xlu0 %v1670, 80
      %v2036 = vpop.permute.xlu0 %2035
      %2038 = vrot.lane.b32.xlu0 %v1672, 96
      %v2039 = vpop.permute.xlu0 %2038
      %2041 = vrot.lane.b32.xlu0 %v1673, 112
      %v2042 = vpop.permute.xlu0 %2041
      %v2044 = vsel %vm1539, %v1664, %v2022
      %v2045 = vsel %vm1758, %v2044, %v2026
      %v2046 = vsel %vm1760, %v2045, %v2029
      %v2047 = vsel %vm1762, %v2046, %v2032
      %v2048 = vsel %vm1764, %v2047, %v2036
      %v2049 = vsel %vm1766, %v2048, %v2039
      %v2050 = vsel %vm1768, %v2049, %v2042
      %2051 = vrot.lane.b32.xlu0 %v1673, 16
      %v2052 = vpop.permute.xlu0 %2051
      %2055 = vrot.lane.b32.xlu0 %v1674, 32
      %v2056 = vpop.permute.xlu0 %2055
      %2058 = vrot.lane.b32.xlu0 %v1676, 48
      %v2059 = vpop.permute.xlu0 %2058
      %2061 = vrot.lane.b32.xlu0 %v1677, 64
      %v2062 = vpop.permute.xlu0 %2061
      %2065 = vrot.lane.b32.xlu0 %v1678, 80
      %v2066 = vpop.permute.xlu0 %2065
      %2068 = vrot.lane.b32.xlu0 %v1680, 96
      %v2069 = vpop.permute.xlu0 %2068
      %2071 = vrot.lane.b32.xlu0 %v1681, 112
      %v2072 = vpop.permute.xlu0 %2071
      %v2074 = vsel %vm1539, %v1672, %v2052
      %v2075 = vsel %vm1758, %v2074, %v2056
      %v2076 = vsel %vm1760, %v2075, %v2059
      %v2077 = vsel %vm1762, %v2076, %v2062
      %v2078 = vsel %vm1764, %v2077, %v2066
      %v2079 = vsel %vm1766, %v2078, %v2069
      %v2080 = vsel %vm1768, %v2079, %v2072
      %2081 = vrot.lane.b32.xlu0 %v1681, 16
      %v2082 = vpop.permute.xlu0 %2081
      %2085 = vrot.lane.b32.xlu0 %v1682, 32
      %v2086 = vpop.permute.xlu0 %2085
      %2088 = vrot.lane.b32.xlu0 %v1684, 48
      %v2089 = vpop.permute.xlu0 %2088
      %2091 = vrot.lane.b32.xlu0 %v1685, 64
      %v2092 = vpop.permute.xlu0 %2091
      %2095 = vrot.lane.b32.xlu0 %v1686, 80
      %v2096 = vpop.permute.xlu0 %2095
      %2098 = vrot.lane.b32.xlu0 %v1688, 96
      %v2099 = vpop.permute.xlu0 %2098
      %2101 = vrot.lane.b32.xlu0 %v1689, 112
      %v2102 = vpop.permute.xlu0 %2101
      %v2104 = vsel %vm1539, %v1680, %v2082
      %v2105 = vsel %vm1758, %v2104, %v2086
      %v2106 = vsel %vm1760, %v2105, %v2089
      %v2107 = vsel %vm1762, %v2106, %v2092
      %v2108 = vsel %vm1764, %v2107, %v2096
      %v2109 = vsel %vm1766, %v2108, %v2099
      %v2110 = vsel %vm1768, %v2109, %v2102
      %2111 = vrot.lane.b32.xlu0 %v1689, 16
      %v2112 = vpop.permute.xlu0 %2111
      %2115 = vrot.lane.b32.xlu0 %v1690, 32
      %v2116 = vpop.permute.xlu0 %2115
      %2118 = vrot.lane.b32.xlu0 %v1692, 48
      %v2119 = vpop.permute.xlu0 %2118
      %2121 = vrot.lane.b32.xlu0 %v1693, 64
      %v2122 = vpop.permute.xlu0 %2121
      %2125 = vrot.lane.b32.xlu0 %v1694, 80
      %v2126 = vpop.permute.xlu0 %2125
      %2128 = vrot.lane.b32.xlu0 %v1696, 96
      %v2129 = vpop.permute.xlu0 %2128
      %2131 = vrot.lane.b32.xlu0 %v1697, 112
      %v2132 = vpop.permute.xlu0 %2131
      %v2134 = vsel %vm1539, %v1688, %v2112
      %v2135 = vsel %vm1758, %v2134, %v2116
      %v2136 = vsel %vm1760, %v2135, %v2119
      %v2137 = vsel %vm1762, %v2136, %v2122
      %v2138 = vsel %vm1764, %v2137, %v2126
      %v2139 = vsel %vm1766, %v2138, %v2129
      %v2140 = vsel %vm1768, %v2139, %v2132
      %2141 = vrot.lane.b32.xlu0 %v1697, 16
      %v2142 = vpop.permute.xlu0 %2141
      %2145 = vrot.lane.b32.xlu0 %v1698, 32
      %v2146 = vpop.permute.xlu0 %2145
      %2148 = vrot.lane.b32.xlu0 %v1700, 48
      %v2149 = vpop.permute.xlu0 %2148
      %2151 = vrot.lane.b32.xlu0 %v1701, 64
      %v2152 = vpop.permute.xlu0 %2151
      %2155 = vrot.lane.b32.xlu0 %v1702, 80
      %v2156 = vpop.permute.xlu0 %2155
      %2158 = vrot.lane.b32.xlu0 %v1704, 96
      %v2159 = vpop.permute.xlu0 %2158
      %2161 = vrot.lane.b32.xlu0 %v1705, 112
      %v2162 = vpop.permute.xlu0 %2161
      %v2164 = vsel %vm1539, %v1696, %v2142
      %v2165 = vsel %vm1758, %v2164, %v2146
      %v2166 = vsel %vm1760, %v2165, %v2149
      %v2167 = vsel %vm1762, %v2166, %v2152
      %v2168 = vsel %vm1764, %v2167, %v2156
      %v2169 = vsel %vm1766, %v2168, %v2159
      %v2170 = vsel %vm1768, %v2169, %v2162
      %2171 = vrot.lane.b32.xlu0 %v1705, 16
      %v2172 = vpop.permute.xlu0 %2171
      %2175 = vrot.lane.b32.xlu0 %v1706, 32
      %v2176 = vpop.permute.xlu0 %2175
      %2178 = vrot.lane.b32.xlu0 %v1708, 48
      %v2179 = vpop.permute.xlu0 %2178
      %2181 = vrot.lane.b32.xlu0 %v1709, 64
      %v2182 = vpop.permute.xlu0 %2181
      %2185 = vrot.lane.b32.xlu0 %v1710, 80
      %v2186 = vpop.permute.xlu0 %2185
      %2188 = vrot.lane.b32.xlu0 %v1712, 96
      %v2189 = vpop.permute.xlu0 %2188
      %2191 = vrot.lane.b32.xlu0 %v1713, 112
      %v2192 = vpop.permute.xlu0 %2191
      %v2194 = vsel %vm1539, %v1704, %v2172
      %v2195 = vsel %vm1758, %v2194, %v2176
      %v2196 = vsel %vm1760, %v2195, %v2179
      %v2197 = vsel %vm1762, %v2196, %v2182
      %v2198 = vsel %vm1764, %v2197, %v2186
      %v2199 = vsel %vm1766, %v2198, %v2189
      %v2200 = vsel %vm1768, %v2199, %v2192
      %2201 = vrot.lane.b32.xlu0 %v1713, 16
      %v2202 = vpop.permute.xlu0 %2201
      %2205 = vrot.lane.b32.xlu0 %v1714, 32
      %v2206 = vpop.permute.xlu0 %2205
      %2208 = vrot.lane.b32.xlu0 %v1716, 48
      %v2209 = vpop.permute.xlu0 %2208
      %2211 = vrot.lane.b32.xlu0 %v1717, 64
      %v2212 = vpop.permute.xlu0 %2211
      %2215 = vrot.lane.b32.xlu0 %v1718, 80
      %v2216 = vpop.permute.xlu0 %2215
      %2218 = vrot.lane.b32.xlu0 %v1720, 96
      %v2219 = vpop.permute.xlu0 %2218
      %2221 = vrot.lane.b32.xlu0 %v1721, 112
      %v2222 = vpop.permute.xlu0 %2221
      %v2224 = vsel %vm1539, %v1712, %v2202
      %v2225 = vsel %vm1758, %v2224, %v2206
      %v2226 = vsel %vm1760, %v2225, %v2209
      %v2227 = vsel %vm1762, %v2226, %v2212
      %v2228 = vsel %vm1764, %v2227, %v2216
      %v2229 = vsel %vm1766, %v2228, %v2219
      %v2230 = vsel %vm1768, %v2229, %v2222
      %v2232 = vrot.slane %v2080, 1
      %v2233 = vrot.slane %v1682, 1
      %v2237 = vrot.slane %v2110, 2
      %v2238 = vrot.slane %v1690, 2
      %v2242 = vrot.slane %v2140, 3
      %v2243 = vrot.slane %v1698, 3
      %v2247 = vrot.slane %v2170, 4
      %v2248 = vrot.slane %v1706, 4
      %v2252 = vrot.slane %v2200, 5
      %v2253 = vrot.slane %v1714, 5
      %v2258 = vrot.slane %v2230, 6
      %v2259 = vrot.slane %v1722, 6
      %v2262 = vsel %vm2005, %v2050, %v2232
      %v2263 = vsel %vm2005, %v1674, %v2233
      %v2264 = vsel %vm2008, %v2232, %v2237
      %v2265 = vsel %vm2008, %v2233, %v2238
      %v2266 = vsel %vm732, %v2237, %v2242
      %v2267 = vsel %vm732, %v2238, %v2243
      %v2268 = vsel %vm731, %v2242, %v2247
      %v2269 = vsel %vm731, %v2243, %v2248
      %v2270 = vsel %vm2015, %v2247, %v2252
      %v2271 = vsel %vm2015, %v2248, %v2253
      %v2272 = vsel %vm2018, %v2252, %v2258
      %v2273 = vsel %vm2018, %v2253, %v2259
      %2274 = vrot.lane.b32.xlu0 %v1668, 16
      %v2275 = vpop.permute.xlu0 %2274
      %2277 = vrot.lane.b32.xlu0 %v1669, 32
      %v2278 = vpop.permute.xlu0 %2277
      %2280 = vrot.lane.b32.xlu0 %v1671, 48
      %v2281 = vpop.permute.xlu0 %2280
      %2283 = vrot.lane.b32.xlu0 %v1672, 64
      %v2284 = vpop.permute.xlu0 %2283
      %2286 = vrot.lane.b32.xlu0 %v1673, 80
      %v2287 = vpop.permute.xlu0 %2286
      %2289 = vrot.lane.b32.xlu0 %v1675, 96
      %v2290 = vpop.permute.xlu0 %2289
      %2292 = vrot.lane.b32.xlu0 %v1676, 112
      %v2293 = vpop.permute.xlu0 %2292
      %v2295 = vsel %vm1539, %v1667, %v2275
      %v2296 = vsel %vm1758, %v2295, %v2278
      %v2297 = vsel %vm1760, %v2296, %v2281
      %v2298 = vsel %vm1762, %v2297, %v2284
      %v2299 = vsel %vm1764, %v2298, %v2287
      %v2300 = vsel %vm1766, %v2299, %v2290
      %v2301 = vsel %vm1768, %v2300, %v2293
      %2302 = vrot.lane.b32.xlu0 %v1676, 16
      %v2303 = vpop.permute.xlu0 %2302
      %2305 = vrot.lane.b32.xlu0 %v1677, 32
      %v2306 = vpop.permute.xlu0 %2305
      %2308 = vrot.lane.b32.xlu0 %v1679, 48
      %v2309 = vpop.permute.xlu0 %2308
      %2311 = vrot.lane.b32.xlu0 %v1680, 64
      %v2312 = vpop.permute.xlu0 %2311
      %2314 = vrot.lane.b32.xlu0 %v1681, 80
      %v2315 = vpop.permute.xlu0 %2314
      %2317 = vrot.lane.b32.xlu0 %v1683, 96
      %v2318 = vpop.permute.xlu0 %2317
      %2320 = vrot.lane.b32.xlu0 %v1684, 112
      %v2321 = vpop.permute.xlu0 %2320
      %v2323 = vsel %vm1539, %v1675, %v2303
      %v2324 = vsel %vm1758, %v2323, %v2306
      %v2325 = vsel %vm1760, %v2324, %v2309
      %v2326 = vsel %vm1762, %v2325, %v2312
      %v2327 = vsel %vm1764, %v2326, %v2315
      %v2328 = vsel %vm1766, %v2327, %v2318
      %v2329 = vsel %vm1768, %v2328, %v2321
      %2330 = vrot.lane.b32.xlu0 %v1684, 16
      %v2331 = vpop.permute.xlu0 %2330
      %2333 = vrot.lane.b32.xlu0 %v1685, 32
      %v2334 = vpop.permute.xlu0 %2333
      %2336 = vrot.lane.b32.xlu0 %v1687, 48
      %v2337 = vpop.permute.xlu0 %2336
      %2339 = vrot.lane.b32.xlu0 %v1688, 64
      %v2340 = vpop.permute.xlu0 %2339
      %2342 = vrot.lane.b32.xlu0 %v1689, 80
      %v2343 = vpop.permute.xlu0 %2342
      %2345 = vrot.lane.b32.xlu0 %v1691, 96
      %v2346 = vpop.permute.xlu0 %2345
      %2348 = vrot.lane.b32.xlu0 %v1692, 112
      %v2349 = vpop.permute.xlu0 %2348
      %v2351 = vsel %vm1539, %v1683, %v2331
      %v2352 = vsel %vm1758, %v2351, %v2334
      %v2353 = vsel %vm1760, %v2352, %v2337
      %v2354 = vsel %vm1762, %v2353, %v2340
      %v2355 = vsel %vm1764, %v2354, %v2343
      %v2356 = vsel %vm1766, %v2355, %v2346
      %v2357 = vsel %vm1768, %v2356, %v2349
      %2358 = vrot.lane.b32.xlu0 %v1692, 16
      %v2359 = vpop.permute.xlu0 %2358
      %2361 = vrot.lane.b32.xlu0 %v1693, 32
      %v2362 = vpop.permute.xlu0 %2361
      %2364 = vrot.lane.b32.xlu0 %v1695, 48
      %v2365 = vpop.permute.xlu0 %2364
      %2367 = vrot.lane.b32.xlu0 %v1696, 64
      %v2368 = vpop.permute.xlu0 %2367
      %2370 = vrot.lane.b32.xlu0 %v1697, 80
      %v2371 = vpop.permute.xlu0 %2370
      %2373 = vrot.lane.b32.xlu0 %v1699, 96
      %v2374 = vpop.permute.xlu0 %2373
      %2376 = vrot.lane.b32.xlu0 %v1700, 112
      %v2377 = vpop.permute.xlu0 %2376
      %v2379 = vsel %vm1539, %v1691, %v2359
      %v2380 = vsel %vm1758, %v2379, %v2362
      %v2381 = vsel %vm1760, %v2380, %v2365
      %v2382 = vsel %vm1762, %v2381, %v2368
      %v2383 = vsel %vm1764, %v2382, %v2371
      %v2384 = vsel %vm1766, %v2383, %v2374
      %v2385 = vsel %vm1768, %v2384, %v2377
      %2386 = vrot.lane.b32.xlu0 %v1700, 16
      %v2387 = vpop.permute.xlu0 %2386
      %2389 = vrot.lane.b32.xlu0 %v1701, 32
      %v2390 = vpop.permute.xlu0 %2389
      %2392 = vrot.lane.b32.xlu0 %v1703, 48
      %v2393 = vpop.permute.xlu0 %2392
      %2395 = vrot.lane.b32.xlu0 %v1704, 64
      %v2396 = vpop.permute.xlu0 %2395
      %2398 = vrot.lane.b32.xlu0 %v1705, 80
      %v2399 = vpop.permute.xlu0 %2398
      %2401 = vrot.lane.b32.xlu0 %v1707, 96
      %v2402 = vpop.permute.xlu0 %2401
      %2404 = vrot.lane.b32.xlu0 %v1708, 112
      %v2405 = vpop.permute.xlu0 %2404
      %v2407 = vsel %vm1539, %v1699, %v2387
      %v2408 = vsel %vm1758, %v2407, %v2390
      %v2409 = vsel %vm1760, %v2408, %v2393
      %v2410 = vsel %vm1762, %v2409, %v2396
      %v2411 = vsel %vm1764, %v2410, %v2399
      %v2412 = vsel %vm1766, %v2411, %v2402
      %v2413 = vsel %vm1768, %v2412, %v2405
      %2414 = vrot.lane.b32.xlu0 %v1708, 16
      %v2415 = vpop.permute.xlu0 %2414
      %2417 = vrot.lane.b32.xlu0 %v1709, 32
      %v2418 = vpop.permute.xlu0 %2417
      %2420 = vrot.lane.b32.xlu0 %v1711, 48
      %v2421 = vpop.permute.xlu0 %2420
      %2423 = vrot.lane.b32.xlu0 %v1712, 64
      %v2424 = vpop.permute.xlu0 %2423
      %2426 = vrot.lane.b32.xlu0 %v1713, 80
      %v2427 = vpop.permute.xlu0 %2426
      %2429 = vrot.lane.b32.xlu0 %v1715, 96
      %v2430 = vpop.permute.xlu0 %2429
      %2432 = vrot.lane.b32.xlu0 %v1716, 112
      %v2433 = vpop.permute.xlu0 %2432
      %v2435 = vsel %vm1539, %v1707, %v2415
      %v2436 = vsel %vm1758, %v2435, %v2418
      %v2437 = vsel %vm1760, %v2436, %v2421
      %v2438 = vsel %vm1762, %v2437, %v2424
      %v2439 = vsel %vm1764, %v2438, %v2427
      %v2440 = vsel %vm1766, %v2439, %v2430
      %v2441 = vsel %vm1768, %v2440, %v2433
      %2442 = vrot.lane.b32.xlu0 %v1716, 16
      %v2443 = vpop.permute.xlu0 %2442
      %2445 = vrot.lane.b32.xlu0 %v1717, 32
      %v2446 = vpop.permute.xlu0 %2445
      %2448 = vrot.lane.b32.xlu0 %v1719, 48
      %v2449 = vpop.permute.xlu0 %2448
      %2451 = vrot.lane.b32.xlu0 %v1720, 64
      %v2452 = vpop.permute.xlu0 %2451
      %2454 = vrot.lane.b32.xlu0 %v1721, 80
      %v2455 = vpop.permute.xlu0 %2454
      %2458 = vrot.lane.b32.xlu0 %v1724, 96
      %v2459 = vpop.permute.xlu0 %2458
      %2462 = vrot.lane.b32.xlu0 %v1726, 112
      %v2463 = vpop.permute.xlu0 %2462
      %v2465 = vsel %vm1539, %v1715, %v2443
      %v2466 = vsel %vm1758, %v2465, %v2446
      %v2467 = vsel %vm1760, %v2466, %v2449
      %v2468 = vsel %vm1762, %v2467, %v2452
      %v2469 = vsel %vm1764, %v2468, %v2455
      %v2470 = vsel %vm1766, %v2469, %v2459
      %v2471 = vsel %vm1768, %v2470, %v2463
      %v2473 = vrot.slane %v2329, 1
      %v2474 = vrot.slane %v1685, 1
      %v2478 = vrot.slane %v2357, 2
      %v2479 = vrot.slane %v1693, 2
      %v2483 = vrot.slane %v2385, 3
      %v2484 = vrot.slane %v1701, 3
      %v2488 = vrot.slane %v2413, 4
      %v2489 = vrot.slane %v1709, 4
      %v2493 = vrot.slane %v2441, 5
      %v2494 = vrot.slane %v1717, 5
      %v2499 = vrot.slane %v2471, 6
      %v2500 = vrot.slane %v1727, 6
      %v2503 = vsel %vm2005, %v2301, %v2473
      %v2504 = vsel %vm2005, %v1677, %v2474
      %v2505 = vsel %vm2008, %v2473, %v2478
      %v2506 = vsel %vm2008, %v2474, %v2479
      %v2507 = vsel %vm732, %v2478, %v2483
      %v2508 = vsel %vm732, %v2479, %v2484
      %v2509 = vsel %vm731, %v2483, %v2488
      %v2510 = vsel %vm731, %v2484, %v2489
      %v2511 = vsel %vm2015, %v2488, %v2493
      %v2512 = vsel %vm2015, %v2489, %v2494
      %v2513 = vsel %vm2018, %v2493, %v2499
      %v2514 = vsel %vm2018, %v2494, %v2500
      %2515 = vrot.lane.b32.xlu0 %v1669, 16
      %v2516 = vpop.permute.xlu0 %2515
      %2518 = vrot.lane.b32.xlu0 %v1670, 32
      %v2519 = vpop.permute.xlu0 %2518
      %2521 = vrot.lane.b32.xlu0 %v1672, 48
      %v2522 = vpop.permute.xlu0 %2521
      %2524 = vrot.lane.b32.xlu0 %v1673, 64
      %v2525 = vpop.permute.xlu0 %2524
      %2527 = vrot.lane.b32.xlu0 %v1674, 80
      %v2528 = vpop.permute.xlu0 %2527
      %2530 = vrot.lane.b32.xlu0 %v1676, 96
      %v2531 = vpop.permute.xlu0 %2530
      %2533 = vrot.lane.b32.xlu0 %v1677, 112
      %v2534 = vpop.permute.xlu0 %2533
      %v2536 = vsel %vm1539, %v1668, %v2516
      %v2537 = vsel %vm1758, %v2536, %v2519
      %v2538 = vsel %vm1760, %v2537, %v2522
      %v2539 = vsel %vm1762, %v2538, %v2525
      %v2540 = vsel %vm1764, %v2539, %v2528
      %v2541 = vsel %vm1766, %v2540, %v2531
      %v2542 = vsel %vm1768, %v2541, %v2534
      %2543 = vrot.lane.b32.xlu0 %v1677, 16
      %v2544 = vpop.permute.xlu0 %2543
      %2546 = vrot.lane.b32.xlu0 %v1678, 32
      %v2547 = vpop.permute.xlu0 %2546
      %2549 = vrot.lane.b32.xlu0 %v1680, 48
      %v2550 = vpop.permute.xlu0 %2549
      %2552 = vrot.lane.b32.xlu0 %v1681, 64
      %v2553 = vpop.permute.xlu0 %2552
      %2555 = vrot.lane.b32.xlu0 %v1682, 80
      %v2556 = vpop.permute.xlu0 %2555
      %2558 = vrot.lane.b32.xlu0 %v1684, 96
      %v2559 = vpop.permute.xlu0 %2558
      %2561 = vrot.lane.b32.xlu0 %v1685, 112
      %v2562 = vpop.permute.xlu0 %2561
      %v2564 = vsel %vm1539, %v1676, %v2544
      %v2565 = vsel %vm1758, %v2564, %v2547
      %v2566 = vsel %vm1760, %v2565, %v2550
      %v2567 = vsel %vm1762, %v2566, %v2553
      %v2568 = vsel %vm1764, %v2567, %v2556
      %v2569 = vsel %vm1766, %v2568, %v2559
      %v2570 = vsel %vm1768, %v2569, %v2562
      %2571 = vrot.lane.b32.xlu0 %v1685, 16
      %v2572 = vpop.permute.xlu0 %2571
      %2574 = vrot.lane.b32.xlu0 %v1686, 32
      %v2575 = vpop.permute.xlu0 %2574
      %2577 = vrot.lane.b32.xlu0 %v1688, 48
      %v2578 = vpop.permute.xlu0 %2577
      %2580 = vrot.lane.b32.xlu0 %v1689, 64
      %v2581 = vpop.permute.xlu0 %2580
      %2583 = vrot.lane.b32.xlu0 %v1690, 80
      %v2584 = vpop.permute.xlu0 %2583
      %2586 = vrot.lane.b32.xlu0 %v1692, 96
      %v2587 = vpop.permute.xlu0 %2586
      %2589 = vrot.lane.b32.xlu0 %v1693, 112
      %v2590 = vpop.permute.xlu0 %2589
      %v2592 = vsel %vm1539, %v1684, %v2572
      %v2593 = vsel %vm1758, %v2592, %v2575
      %v2594 = vsel %vm1760, %v2593, %v2578
      %v2595 = vsel %vm1762, %v2594, %v2581
      %v2596 = vsel %vm1764, %v2595, %v2584
      %v2597 = vsel %vm1766, %v2596, %v2587
      %v2598 = vsel %vm1768, %v2597, %v2590
      %2599 = vrot.lane.b32.xlu0 %v1693, 16
      %v2600 = vpop.permute.xlu0 %2599
      %2602 = vrot.lane.b32.xlu0 %v1694, 32
      %v2603 = vpop.permute.xlu0 %2602
      %2605 = vrot.lane.b32.xlu0 %v1696, 48
      %v2606 = vpop.permute.xlu0 %2605
      %2608 = vrot.lane.b32.xlu0 %v1697, 64
      %v2609 = vpop.permute.xlu0 %2608
      %2611 = vrot.lane.b32.xlu0 %v1698, 80
      %v2612 = vpop.permute.xlu0 %2611
      %2614 = vrot.lane.b32.xlu0 %v1700, 96
      %v2615 = vpop.permute.xlu0 %2614
      %2617 = vrot.lane.b32.xlu0 %v1701, 112
      %v2618 = vpop.permute.xlu0 %2617
      %v2620 = vsel %vm1539, %v1692, %v2600
      %v2621 = vsel %vm1758, %v2620, %v2603
      %v2622 = vsel %vm1760, %v2621, %v2606
      %v2623 = vsel %vm1762, %v2622, %v2609
      %v2624 = vsel %vm1764, %v2623, %v2612
      %v2625 = vsel %vm1766, %v2624, %v2615
      %v2626 = vsel %vm1768, %v2625, %v2618
      %2627 = vrot.lane.b32.xlu0 %v1701, 16
      %v2628 = vpop.permute.xlu0 %2627
      %2630 = vrot.lane.b32.xlu0 %v1702, 32
      %v2631 = vpop.permute.xlu0 %2630
      %2633 = vrot.lane.b32.xlu0 %v1704, 48
      %v2634 = vpop.permute.xlu0 %2633
      %2636 = vrot.lane.b32.xlu0 %v1705, 64
      %v2637 = vpop.permute.xlu0 %2636
      %2639 = vrot.lane.b32.xlu0 %v1706, 80
      %v2640 = vpop.permute.xlu0 %2639
      %2642 = vrot.lane.b32.xlu0 %v1708, 96
      %v2643 = vpop.permute.xlu0 %2642
      %2645 = vrot.lane.b32.xlu0 %v1709, 112
      %v2646 = vpop.permute.xlu0 %2645
      %v2648 = vsel %vm1539, %v1700, %v2628
      %v2649 = vsel %vm1758, %v2648, %v2631
      %v2650 = vsel %vm1760, %v2649, %v2634
      %v2651 = vsel %vm1762, %v2650, %v2637
      %v2652 = vsel %vm1764, %v2651, %v2640
      %v2653 = vsel %vm1766, %v2652, %v2643
      %v2654 = vsel %vm1768, %v2653, %v2646
      %2655 = vrot.lane.b32.xlu0 %v1709, 16
      %v2656 = vpop.permute.xlu0 %2655
      %2658 = vrot.lane.b32.xlu0 %v1710, 32
      %v2659 = vpop.permute.xlu0 %2658
      %2661 = vrot.lane.b32.xlu0 %v1712, 48
      %v2662 = vpop.permute.xlu0 %2661
      %2664 = vrot.lane.b32.xlu0 %v1713, 64
      %v2665 = vpop.permute.xlu0 %2664
      %2667 = vrot.lane.b32.xlu0 %v1714, 80
      %v2668 = vpop.permute.xlu0 %2667
      %2670 = vrot.lane.b32.xlu0 %v1716, 96
      %v2671 = vpop.permute.xlu0 %2670
      %2673 = vrot.lane.b32.xlu0 %v1717, 112
      %v2674 = vpop.permute.xlu0 %2673
      %v2676 = vsel %vm1539, %v1708, %v2656
      %v2677 = vsel %vm1758, %v2676, %v2659
      %v2678 = vsel %vm1760, %v2677, %v2662
      %v2679 = vsel %vm1762, %v2678, %v2665
      %v2680 = vsel %vm1764, %v2679, %v2668
      %v2681 = vsel %vm1766, %v2680, %v2671
      %v2682 = vsel %vm1768, %v2681, %v2674
      %2683 = vrot.lane.b32.xlu0 %v1717, 16
      %v2684 = vpop.permute.xlu0 %2683
      %2686 = vrot.lane.b32.xlu0 %v1718, 32
      %v2687 = vpop.permute.xlu0 %2686
      %2689 = vrot.lane.b32.xlu0 %v1720, 48
      %v2690 = vpop.permute.xlu0 %2689
      %2692 = vrot.lane.b32.xlu0 %v1721, 64
      %v2693 = vpop.permute.xlu0 %2692
      %2695 = vrot.lane.b32.xlu0 %v1722, 80
      %v2696 = vpop.permute.xlu0 %2695
      %2698 = vrot.lane.b32.xlu0 %v1726, 96
      %v2699 = vpop.permute.xlu0 %2698
      %2701 = vrot.lane.b32.xlu0 %v1727, 112
      %v2702 = vpop.permute.xlu0 %2701
      %v2704 = vsel %vm1539, %v1716, %v2684
      %v2705 = vsel %vm1758, %v2704, %v2687
      %v2706 = vsel %vm1760, %v2705, %v2690
      %v2707 = vsel %vm1762, %v2706, %v2693
      %v2708 = vsel %vm1764, %v2707, %v2696
      %v2709 = vsel %vm1766, %v2708, %v2699
      %v2710 = vsel %vm1768, %v2709, %v2702
      %v2712 = vrot.slane %v2570, 1
      %v2713 = vrot.slane %v1686, 1
      %v2717 = vrot.slane %v2598, 2
      %v2718 = vrot.slane %v1694, 2
      %v2722 = vrot.slane %v2626, 3
      %v2723 = vrot.slane %v1702, 3
      %v2727 = vrot.slane %v2654, 4
      %v2728 = vrot.slane %v1710, 4
      %v2732 = vrot.slane %v2682, 5
      %v2733 = vrot.slane %v1718, 5
      %v2738 = vrot.slane %v2710, 6
      %v2739 = vrot.slane %v1728, 6
      %v2742 = vsel %vm2005, %v2542, %v2712
      %v2743 = vsel %vm2005, %v1678, %v2713
      %v2744 = vsel %vm2008, %v2712, %v2717
      %v2745 = vsel %vm2008, %v2713, %v2718
      %v2746 = vsel %vm732, %v2717, %v2722
      %v2747 = vsel %vm732, %v2718, %v2723
      %v2748 = vsel %vm731, %v2722, %v2727
      %v2749 = vsel %vm731, %v2723, %v2728
      %v2750 = vsel %vm2015, %v2727, %v2732
      %v2751 = vsel %vm2015, %v2728, %v2733
      %v2752 = vsel %vm2018, %v2732, %v2738
      %v2753 = vsel %vm2018, %v2733, %v2739
      %vm2766 = vcmask 1040384
      %v2767 = vrot.slane %v2262, 7
      %v2768 = vrot.slane %v2263, 7
      %v2769 = vrot.slane %v2264, 7
      %v2770 = vsel %vm2766, %v2767, %v2769
      %v2771 = vrot.slane %v2265, 7
      %v2772 = vsel %vm2766, %v2768, %v2771
      %v2773 = vrot.slane %v2266, 7
      %v2774 = vsel %vm2766, %v2769, %v2773
      %v2775 = vrot.slane %v2267, 7
      %v2776 = vsel %vm2766, %v2771, %v2775
      %v2777 = vrot.slane %v2268, 7
      %v2778 = vsel %vm2766, %v2773, %v2777
      %v2779 = vrot.slane %v2269, 7
      %v2780 = vsel %vm2766, %v2775, %v2779
      %v2781 = vrot.slane %v2270, 7
      %v2782 = vsel %vm2766, %v2777, %v2781
      %v2783 = vrot.slane %v2271, 7
      %v2784 = vsel %vm2766, %v2779, %v2783
      %v2785 = vrot.slane %v2272, 7
      %v2786 = vsel %vm2766, %v2781, %v2785
      %v2787 = vrot.slane %v2273, 7
      %v2788 = vsel %vm2766, %v2783, %v2787
      %v2789 = vrot.slane %v2258, 7
      %v2790 = vsel %vm2766, %v2785, %v2789
      %v2791 = vrot.slane %v2259, 7
      %v2792 = vsel %vm2766, %v2787, %v2791
      %v2819 = vrot.slane %v2503, 6
      %v2820 = vrot.slane %v2504, 6
      %v2821 = vrot.slane %v2505, 6
      %v2822 = vsel %vm2018, %v2819, %v2821
      %v2823 = vrot.slane %v2506, 6
      %v2824 = vsel %vm2018, %v2820, %v2823
      %v2825 = vrot.slane %v2507, 6
      %v2826 = vsel %vm2018, %v2821, %v2825
      %v2827 = vrot.slane %v2508, 6
      %v2828 = vsel %vm2018, %v2823, %v2827
      %v2829 = vrot.slane %v2509, 6
      %v2830 = vsel %vm2018, %v2825, %v2829
      %v2831 = vrot.slane %v2510, 6
      %v2832 = vsel %vm2018, %v2827, %v2831
      %v2833 = vrot.slane %v2511, 6
      %v2834 = vsel %vm2018, %v2829, %v2833
      %v2835 = vrot.slane %v2512, 6
      %v2836 = vsel %vm2018, %v2831, %v2835
      %v2837 = vrot.slane %v2513, 6
      %v2838 = vsel %vm2018, %v2833, %v2837
      %v2839 = vrot.slane %v2514, 6
      %v2840 = vsel %vm2018, %v2835, %v2839
      %v2841 = vrot.slane %v2499, 6
      %v2842 = vsel %vm2018, %v2837, %v2841
      %v2843 = vrot.slane %v2500, 6
      %v2844 = vsel %vm2018, %v2839, %v2843
      %v2871 = vrot.slane %v2742, 5
      %v2872 = vrot.slane %v2743, 5
      %v2873 = vrot.slane %v2744, 5
      %v2874 = vsel %vm2015, %v2871, %v2873
      %v2875 = vrot.slane %v2745, 5
      %v2876 = vsel %vm2015, %v2872, %v2875
      %v2877 = vrot.slane %v2746, 5
      %v2878 = vsel %vm2015, %v2873, %v2877
      %v2879 = vrot.slane %v2747, 5
      %v2880 = vsel %vm2015, %v2875, %v2879
      %v2881 = vrot.slane %v2748, 5
      %v2882 = vsel %vm2015, %v2877, %v2881
      %v2883 = vrot.slane %v2749, 5
      %v2884 = vsel %vm2015, %v2879, %v2883
      %v2885 = vrot.slane %v2750, 5
      %v2886 = vsel %vm2015, %v2881, %v2885
      %v2887 = vrot.slane %v2751, 5
      %v2888 = vsel %vm2015, %v2883, %v2887
      %v2889 = vrot.slane %v2752, 5
      %v2890 = vsel %vm2015, %v2885, %v2889
      %v2891 = vrot.slane %v2753, 5
      %v2892 = vsel %vm2015, %v2887, %v2891
      %v2893 = vrot.slane %v2738, 5
      %v2894 = vsel %vm2015, %v2889, %v2893
      %v2895 = vrot.slane %v2739, 5
      %v2896 = vsel %vm2015, %v2891, %v2895
      %v2911 = vsel %vm2766, %v2001, %v2767
      %v2912 = vsel %vm2766, %v2002, %v2768
      %v2913 = vsel %vm2018, %v2790, %v2819
      %v2914 = vsel %vm2018, %v2792, %v2820
      %v2915 = vsel %vm2015, %v2842, %v2871
      %v2916 = vsel %vm2015, %v2844, %v2872
      %v2917 = vpack.c.bf16 %v2009, %v2006
      %v2918 = vpack.c.bf16 %v2010, %v2007
      %v2919 = vpack.c.bf16 %v2013, %v2011
      %v2920 = vpack.c.bf16 %v2014, %v2012
      %v2921 = vpack.c.bf16 %v2019, %v2016
      %v2922 = vpack.c.bf16 %v2020, %v2017
      %v2923 = vpack.c.bf16 %v2770, %v2911
      %v2924 = vpack.c.bf16 %v2772, %v2912
      %v2925 = vpack.c.bf16 %v2778, %v2774
      %v2926 = vpack.c.bf16 %v2780, %v2776
      %v2927 = vpack.c.bf16 %v2786, %v2782
      %v2928 = vpack.c.bf16 %v2788, %v2784
      %v2929 = vpack.c.bf16 %v2822, %v2913
      %v2930 = vpack.c.bf16 %v2824, %v2914
      %v2931 = vpack.c.bf16 %v2830, %v2826
      %v2932 = vpack.c.bf16 %v2832, %v2828
      %v2933 = vpack.c.bf16 %v2838, %v2834
      %v2934 = vpack.c.bf16 %v2840, %v2836
      %v2935 = vpack.c.bf16 %v2874, %v2915
      %v2936 = vpack.c.bf16 %v2876, %v2916
      %v2937 = vpack.c.bf16 %v2882, %v2878
      %v2938 = vpack.c.bf16 %v2884, %v2880
      %v2939 = vpack.c.bf16 %v2890, %v2886
      %v2940 = vpack.c.bf16 %v2892, %v2888
      %v2941 = vpack.c.bf16 %v2894, %v2894
      %v2942 = vpack.c.bf16 %v2896, %v2896
      %v2943 = vld [vmem:[%s3] sm:$0xf]
      %v2944 = vld [vmem:[%s3 + $0x4] sm:$0xf]
      %v2945 = vld [vmem:[%s3 + $0x8] sm:$0xf]
      %v2946 = vld [vmem:[%s3 + $0xc] sm:$0xf]
      %v2947 = vld [vmem:[%s3 + $0x10] sm:$0xf]
      %v2948 = vld [vmem:[%s3 + $0x14] sm:$0xf]
      %v2949 = vld [vmem:[%s3 + $0x18] sm:$0xf]
      %v2950 = vld [vmem:[%s3 + $0x1c] sm:$0xf]
      %v2951 = vld [vmem:[%s3 + $0x20] sm:$0xf]
      %v2952 = vld [vmem:[%s3 + $0x24] sm:$0xf]
      %v2953 = vld [vmem:[%s3 + $0x28] sm:$0xf]
      %v2954 = vld [vmem:[%s3 + $0x2c] sm:$0xf]
      %v2955 = vld [vmem:[%s3 + $0x30] sm:$0xf]
      %v2956 = vld [vmem:[%s3 + $0x34] sm:$0xf]
      %v2957 = vld [vmem:[%s3 + $0x38] sm:$0xf]
      %v2958 = vld [vmem:[%s3 + $0x3c] sm:$0xf]
      %v2959 = vld [vmem:[%s3 + $0x40] sm:$0xf]
      %v2960 = vld [vmem:[%s3 + $0x44] sm:$0xf]
      %v2961 = vld [vmem:[%s4] sm:$0x1]
      %v2963 = vlaneseq
      %v2964 = vshrl.u32 %v2963, 7
      %v2965 = vsub.s32 0, %v2964
      %v2966 = vrot.slane %v2961, %v2965
      %v2986 = vunpack.c.l.b16 %v2943
      %v2987 = vunpack.c.l.b16 %v2944
      %v2988 = vunpack.c.l.b16 %v2945
      %v2989 = vunpack.c.l.b16 %v2946
      %v2990 = vunpack.c.l.b16 %v2947
      %v2991 = vunpack.c.l.b16 %v2948
      %v2992 = vunpack.c.l.b16 %v2949
      %v2993 = vunpack.c.l.b16 %v2950
      %v2994 = vunpack.c.l.b16 %v2951
      %v2995 = vunpack.c.l.b16 %v2952
      %v2996 = vunpack.c.l.b16 %v2953
      %v2997 = vunpack.c.l.b16 %v2954
      %v2998 = vunpack.c.l.b16 %v2955
      %v2999 = vunpack.c.l.b16 %v2956
      %v3000 = vunpack.c.l.b16 %v2957
      %v3001 = vunpack.c.l.b16 %v2958
      %v3002 = vunpack.c.l.b16 %v2959
      %v3003 = vunpack.c.l.b16 %v2960
      %v3004 = vpack.c.b16 %v2987, %v2986
      %v3005 = vpack.c.b16 %v2989, %v2988
      %v3006 = vpack.c.b16 %v2991, %v2990
      %v3007 = vpack.c.b16 %v2993, %v2992
      %v3008 = vpack.c.b16 %v2995, %v2994
      %v3009 = vpack.c.b16 %v2997, %v2996
      %v3010 = vpack.c.b16 %v2999, %v2998
      %v3011 = vpack.c.b16 %v3001, %v3000
      %v3012 = vpack.c.b16 %v3003, %v3002
      %v3023 = vsel %vm1539, %v2918, 0
      %v3026 = vsel %vm1539, %v2920, 0
      %v3029 = vsel %vm1539, %v2922, 0
      %v3032 = vsel %vm1539, %v2924, 0
      %v3035 = vsel %vm1539, %v2926, 0
      %v3038 = vsel %vm1539, %v2928, 0
      %v3041 = vsel %vm1539, %v2930, 0
      %v3044 = vsel %vm1539, %v2932, 0
      %v3047 = vsel %vm1539, %v2934, 0
      %v3050 = vsel %vm1539, %v2936, 0
      %v3053 = vsel %vm1539, %v2938, 0
      %v3056 = vsel %vm1539, %v2940, 0
      %v3059 = vsel %vm1539, %v2942, 0
      %3061 = vmatprep.subr.bf16.mxu0 0
      %3062 = vmatpush1.bf16.msra.mxu0 %v3004
      %3063 = vmatprep.subr.bf16.mxu0 0
      %3064 = vmatpush1.bf16.msra.mxu0 %v3005
      %3065 = vmatprep.subr.bf16.mxu0 0
      %3066 = vmatpush1.bf16.msra.mxu0 %v3006
      %3067 = vmatprep.subr.bf16.mxu0 0
      %3068 = vmatpush1.bf16.msra.mxu0 %v3007
      %3069 = vmatprep.subr.bf16.mxu0 0
      %3070 = vmatpush1.bf16.msra.mxu0 %v3008
      %3071 = vmatprep.subr.bf16.mxu0 0
      %3072 = vmatpush1.bf16.msra.mxu0 %v3009
      %3073 = vmatprep.subr.bf16.mxu0 0
      %3074 = vmatpush1.bf16.msra.mxu0 %v3010
      %3075 = vmatprep.subr.bf16.mxu0 0
      %3076 = vmatpush1.bf16.msra.mxu0 %v3011
      %3077 = vmatprep.subr.bf16.mxu0 0
      %3078 = vmatpush1.bf16.msra.mxu0 %v3012
      %3079 = vmatprep.subr.bf16.mxu0 0
      %3080 = vmatpush1.bf16.msra.mxu0 0
      %3081 = vmatprep.subr.bf16.mxu0 0
      %3082 = vmatpush1.bf16.msra.mxu0 0
      %3083 = vmatprep.subr.bf16.mxu0 0
      %3084 = vmatpush1.bf16.msra.mxu0 0
      %3085 = vmatprep.subr.bf16.mxu0 0
      %3086 = vmatpush1.bf16.msra.mxu0 0
      %3087 = vmatprep.subr.bf16.mxu0 0
      %3088 = vmatpush1.bf16.msra.mxu0 0
      %3089 = vmatprep.subr.bf16.mxu0 0
      %3090 = vmatpush1.bf16.msra.mxu0 0
      %3091 = vmatprep.subr.bf16.mxu0 0
      %3092 = vmatpush1.bf16.msra.mxu0 0
      %3093 = vmatprep.mubr.bf16.mxu0 %v3023
      %3094 = vmatmul.mubr.bf16.gmra.mrb[0].mxu0 %v2917
      %v3095 = vpop.f32.mrb[0].mxu0
      %v3096 = vadd.f32 %v2966, %v3095
      %v3097 = vpop.f32.mrb[0].mxu0
      %v3098 = vpop.f32.mrb[0].mxu0
      %v3099 = vadd.f32 %v2966, %v3098
      %v3100 = vpop.f32.mrb[0].mxu0
      %3101 = vmatprep.mubr.bf16.mxu0 %v3026
      %3102 = vmatmul.mubr.bf16.gmra.mrb[0].mxu0 %v2919
      %v3103 = vpop.f32.mrb[0].mxu0
      %v3104 = vadd.f32 %v2966, %v3103
      %v3105 = vpop.f32.mrb[0].mxu0
      %v3106 = vpop.f32.mrb[0].mxu0
      %v3107 = vadd.f32 %v2966, %v3106
      %v3108 = vpop.f32.mrb[0].mxu0
      %3109 = vmatprep.mubr.bf16.mxu0 %v3029
      %3110 = vmatmul.mubr.bf16.gmra.mrb[0].mxu0 %v2921
      %v3111 = vpop.f32.mrb[0].mxu0
      %v3112 = vadd.f32 %v2966, %v3111
      %v3113 = vpop.f32.mrb[0].mxu0
      %v3114 = vpop.f32.mrb[0].mxu0
      %v3115 = vadd.f32 %v2966, %v3114
      %v3116 = vpop.f32.mrb[0].mxu0
      %3117 = vmatprep.mubr.bf16.mxu0 %v3032
      %3118 = vmatmul.mubr.bf16.gmra.mrb[0].mxu0 %v2923
      %v3119 = vpop.f32.mrb[0].mxu0
      %v3120 = vadd.f32 %v2966, %v3119
      %v3121 = vpop.f32.mrb[0].mxu0
      %v3122 = vpop.f32.mrb[0].mxu0
      %v3123 = vadd.f32 %v2966, %v3122
      %v3124 = vpop.f32.mrb[0].mxu0
      %3125 = vmatprep.mubr.bf16.mxu0 %v3035
      %3126 = vmatmul.mubr.bf16.gmra.mrb[0].mxu0 %v2925
      %v3127 = vpop.f32.mrb[0].mxu0
      %v3128 = vadd.f32 %v2966, %v3127
      %v3129 = vpop.f32.mrb[0].mxu0
      %v3130 = vpop.f32.mrb[0].mxu0
      %v3131 = vadd.f32 %v2966, %v3130
      %v3132 = vpop.f32.mrb[0].mxu0
      %3133 = vmatprep.mubr.bf16.mxu0 %v3038
      %3134 = vmatmul.mubr.bf16.gmra.mrb[0].mxu0 %v2927
      %v3135 = vpop.f32.mrb[0].mxu0
      %v3136 = vadd.f32 %v2966, %v3135
      %v3137 = vpop.f32.mrb[0].mxu0
      %v3138 = vpop.f32.mrb[0].mxu0
      %v3139 = vadd.f32 %v2966, %v3138
      %v3140 = vpop.f32.mrb[0].mxu0
      %3141 = vmatprep.mubr.bf16.mxu0 %v3041
      %3142 = vmatmul.mubr.bf16.gmra.mrb[0].mxu0 %v2929
      %v3143 = vpop.f32.mrb[0].mxu0
      %v3144 = vadd.f32 %v2966, %v3143
      %v3145 = vpop.f32.mrb[0].mxu0
      %v3146 = vpop.f32.mrb[0].mxu0
      %v3147 = vadd.f32 %v2966, %v3146
      %v3148 = vpop.f32.mrb[0].mxu0
      %3149 = vmatprep.mubr.bf16.mxu0 %v3044
      %3150 = vmatmul.mubr.bf16.gmra.mrb[0].mxu0 %v2931
      %v3151 = vpop.f32.mrb[0].mxu0
      %v3152 = vadd.f32 %v2966, %v3151
      %v3153 = vpop.f32.mrb[0].mxu0
      %v3154 = vpop.f32.mrb[0].mxu0
      %v3155 = vadd.f32 %v2966, %v3154
      %v3156 = vpop.f32.mrb[0].mxu0
      %3157 = vmatprep.mubr.bf16.mxu0 %v3047
      %3158 = vmatmul.mubr.bf16.gmra.mrb[0].mxu0 %v2933
      %v3159 = vpop.f32.mrb[0].mxu0
      %v3160 = vadd.f32 %v2966, %v3159
      %v3161 = vpop.f32.mrb[0].mxu0
      %v3162 = vpop.f32.mrb[0].mxu0
      %v3163 = vadd.f32 %v2966, %v3162
      %v3164 = vpop.f32.mrb[0].mxu0
      %3165 = vmatprep.mubr.bf16.mxu0 %v3050
      %3166 = vmatmul.mubr.bf16.gmra.mrb[0].mxu0 %v2935
      %v3167 = vpop.f32.mrb[0].mxu0
      %v3168 = vadd.f32 %v2966, %v3167
      %v3169 = vpop.f32.mrb[0].mxu0
      %v3170 = vpop.f32.mrb[0].mxu0
      %v3171 = vadd.f32 %v2966, %v3170
      %v3172 = vpop.f32.mrb[0].mxu0
      %3173 = vmatprep.mubr.bf16.mxu0 %v3053
      %3174 = vmatmul.mubr.bf16.gmra.mrb[0].mxu0 %v2937
      %v3175 = vpop.f32.mrb[0].mxu0
      %v3176 = vadd.f32 %v2966, %v3175
      %v3177 = vpop.f32.mrb[0].mxu0
      %v3178 = vpop.f32.mrb[0].mxu0
      %v3179 = vadd.f32 %v2966, %v3178
      %v3180 = vpop.f32.mrb[0].mxu0
      %3181 = vmatprep.mubr.bf16.mxu0 %v3056
      %3182 = vmatmul.mubr.bf16.gmra.mrb[0].mxu0 %v2939
      %v3183 = vpop.f32.mrb[0].mxu0
      %v3184 = vadd.f32 %v2966, %v3183
      %v3185 = vpop.f32.mrb[0].mxu0
      %v3186 = vpop.f32.mrb[0].mxu0
      %v3187 = vadd.f32 %v2966, %v3186
      %v3188 = vpop.f32.mrb[0].mxu0
      %3189 = vmatprep.mubr.bf16.mxu0 %v3059
      %3190 = vmatmul.mubr.bf16.gmra.mrb[0].mxu0 %v2941
      %v3191 = vpop.f32.mrb[0].mxu0
      %v3192 = vadd.f32 %v2966, %v3191
      %v3193 = vpop.f32.mrb[0].mxu0
      %v3194 = vpop.f32.mrb[0].mxu0
      %v3195 = vpop.f32.mrb[0].mxu0
      %3196 = vdwg.mxu0
      %v3197 = vmax.f32 %v3096, 0.0
      %v3198 = vmax.f32 %v3099, 0.0
      %v3199 = vmax.f32 %v3104, 0.0
      %v3200 = vmax.f32 %v3107, 0.0
      %v3201 = vmax.f32 %v3112, 0.0
      %v3202 = vmax.f32 %v3115, 0.0
      %v3203 = vmax.f32 %v3120, 0.0
      %v3204 = vmax.f32 %v3123, 0.0
      %v3205 = vmax.f32 %v3128, 0.0
      %v3206 = vmax.f32 %v3131, 0.0
      %v3207 = vmax.f32 %v3136, 0.0
      %v3208 = vmax.f32 %v3139, 0.0
      %v3209 = vmax.f32 %v3144, 0.0
      %v3210 = vmax.f32 %v3147, 0.0
      %v3211 = vmax.f32 %v3152, 0.0
      %v3212 = vmax.f32 %v3155, 0.0
      %v3213 = vmax.f32 %v3160, 0.0
      %v3214 = vmax.f32 %v3163, 0.0
      %v3215 = vmax.f32 %v3168, 0.0
      %v3216 = vmax.f32 %v3171, 0.0
      %v3217 = vmax.f32 %v3176, 0.0
      %v3218 = vmax.f32 %v3179, 0.0
      %v3219 = vmax.f32 %v3184, 0.0
      %v3220 = vmax.f32 %v3187, 0.0
      %v3221 = vmax.f32 %v3192, 0.0
      %v3229 = vrot.slane %v3203, 1
      %v3230 = vrot.slane %v3204, 1
      %v3231 = vsel %vm2005, %v3229, %v3230
      %v3232 = vrot.slane %v3205, 1
      %v3233 = vsel %vm2005, %v3230, %v3232
      %v3234 = vrot.slane %v3206, 1
      %v3235 = vsel %vm2005, %v3232, %v3234
      %v3236 = vrot.slane %v3207, 1
      %v3237 = vsel %vm2005, %v3234, %v3236
      %v3238 = vrot.slane %v3208, 1
      %v3239 = vsel %vm2005, %v3236, %v3238
      %v3240 = vrot.slane %v3209, 1
      %v3241 = vsel %vm2005, %v3238, %v3240
      %v3249 = vmax.f32 %v3197, %v3231
      %v3250 = vmax.f32 %v3198, %v3233
      %v3251 = vmax.f32 %v3199, %v3235
      %v3252 = vmax.f32 %v3200, %v3237
      %v3253 = vmax.f32 %v3201, %v3239
      %v3254 = vmax.f32 %v3202, %v3241
      %v3255 = vmax.f32 %v3203, %v3240
      %v3263 = vrot.slane %v3215, 1
      %v3264 = vrot.slane %v3216, 1
      %v3265 = vsel %vm2005, %v3263, %v3264
      %v3266 = vrot.slane %v3217, 1
      %v3267 = vsel %vm2005, %v3264, %v3266
      %v3268 = vrot.slane %v3218, 1
      %v3269 = vsel %vm2005, %v3266, %v3268
      %v3270 = vrot.slane %v3219, 1
      %v3271 = vsel %vm2005, %v3268, %v3270
      %v3272 = vrot.slane %v3220, 1
      %v3273 = vsel %vm2005, %v3270, %v3272
      %v3274 = vrot.slane %v3221, 1
      %v3275 = vsel %vm2005, %v3272, %v3274
      %v3283 = vmax.f32 %v3209, %v3265
      %v3284 = vmax.f32 %v3210, %v3267
      %v3285 = vmax.f32 %v3211, %v3269
      %v3286 = vmax.f32 %v3212, %v3271
      %v3287 = vmax.f32 %v3213, %v3273
      %v3288 = vmax.f32 %v3214, %v3275
      %v3289 = vmax.f32 %v3215, %v3274
      %v3297 = vrot.slane %v3283, 2
      %v3298 = vrot.slane %v3284, 2
      %v3299 = vsel %vm2008, %v3297, %v3298
      %v3300 = vrot.slane %v3285, 2
      %v3301 = vsel %vm2008, %v3298, %v3300
      %v3302 = vrot.slane %v3286, 2
      %v3303 = vsel %vm2008, %v3300, %v3302
      %v3304 = vrot.slane %v3287, 2
      %v3305 = vsel %vm2008, %v3302, %v3304
      %v3306 = vrot.slane %v3288, 2
      %v3307 = vsel %vm2008, %v3304, %v3306
      %v3308 = vrot.slane %v3289, 2
      %v3309 = vsel %vm2008, %v3306, %v3308
      %v3317 = vmax.f32 %v3249, %v3299
      %v3318 = vmax.f32 %v3250, %v3301
      %v3319 = vmax.f32 %v3251, %v3303
      %v3320 = vmax.f32 %v3252, %v3305
      %v3321 = vmax.f32 %v3253, %v3307
      %v3322 = vmax.f32 %v3254, %v3309
      %v3323 = vmax.f32 %v3255, %v3308
      %v3324 = vpack.c.bf16 %v3318, %v3317
      %v3325 = vpack.c.bf16 %v3320, %v3319
      %v3326 = vpack.c.bf16 %v3322, %v3321
      %v3327 = vpack.c.bf16 %v3323, %v3323
      %v3332 = vunpack.c.l.b16 %v3324
      %v3333 = vunpack.c.h.b16 %v3324
      %v3334 = vunpack.c.l.b16 %v3325
      %v3335 = vunpack.c.h.b16 %v3325
      %v3336 = vunpack.c.l.b16 %v3326
      %v3337 = vunpack.c.h.b16 %v3326
      %v3338 = vunpack.c.l.b16 %v3327
      %v3339 = vpack.c.b16 %v3332, %v3332
      %v3340 = vpack.c.b16 %v3333, %v3333
      %v3341 = vpack.c.b16 %v3334, %v3334
      %v3342 = vpack.c.b16 %v3335, %v3335
      %v3343 = vpack.c.b16 %v3336, %v3336
      %v3344 = vpack.c.b16 %v3337, %v3337
      %v3345 = vpack.c.b16 %v3338, %v3338
      %3353 = vst.msk [vmem:[%s224] sm:$0xf] %vm1598, %v3339
      %3354 = vst.msk [vmem:[%s224 + $0x4] sm:$0xf] %vm1598, %v3340
      %3355 = vst.msk [vmem:[%s224 + $0x8] sm:$0xf] %vm1598, %v3341
      %3356 = vst.msk [vmem:[%s224 + $0xc] sm:$0xf] %vm1598, %v3342
      %3357 = vst.msk [vmem:[%s224 + $0x10] sm:$0xf] %vm1598, %v3343
      %3358 = vst.msk [vmem:[%s224 + $0x14] sm:$0xf] %vm1598, %v3344
      %vm3359 = vcmask 122880
      %vm3360 = vsmask.f32 256
      %vm3361 = vmand %vm3359, %vm3360
      %v3362 = vld [vmem:[%s224 + $0x18] sm:$0x1]
      %v3363 = vsel %vm3361, %v3345, %v3362
      %3364 = vst [vmem:[%s224 + $0x18] sm:$0x1] %v3363
      %p3365 = scmp.lt.s32.totalorder %s16, 1
      %s3366 = scalar_select %p3365, %s16, 1
      %s3367 = smul.addr %s3366, 7
      %s3368 = smul.addr %s3367, 4
      %s3369 = scalar_lea.vmem %s5, %s3368
      // Predicated region
      $region41: #{convnet_forward.2} parent=39 // pred_check
        %p3370 = pneg %p144
      $region42: #{convnet_forward.2} parent=39 // pred_check_branch
        %3372 = sbr.rel (%p3370) target = $region44
      $region43: #{convnet_forward.2} parent=39 // pred_region
        _
      $region44: #{convnet_forward.2} parent=39 // pred_fallthru
        _
    $region40: #{convnet_forward.2} parent=5 // pred_fallthru
      _
    %p3373 = scmp.le.s32.totalorder 2, %s11
    // Predicated region
    $region45: #{convnet_forward.2} parent=5 // pred_check
      %p3374 = pneg %p3373
    $region46: #{convnet_forward.2} parent=5 // pred_check_branch
      %3376 = sbr.rel (%p3374) target = $region48
    $region47: #{convnet_forward.2} parent=5 // pred_region
      %s3377 = ssub.s32 %s11, 2
      // Predicated region
      $region49: #{convnet_forward.2} parent=47 // pred_check
        %p3378 = pneg %p150
      $region50: #{convnet_forward.2} parent=47 // pred_check_branch
        %3380 = sbr.rel (%p3378) target = $region52
      $region51: #{convnet_forward.2} parent=47 // pred_region
        %p3381 = scmp.lt.s32.totalorder %s17, 1
        %s3382 = scalar_select %p3381, %s17, 1
        %s3383 = smul.addr %s3382, 7
        %s3384 = smul.addr %s3383, 4
        %s3385 = scalar_lea.vmem %s5, %s3384
      $region52: #{convnet_forward.2} parent=47 // pred_fallthru
        _
    $region48: #{convnet_forward.2} parent=5 // pred_fallthru
      _
  $region6: #{convnet_forward.2} parent=0 // loop_footer
    %s15 = sadd.s32 1, %s11
  $region7: #{convnet_forward.2} parent=0 // loop_footer_branch
    %10 = sbr.rel target = $region3
  $region8: #{convnet_forward.2} parent=0 // loop_exit
    _

</llo_original>
